<compile_context>
chip_gen: v5e
topology: v5e:2x2
jax: 0.10.0
libtpu: 0.0.40
codegen_flags: <defaults>
</compile_context>

<pallas_src>
import functools
import math

import jax
import jax.numpy as jnp
from jax.experimental import pallas as pl
from jax.experimental.pallas import tpu as pltpu


# ----------------------------- shared math helpers ----------------------------
# Plain jnp functions, used both inside the Pallas kernel and in the pure-JAX
# reference used for the in-script correctness check.

_SQRT_HALF = 0.7071067811865476


def _erf(x):
    # Abramowitz & Stegun 7.1.26 rational approximation (|err| < 1.5e-7), built
    # only from ops with guaranteed Mosaic lowerings (exp / mul / add / select).
    # (lax.erf has no guaranteed Pallas-TPU lowering; this matches
    #  torch.nn.GELU(approximate='none') to ~1e-7.)
    a1, a2, a3, a4, a5 = 0.254829592, -0.284496736, 1.421413741, -1.453152027, 1.061405429
    p = 0.3275911
    sign = jnp.where(x >= 0.0, 1.0, -1.0)
    ax = jnp.abs(x)
    t = 1.0 / (1.0 + p * ax)
    poly = ((((a5 * t + a4) * t + a3) * t + a2) * t + a1) * t
    return sign * (1.0 - poly * jnp.exp(-ax * ax))


def _gelu(x):
    # exact (erf-based) GELU, matching torch.nn.GELU(approximate='none')
    return 0.5 * x * (1.0 + _erf(x * _SQRT_HALF))


def _layer_norm(x, w, b, eps=1e-5):
    # torch.nn.LayerNorm over the last (channel) dim, biased variance, f32.
    mu = jnp.mean(x, axis=-1, keepdims=True)
    var = jnp.mean((x - mu) ** 2, axis=-1, keepdims=True)
    return (x - mu) * jax.lax.rsqrt(var + eps) * w + b


# ------------------------------ fused forward kernel --------------------------

def _bytenet_fused_kernel(x_ref, adj_w, adj_b,
                          ln1w, ln1b, w1, b1, ln2w, ln2b, wc, bc,
                          ln3w, ln3b, w2, b2,
                          down_w, down_b, out_w, out_b,
                          o_ref, stk_ref,
                          *, n_layers, kernel_size, dilations, pool_type):
    Bn, L, Cin = x_ref.shape
    dh = w1.shape[2]
    half = kernel_size // 2          # == dilation*(k-1)//2 / dilation for odd k

    # adjuster: 1x1 Conv1d == per-position linear on the flattened rows.
    x = x_ref[...].reshape(Bn * L, Cin).astype(jnp.bfloat16)
    h = jnp.dot(x, adj_w[...], preferred_element_type=jnp.float32) + adj_b[...]

    for li in range(n_layers):       # static layer loop; weights indexed statically
        d = dilations[li]

        # sequence1: LayerNorm -> GELU -> PFF(H -> Dh) -> LayerNorm -> GELU
        t = _gelu(_layer_norm(h, ln1w[li], ln1b[li]))
        t = jnp.dot(t.astype(jnp.bfloat16), w1[li],
                    preferred_element_type=jnp.float32) + b1[li]
        t = _gelu(_layer_norm(t, ln2w[li], ln2b[li]))

        # Dilated 'same' Conv1d as ONE matmul: stage the k statically shifted,
        # zero-padded copies of t into the (Bn, L, k*Dh) VMEM scratch, then
        # contract against wc[li] of shape (k*Dh, Dh).
        stk_ref[...] = jnp.zeros_like(stk_ref)
        t3 = t.reshape(Bn, L, dh)
        for tap in range(kernel_size):
            s = (tap - half) * d                      # out[i] uses in[i + s]
            lo = tap * dh
            if s >= L or s <= -L:                     # tap fully out of range
                continue
            if s >= 0:
                stk_ref[:, 0:L - s, lo:lo + dh] = t3[:, s:L, :]
            else:
                stk_ref[:, -s:L, lo:lo + dh] = t3[:, 0:L + s, :]
        stacked = stk_ref[...].reshape(Bn * L, kernel_size * dh)
        c = jnp.dot(stacked.astype(jnp.bfloat16), wc[li],
                    preferred_element_type=jnp.float32) + bc[li]

        # sequence2: LayerNorm -> GELU -> PFF(Dh -> H), residual add in f32.
        t = _gelu(_layer_norm(c, ln3w[li], ln3b[li]))
        t = jnp.dot(t.astype(jnp.bfloat16), w2[li],
                    preferred_element_type=jnp.float32) + b2[li]
        h = h + t

    # head: relu(PFF(H -> R)) -> pool over L -> Linear(R -> 1)
    r = jnp.dot(h.astype(jnp.bfloat16), down_w[...],
                preferred_element_type=jnp.float32) + down_b[...]
    r = jnp.maximum(r, 0.0)
    r3 = r.reshape(Bn, L, r.shape[1])
    if pool_type == "max":
        pooled = jnp.max(r3, axis=1)                  # (Bn, R)
    else:
        pooled = jnp.mean(r3, axis=1)
    pred = jnp.sum(pooled * out_w[...], axis=1, keepdims=True) + out_b[...]
    o_ref[...] = pred.reshape(Bn, 1, 1)


# ------------------------------- host-side wrapper -----------------------------

_WEIGHT_ORDER = ("adj_w", "adj_b", "ln1_w", "ln1_b", "w1", "b1", "ln2_w", "ln2_b",
                 "wc", "bc", "ln3_w", "ln3_b", "w2", "b2",
                 "down_w", "down_b", "out_w", "out_b")


def _prepare_params(params):
    """Stack per-block weights along a layer axis, flatten conv taps so the
    dilated conv is a single (k*Dh, Dh) matmul, and pre-cast matmul weights to
    bf16 (biases / LayerNorm / output-layer weights stay f32)."""
    blocks = params["blocks"]
    stk = lambda name: jnp.stack([blk[name] for blk in blocks], axis=0)
    wc = stk("wc")                                    # (n_layers, k, Dh, Dh)
    nl, k, dh, _ = wc.shape
    return {
        "adj_w": params["adj_w"].astype(jnp.bfloat16),
        "adj_b": params["adj_b"],
        "ln1_w": stk("ln1_w"), "ln1_b": stk("ln1_b"),
        "w1": stk("w1").astype(jnp.bfloat16), "b1": stk("b1"),
        "ln2_w": stk("ln2_w"), "ln2_b": stk("ln2_b"),
        "wc": wc.reshape(nl, k * dh, dh).astype(jnp.bfloat16), "bc": stk("bc"),
        "ln3_w": stk("ln3_w"), "ln3_b": stk("ln3_b"),
        "w2": stk("w2").astype(jnp.bfloat16), "b2": stk("b2"),
        "down_w": params["down_w"].astype(jnp.bfloat16),
        "down_b": params["down_b"],
        "out_w": params["out_w"], "out_b": params["out_b"],
    }


def _full_spec(a):
    nd = a.ndim
    return pl.BlockSpec(a.shape, lambda n: (0,) * nd)


def _pick_batch_tile(N, L, target_rows=512):
    """Largest divisor of N whose Bn*L row count is near `target_rows`, so each
    grid step feeds the MXU wide matmuls while keeping >=1 (ideally >=2 for
    v7x's two TensorCores) parallel grid steps."""
    bn = max(1, min(N, max(1, target_rows // max(L, 1))))
    while N % bn:
        bn -= 1
    return bn


def bytenet_single_seq_forward(x, params, *, kernel_size, dilations,
                               pool_type="max", objective="regression"):
    """Forward pass of ByteNetSingleSeq (eval mode: dropout inactive, llgp=False)."""
    assert kernel_size % 2 == 1, "only odd kernel_size matches torch 'same' padding"
    N, L, Cin = x.shape
    n_layers = len(dilations)
    prep = _prepare_params(params)
    dh = prep["w1"].shape[2]
    bn = _pick_batch_tile(N, L)

    weights = [prep[k] for k in _WEIGHT_ORDER]
    kern = functools.partial(
        _bytenet_fused_kernel, n_layers=n_layers, kernel_size=kernel_size,
        dilations=tuple(int(d) for d in dilations), pool_type=pool_type)

    out = pl.pallas_call(
        kern,
        out_shape=jax.ShapeDtypeStruct((N, 1, 1), jnp.float32),
        grid=(N // bn,),
        in_specs=[pl.BlockSpec((bn, L, Cin), lambda n: (n, 0, 0))]
                 + [_full_spec(w) for w in weights],
        out_specs=pl.BlockSpec((bn, 1, 1), lambda n: (n, 0, 0)),
        # TODO(synk): for very large hidden_dim / n_layers (especially v7x's
        # 64 MiB VMEM) stream per-layer weights with a layer grid axis instead
        # of keeping the whole stacked weight set resident.
        scratch_shapes=[pltpu.VMEM((bn, L, kernel_size * dh), jnp.float32)],
        compiler_params=pltpu.CompilerParams(
            dimension_semantics=("parallel",)),
    )(x, *weights)

    preds = out[:, 0, 0]                              # preds.squeeze(1)
    if objective == "regression":
        return preds
    if objective == "binary_classifier":
        return jax.nn.sigmoid(preds)
    # TODO(synk): llgp=True (VanillaRFFLayer GP head), multiclass / ordinal heads
    # are not implemented; default (regression, llgp=False) semantics are covered.
    raise NotImplementedError(objective)


# ----------------------- pure-JAX reference (same math) ------------------------

def _shift_rows(x, s):
    """Zero-padded shift along axis 1: y[:, i] = x[:, i + s] for valid i+s else 0."""
    B, L, C = x.shape
    if s == 0:
        return x
    if s >= L or s <= -L:
        return jnp.zeros_like(x)
    pad = jnp.zeros((B, abs(s), C), x.dtype)
    if s > 0:
        return jnp.concatenate([x[:, s:, :], pad], axis=1)
    return jnp.concatenate([pad, x[:, :L + s, :]], axis=1)


def bytenet_single_seq_reference(x, params, *, kernel_size, dilations,
                                 pool_type="max", objective="regression"):
    prep = _prepare_params(params)
    N, L, Cin = x.shape
    half = kernel_size // 2
    h = jnp.dot(x.reshape(N * L, Cin).astype(jnp.bfloat16), prep["adj_w"],
                preferred_element_type=jnp.float32) + prep["adj_b"]
    for li, d in enumerate(dilations):
        t = _gelu(_layer_norm(h, prep["ln1_w"][li], prep["ln1_b"][li]))
        t = jnp.dot(t.astype(jnp.bfloat16), prep["w1"][li],
                    preferred_element_type=jnp.float32) + prep["b1"][li]
        t = _gelu(_layer_norm(t, prep["ln2_w"][li], prep["ln2_b"][li]))
        dh = t.shape[1]
        t3 = t.reshape(N, L, dh)
        stacked = jnp.concatenate(
            [_shift_rows(t3, (tap - half) * d) for tap in range(kernel_size)],
            axis=-1).reshape(N * L, kernel_size * dh)
        c = jnp.dot(stacked.astype(jnp.bfloat16), prep["wc"][li],
                    preferred_element_type=jnp.float32) + prep["bc"][li]
        t = _gelu(_layer_norm(c, prep["ln3_w"][li], prep["ln3_b"][li]))
        t = jnp.dot(t.astype(jnp.bfloat16), prep["w2"][li],
                    preferred_element_type=jnp.float32) + prep["b2"][li]
        h = h + t
    r = jnp.maximum(jnp.dot(h.astype(jnp.bfloat16), prep["down_w"],
                            preferred_element_type=jnp.float32) + prep["down_b"], 0.0)
    r3 = r.reshape(N, L, -1)
    pooled = jnp.max(r3, axis=1) if pool_type == "max" else jnp.mean(r3, axis=1)
    preds = jnp.sum(pooled * prep["out_w"], axis=1) + prep["out_b"][0, 0]
    if objective == "binary_classifier":
        return jax.nn.sigmoid(preds)
    return preds


# ------------------------------ model parameters -------------------------------

def init_params(key, input_dim, hidden_dim, n_layers, kernel_size, dil_factor,
                rep_dim, slim=False):
    d_h = hidden_dim // 2 if slim else hidden_dim
    dil_log2 = int(math.log2(dil_factor)) + 1
    dilations = [2 ** (n % dil_log2) for n in range(n_layers)]

    keys = jax.random.split(key, 3 + n_layers)

    def lin(k, fan_in, shape):
        return jax.random.normal(k, shape, jnp.float32) / math.sqrt(fan_in)

    params = {
        "adj_w": lin(keys[0], input_dim, (input_dim, hidden_dim)),
        "adj_b": jnp.zeros((1, hidden_dim), jnp.float32),
        "down_w": lin(keys[1], hidden_dim, (hidden_dim, rep_dim)),
        "down_b": jnp.zeros((1, rep_dim), jnp.float32),
        "out_w": lin(keys[2], rep_dim, (1, rep_dim)),   # torch Linear weight (1, R)
        "out_b": jnp.zeros((1, 1), jnp.float32),
        "blocks": [],
    }
    for i in range(n_layers):
        k1, k2, k3 = jax.random.split(keys[3 + i], 3)
        params["blocks"].append({
            "ln1_w": jnp.ones((1, hidden_dim), jnp.float32),
            "ln1_b": jnp.zeros((1, hidden_dim), jnp.float32),
            "w1": lin(k1, hidden_dim, (hidden_dim, d_h)),
            "b1": jnp.zeros((1, d_h), jnp.float32),
            "ln2_w": jnp.ones((1, d_h), jnp.float32),
            "ln2_b": jnp.zeros((1, d_h), jnp.float32),
            # conv weight per tap: (k, c_in, c_out) == torch (c_out, c_in, k) transposed
            "wc": lin(k2, d_h * kernel_size, (kernel_size, d_h, d_h)),
            "bc": jnp.zeros((1, d_h), jnp.float32),
            "ln3_w": jnp.ones((1, d_h), jnp.float32),
            "ln3_b": jnp.zeros((1, d_h), jnp.float32),
            "w2": lin(k3, d_h, (d_h, hidden_dim)),
            "b2": jnp.zeros((1, hidden_dim), jnp.float32),
        })
    return params, dilations


# ------------------------------------ main --------------------------------------

if __name__ == "__main__":
    N, L, input_dim = 2, 16, 20
    hidden_dim, n_layers, kernel_size, dil_factor, rep_dim = 32, 2, 5, 2, 16

    key = jax.random.PRNGKey(0)
    k_x, k_p = jax.random.split(key)
    x = jax.random.normal(k_x, (N, L, input_dim), dtype=jnp.float32)

    params, dilations = init_params(k_p, input_dim, hidden_dim, n_layers,
                                    kernel_size, dil_factor, rep_dim)

    fwd = jax.jit(functools.partial(
        bytenet_single_seq_forward, kernel_size=kernel_size,
        dilations=tuple(dilations), pool_type="max", objective="regression"))
    preds = jax.block_until_ready(fwd(x, params))
    assert preds.shape == (N,), preds.shape
    assert bool(jnp.all(jnp.isfinite(preds)))

    # cross-check against a pure-JAX (XLA) implementation of the same math
    ref = bytenet_single_seq_reference(x, params, kernel_size=kernel_size,
                                       dilations=tuple(dilations),
                                       pool_type="max", objective="regression")
    ref = jax.block_until_ready(ref)
    assert jnp.allclose(preds, ref, rtol=1e-2, atol=1e-2), (preds, ref)

    print("KERNEL_OK")
</pallas_src>

<mosaic_0001>
module attributes {stable_mosaic.version = 11 : i64} {
  func.func @_bytenet_fused_kernel(%arg0: i32, %arg1: memref<2x16x20xf32, #tpu.memory_space<vmem>>, %arg2: memref<20x32xbf16, #tpu.memory_space<vmem>>, %arg3: memref<1x32xf32, #tpu.memory_space<vmem>>, %arg4: memref<2x1x32xf32, #tpu.memory_space<vmem>>, %arg5: memref<2x1x32xf32, #tpu.memory_space<vmem>>, %arg6: memref<2x32x32xbf16, #tpu.memory_space<vmem>>, %arg7: memref<2x1x32xf32, #tpu.memory_space<vmem>>, %arg8: memref<2x1x32xf32, #tpu.memory_space<vmem>>, %arg9: memref<2x1x32xf32, #tpu.memory_space<vmem>>, %arg10: memref<2x160x32xbf16, #tpu.memory_space<vmem>>, %arg11: memref<2x1x32xf32, #tpu.memory_space<vmem>>, %arg12: memref<2x1x32xf32, #tpu.memory_space<vmem>>, %arg13: memref<2x1x32xf32, #tpu.memory_space<vmem>>, %arg14: memref<2x32x32xbf16, #tpu.memory_space<vmem>>, %arg15: memref<2x1x32xf32, #tpu.memory_space<vmem>>, %arg16: memref<32x16xbf16, #tpu.memory_space<vmem>>, %arg17: memref<1x16xf32, #tpu.memory_space<vmem>>, %arg18: memref<1x16xf32, #tpu.memory_space<vmem>>, %arg19: memref<1x1xf32, #tpu.memory_space<vmem>>, %arg20: memref<2x1x1xf32, #tpu.memory_space<vmem>>, %arg21: memref<2x16x160xf32, #tpu.memory_space<vmem>>) attributes {dimension_semantics = [#tpu.dimension_semantics<parallel>], iteration_bounds = array<i64: 1>, scalar_prefetch = 0 : i64, scratch_operands = 1 : i64, tpu.core_type = #tpu.core_type<tc>, window_params = [{transform_indices = @transform_0, window_bounds = array<i64: 2, 16, 20>}, {pipeline_mode = #tpu.pipeline_mode<synchronous>, transform_indices = @transform_1, window_bounds = array<i64: 20, 32>}, {pipeline_mode = #tpu.pipeline_mode<synchronous>, transform_indices = @transform_2, window_bounds = array<i64: 1, 32>}, {pipeline_mode = #tpu.pipeline_mode<synchronous>, transform_indices = @transform_3, window_bounds = array<i64: 2, 1, 32>}, {pipeline_mode = #tpu.pipeline_mode<synchronous>, transform_indices = @transform_4, window_bounds = array<i64: 2, 1, 32>}, {pipeline_mode = #tpu.pipeline_mode<synchronous>, transform_indices = @transform_5, window_bounds = array<i64: 2, 32, 32>}, {pipeline_mode = #tpu.pipeline_mode<synchronous>, transform_indices = @transform_6, window_bounds = array<i64: 2, 1, 32>}, {pipeline_mode = #tpu.pipeline_mode<synchronous>, transform_indices = @transform_7, window_bounds = array<i64: 2, 1, 32>}, {pipeline_mode = #tpu.pipeline_mode<synchronous>, transform_indices = @transform_8, window_bounds = array<i64: 2, 1, 32>}, {pipeline_mode = #tpu.pipeline_mode<synchronous>, transform_indices = @transform_9, window_bounds = array<i64: 2, 160, 32>}, {pipeline_mode = #tpu.pipeline_mode<synchronous>, transform_indices = @transform_10, window_bounds = array<i64: 2, 1, 32>}, {pipeline_mode = #tpu.pipeline_mode<synchronous>, transform_indices = @transform_11, window_bounds = array<i64: 2, 1, 32>}, {pipeline_mode = #tpu.pipeline_mode<synchronous>, transform_indices = @transform_12, window_bounds = array<i64: 2, 1, 32>}, {pipeline_mode = #tpu.pipeline_mode<synchronous>, transform_indices = @transform_13, window_bounds = array<i64: 2, 32, 32>}, {pipeline_mode = #tpu.pipeline_mode<synchronous>, transform_indices = @transform_14, window_bounds = array<i64: 2, 1, 32>}, {pipeline_mode = #tpu.pipeline_mode<synchronous>, transform_indices = @transform_15, window_bounds = array<i64: 32, 16>}, {pipeline_mode = #tpu.pipeline_mode<synchronous>, transform_indices = @transform_16, window_bounds = array<i64: 1, 16>}, {pipeline_mode = #tpu.pipeline_mode<synchronous>, transform_indices = @transform_17, window_bounds = array<i64: 1, 16>}, {pipeline_mode = #tpu.pipeline_mode<synchronous>, transform_indices = @transform_18, window_bounds = array<i64: 1, 1>}, {transform_indices = @transform_19, window_bounds = array<i64: 2, 1, 1>}]} {
    %c0 = arith.constant 0 : index
    %c0_0 = arith.constant 0 : index
    %c0_1 = arith.constant 0 : index
    %0 = vector.load %arg1[%c0, %c0_0, %c0_1] : memref<2x16x20xf32, #tpu.memory_space<vmem>>, vector<2x16x20xf32>
    %1 = vector.shape_cast %0 : vector<2x16x20xf32> to vector<32x20xf32>
    %2 = arith.truncf %1 : vector<32x20xf32> to vector<32x20xbf16>
    %c0_2 = arith.constant 0 : index
    %c0_3 = arith.constant 0 : index
    %3 = vector.load %arg2[%c0_2, %c0_3] : memref<20x32xbf16, #tpu.memory_space<vmem>>, vector<20x32xbf16>
    %cst = arith.constant dense<0.000000e+00> : vector<32x32xf32>
    %4 = tpu.matmul %2, %3, %cst {dimension_numbers = #tpu.dot_dimension_numbers<[1], [0], [0], [1], [0, 0, 1, 1], [], []>} : vector<32x20xbf16>, vector<20x32xbf16>, vector<32x32xf32> -> vector<32x32xf32>
    %c0_4 = arith.constant 0 : index
    %c0_5 = arith.constant 0 : index
    %5 = vector.load %arg3[%c0_4, %c0_5] : memref<1x32xf32, #tpu.memory_space<vmem>>, vector<1x32xf32>
    %6 = vector.broadcast %5 : vector<1x32xf32> to vector<32x32xf32>
    %7 = arith.addf %4, %6 : vector<32x32xf32>
    %c0_6 = arith.constant 0 : index
    %c0_7 = arith.constant 0 : index
    %c0_8 = arith.constant 0 : index
    %8 = vector.load %arg4[%c0_6, %c0_7, %c0_8] : memref<2x1x32xf32, #tpu.memory_space<vmem>>, vector<1x1x32xf32>
    %9 = vector.shape_cast %8 : vector<1x1x32xf32> to vector<1x32xf32>
    %c0_9 = arith.constant 0 : index
    %c0_10 = arith.constant 0 : index
    %c0_11 = arith.constant 0 : index
    %10 = vector.load %arg5[%c0_9, %c0_10, %c0_11] : memref<2x1x32xf32, #tpu.memory_space<vmem>>, vector<1x1x32xf32>
    %11 = vector.shape_cast %10 : vector<1x1x32xf32> to vector<1x32xf32>
    %cst_12 = arith.constant dense<0.000000e+00> : vector<32xf32>
    %12 = vector.multi_reduction <add>, %7, %cst_12 [1] : vector<32x32xf32> to vector<32xf32>
    %13 = vector.shape_cast %12 : vector<32xf32> to vector<32x1xf32>
    %cst_13 = arith.constant 3.200000e+01 : f32
    %14 = vector.broadcast %cst_13 : f32 to vector<32x1xf32>
    %15 = arith.divf %13, %14 : vector<32x1xf32>
    %16 = vector.broadcast %15 : vector<32x1xf32> to vector<32x32xf32>
    %17 = arith.subf %7, %16 : vector<32x32xf32>
    %18 = arith.mulf %17, %17 : vector<32x32xf32>
    %cst_14 = arith.constant dense<0.000000e+00> : vector<32xf32>
    %19 = vector.multi_reduction <add>, %18, %cst_14 [1] : vector<32x32xf32> to vector<32xf32>
    %20 = vector.shape_cast %19 : vector<32xf32> to vector<32x1xf32>
    %cst_15 = arith.constant 3.200000e+01 : f32
    %21 = vector.broadcast %cst_15 : f32 to vector<32x1xf32>
    %22 = arith.divf %20, %21 : vector<32x1xf32>
    %23 = vector.broadcast %15 : vector<32x1xf32> to vector<32x32xf32>
    %24 = arith.subf %7, %23 : vector<32x32xf32>
    %cst_16 = arith.constant 9.99999974E-6 : f32
    %25 = vector.broadcast %cst_16 : f32 to vector<32x1xf32>
    %26 = arith.addf %22, %25 : vector<32x1xf32>
    %27 = math.rsqrt %26 : vector<32x1xf32>
    %28 = vector.broadcast %27 : vector<32x1xf32> to vector<32x32xf32>
    %29 = arith.mulf %24, %28 : vector<32x32xf32>
    %30 = vector.broadcast %9 : vector<1x32xf32> to vector<32x32xf32>
    %31 = arith.mulf %29, %30 : vector<32x32xf32>
    %32 = vector.broadcast %11 : vector<1x32xf32> to vector<32x32xf32>
    %33 = arith.addf %31, %32 : vector<32x32xf32>
    %cst_17 = arith.constant 5.000000e-01 : f32
    %34 = vector.broadcast %cst_17 : f32 to vector<32x32xf32>
    %35 = arith.mulf %34, %33 : vector<32x32xf32>
    %cst_18 = arith.constant 0.707106769 : f32
    %36 = vector.broadcast %cst_18 : f32 to vector<32x32xf32>
    %37 = arith.mulf %33, %36 : vector<32x32xf32>
    %cst_19 = arith.constant 0.000000e+00 : f32
    %38 = vector.broadcast %cst_19 : f32 to vector<32x32xf32>
    %39 = arith.cmpf oge, %37, %38 : vector<32x32xf32>
    %cst_20 = arith.constant 1.000000e+00 : f32
    %cst_21 = arith.constant -1.000000e+00 : f32
    %40 = vector.broadcast %cst_20 : f32 to vector<32x32xf32>
    %41 = vector.broadcast %cst_21 : f32 to vector<32x32xf32>
    %42 = arith.select %39, %40, %41 : vector<32x32xi1>, vector<32x32xf32>
    %43 = math.absf %37 : vector<32x32xf32>
    %cst_22 = arith.constant 0.327591091 : f32
    %44 = vector.broadcast %cst_22 : f32 to vector<32x32xf32>
    %45 = arith.mulf %44, %43 : vector<32x32xf32>
    %cst_23 = arith.constant 1.000000e+00 : f32
    %46 = vector.broadcast %cst_23 : f32 to vector<32x32xf32>
    %47 = arith.addf %46, %45 : vector<32x32xf32>
    %cst_24 = arith.constant 1.000000e+00 : f32
    %48 = vector.broadcast %cst_24 : f32 to vector<32x32xf32>
    %49 = arith.divf %48, %47 : vector<32x32xf32>
    %cst_25 = arith.constant 1.06140542 : f32
    %50 = vector.broadcast %cst_25 : f32 to vector<32x32xf32>
    %51 = arith.mulf %50, %49 : vector<32x32xf32>
    %cst_26 = arith.constant -1.45315206 : f32
    %52 = vector.broadcast %cst_26 : f32 to vector<32x32xf32>
    %53 = arith.addf %51, %52 : vector<32x32xf32>
    %54 = arith.mulf %53, %49 : vector<32x32xf32>
    %cst_27 = arith.constant 1.42141378 : f32
    %55 = vector.broadcast %cst_27 : f32 to vector<32x32xf32>
    %56 = arith.addf %54, %55 : vector<32x32xf32>
    %57 = arith.mulf %56, %49 : vector<32x32xf32>
    %cst_28 = arith.constant -0.284496725 : f32
    %58 = vector.broadcast %cst_28 : f32 to vector<32x32xf32>
    %59 = arith.addf %57, %58 : vector<32x32xf32>
    %60 = arith.mulf %59, %49 : vector<32x32xf32>
    %cst_29 = arith.constant 0.254829586 : f32
    %61 = vector.broadcast %cst_29 : f32 to vector<32x32xf32>
    %62 = arith.addf %60, %61 : vector<32x32xf32>
    %63 = arith.mulf %62, %49 : vector<32x32xf32>
    %cst_30 = arith.constant 0.000000e+00 : f32
    %64 = vector.broadcast %cst_30 : f32 to vector<32x32xf32>
    %65 = arith.subf %64, %43 : vector<32x32xf32>
    %66 = arith.mulf %65, %43 : vector<32x32xf32>
    %67 = math.exp %66 : vector<32x32xf32>
    %68 = arith.mulf %63, %67 : vector<32x32xf32>
    %cst_31 = arith.constant 1.000000e+00 : f32
    %69 = vector.broadcast %cst_31 : f32 to vector<32x32xf32>
    %70 = arith.subf %69, %68 : vector<32x32xf32>
    %71 = arith.mulf %42, %70 : vector<32x32xf32>
    %cst_32 = arith.constant 1.000000e+00 : f32
    %72 = vector.broadcast %cst_32 : f32 to vector<32x32xf32>
    %73 = arith.addf %72, %71 : vector<32x32xf32>
    %74 = arith.mulf %35, %73 : vector<32x32xf32>
    %75 = arith.truncf %74 : vector<32x32xf32> to vector<32x32xbf16>
    %c0_33 = arith.constant 0 : index
    %c0_34 = arith.constant 0 : index
    %c0_35 = arith.constant 0 : index
    %76 = vector.load %arg6[%c0_33, %c0_34, %c0_35] : memref<2x32x32xbf16, #tpu.memory_space<vmem>>, vector<1x32x32xbf16>
    %77 = vector.shape_cast %76 : vector<1x32x32xbf16> to vector<32x32xbf16>
    %cst_36 = arith.constant dense<0.000000e+00> : vector<32x32xf32>
    %78 = tpu.matmul %75, %77, %cst_36 {dimension_numbers = #tpu.dot_dimension_numbers<[1], [0], [0], [1], [0, 0, 1, 1], [], []>} : vector<32x32xbf16>, vector<32x32xbf16>, vector<32x32xf32> -> vector<32x32xf32>
    %c0_37 = arith.constant 0 : index
    %c0_38 = arith.constant 0 : index
    %c0_39 = arith.constant 0 : index
    %79 = vector.load %arg7[%c0_37, %c0_38, %c0_39] : memref<2x1x32xf32, #tpu.memory_space<vmem>>, vector<1x1x32xf32>
    %80 = vector.shape_cast %79 : vector<1x1x32xf32> to vector<1x32xf32>
    %81 = vector.broadcast %80 : vector<1x32xf32> to vector<32x32xf32>
    %82 = arith.addf %78, %81 : vector<32x32xf32>
    %c0_40 = arith.constant 0 : index
    %c0_41 = arith.constant 0 : index
    %c0_42 = arith.constant 0 : index
    %83 = vector.load %arg8[%c0_40, %c0_41, %c0_42] : memref<2x1x32xf32, #tpu.memory_space<vmem>>, vector<1x1x32xf32>
    %84 = vector.shape_cast %83 : vector<1x1x32xf32> to vector<1x32xf32>
    %c0_43 = arith.constant 0 : index
    %c0_44 = arith.constant 0 : index
    %c0_45 = arith.constant 0 : index
    %85 = vector.load %arg9[%c0_43, %c0_44, %c0_45] : memref<2x1x32xf32, #tpu.memory_space<vmem>>, vector<1x1x32xf32>
    %86 = vector.shape_cast %85 : vector<1x1x32xf32> to vector<1x32xf32>
    %cst_46 = arith.constant dense<0.000000e+00> : vector<32xf32>
    %87 = vector.multi_reduction <add>, %82, %cst_46 [1] : vector<32x32xf32> to vector<32xf32>
    %88 = vector.shape_cast %87 : vector<32xf32> to vector<32x1xf32>
    %cst_47 = arith.constant 3.200000e+01 : f32
    %89 = vector.broadcast %cst_47 : f32 to vector<32x1xf32>
    %90 = arith.divf %88, %89 : vector<32x1xf32>
    %91 = vector.broadcast %90 : vector<32x1xf32> to vector<32x32xf32>
    %92 = arith.subf %82, %91 : vector<32x32xf32>
    %93 = arith.mulf %92, %92 : vector<32x32xf32>
    %cst_48 = arith.constant dense<0.000000e+00> : vector<32xf32>
    %94 = vector.multi_reduction <add>, %93, %cst_48 [1] : vector<32x32xf32> to vector<32xf32>
    %95 = vector.shape_cast %94 : vector<32xf32> to vector<32x1xf32>
    %cst_49 = arith.constant 3.200000e+01 : f32
    %96 = vector.broadcast %cst_49 : f32 to vector<32x1xf32>
    %97 = arith.divf %95, %96 : vector<32x1xf32>
    %98 = vector.broadcast %90 : vector<32x1xf32> to vector<32x32xf32>
    %99 = arith.subf %82, %98 : vector<32x32xf32>
    %cst_50 = arith.constant 9.99999974E-6 : f32
    %100 = vector.broadcast %cst_50 : f32 to vector<32x1xf32>
    %101 = arith.addf %97, %100 : vector<32x1xf32>
    %102 = math.rsqrt %101 : vector<32x1xf32>
    %103 = vector.broadcast %102 : vector<32x1xf32> to vector<32x32xf32>
    %104 = arith.mulf %99, %103 : vector<32x32xf32>
    %105 = vector.broadcast %84 : vector<1x32xf32> to vector<32x32xf32>
    %106 = arith.mulf %104, %105 : vector<32x32xf32>
    %107 = vector.broadcast %86 : vector<1x32xf32> to vector<32x32xf32>
    %108 = arith.addf %106, %107 : vector<32x32xf32>
    %cst_51 = arith.constant 5.000000e-01 : f32
    %109 = vector.broadcast %cst_51 : f32 to vector<32x32xf32>
    %110 = arith.mulf %109, %108 : vector<32x32xf32>
    %cst_52 = arith.constant 0.707106769 : f32
    %111 = vector.broadcast %cst_52 : f32 to vector<32x32xf32>
    %112 = arith.mulf %108, %111 : vector<32x32xf32>
    %cst_53 = arith.constant 0.000000e+00 : f32
    %113 = vector.broadcast %cst_53 : f32 to vector<32x32xf32>
    %114 = arith.cmpf oge, %112, %113 : vector<32x32xf32>
    %cst_54 = arith.constant 1.000000e+00 : f32
    %cst_55 = arith.constant -1.000000e+00 : f32
    %115 = vector.broadcast %cst_54 : f32 to vector<32x32xf32>
    %116 = vector.broadcast %cst_55 : f32 to vector<32x32xf32>
    %117 = arith.select %114, %115, %116 : vector<32x32xi1>, vector<32x32xf32>
    %118 = math.absf %112 : vector<32x32xf32>
    %cst_56 = arith.constant 0.327591091 : f32
    %119 = vector.broadcast %cst_56 : f32 to vector<32x32xf32>
    %120 = arith.mulf %119, %118 : vector<32x32xf32>
    %cst_57 = arith.constant 1.000000e+00 : f32
    %121 = vector.broadcast %cst_57 : f32 to vector<32x32xf32>
    %122 = arith.addf %121, %120 : vector<32x32xf32>
    %cst_58 = arith.constant 1.000000e+00 : f32
    %123 = vector.broadcast %cst_58 : f32 to vector<32x32xf32>
    %124 = arith.divf %123, %122 : vector<32x32xf32>
    %cst_59 = arith.constant 1.06140542 : f32
    %125 = vector.broadcast %cst_59 : f32 to vector<32x32xf32>
    %126 = arith.mulf %125, %124 : vector<32x32xf32>
    %cst_60 = arith.constant -1.45315206 : f32
    %127 = vector.broadcast %cst_60 : f32 to vector<32x32xf32>
    %128 = arith.addf %126, %127 : vector<32x32xf32>
    %129 = arith.mulf %128, %124 : vector<32x32xf32>
    %cst_61 = arith.constant 1.42141378 : f32
    %130 = vector.broadcast %cst_61 : f32 to vector<32x32xf32>
    %131 = arith.addf %129, %130 : vector<32x32xf32>
    %132 = arith.mulf %131, %124 : vector<32x32xf32>
    %cst_62 = arith.constant -0.284496725 : f32
    %133 = vector.broadcast %cst_62 : f32 to vector<32x32xf32>
    %134 = arith.addf %132, %133 : vector<32x32xf32>
    %135 = arith.mulf %134, %124 : vector<32x32xf32>
    %cst_63 = arith.constant 0.254829586 : f32
    %136 = vector.broadcast %cst_63 : f32 to vector<32x32xf32>
    %137 = arith.addf %135, %136 : vector<32x32xf32>
    %138 = arith.mulf %137, %124 : vector<32x32xf32>
    %cst_64 = arith.constant 0.000000e+00 : f32
    %139 = vector.broadcast %cst_64 : f32 to vector<32x32xf32>
    %140 = arith.subf %139, %118 : vector<32x32xf32>
    %141 = arith.mulf %140, %118 : vector<32x32xf32>
    %142 = math.exp %141 : vector<32x32xf32>
    %143 = arith.mulf %138, %142 : vector<32x32xf32>
    %cst_65 = arith.constant 1.000000e+00 : f32
    %144 = vector.broadcast %cst_65 : f32 to vector<32x32xf32>
    %145 = arith.subf %144, %143 : vector<32x32xf32>
    %146 = arith.mulf %117, %145 : vector<32x32xf32>
    %cst_66 = arith.constant 1.000000e+00 : f32
    %147 = vector.broadcast %cst_66 : f32 to vector<32x32xf32>
    %148 = arith.addf %147, %146 : vector<32x32xf32>
    %149 = arith.mulf %110, %148 : vector<32x32xf32>
    %cst_67 = arith.constant 0.000000e+00 : f32
    %150 = vector.broadcast %cst_67 : f32 to vector<2x16x160xf32>
    %c0_68 = arith.constant 0 : index
    %c0_69 = arith.constant 0 : index
    %c0_70 = arith.constant 0 : index
    %151 = vector.load %arg21[%c0_68, %c0_69, %c0_70] : memref<2x16x160xf32, #tpu.memory_space<vmem>>, vector<2x16x160xf32>
    tpu.vector_store %arg21[%c0_68, %c0_69, %c0_70], %150 {strides = array<i32>} : memref<2x16x160xf32, #tpu.memory_space<vmem>>, vector<2x16x160xf32>,
    %152 = vector.shape_cast %149 : vector<32x32xf32> to vector<2x16x32xf32>
    %153 = vector.extract_strided_slice %152 {offsets = [0, 0, 0], sizes = [2, 14, 32], strides = [1, 1, 1]} : vector<2x16x32xf32> to vector<2x14x32xf32>
    %c0_71 = arith.constant 0 : index
    %c2 = arith.constant 2 : index
    %c0_72 = arith.constant 0 : index
    %154 = vector.load %arg21[%c0_71, %c2, %c0_72] : memref<2x16x160xf32, #tpu.memory_space<vmem>>, vector<2x14x32xf32>
    tpu.vector_store %arg21[%c0_71, %c2, %c0_72], %153 {strides = array<i32>} : memref<2x16x160xf32, #tpu.memory_space<vmem>>, vector<2x14x32xf32>,
    %155 = vector.extract_strided_slice %152 {offsets = [0, 0, 0], sizes = [2, 15, 32], strides = [1, 1, 1]} : vector<2x16x32xf32> to vector<2x15x32xf32>
    %c0_73 = arith.constant 0 : index
    %c1 = arith.constant 1 : index
    %c32 = arith.constant 32 : index
    %156 = vector.load %arg21[%c0_73, %c1, %c32] : memref<2x16x160xf32, #tpu.memory_space<vmem>>, vector<2x15x32xf32>
    tpu.vector_store %arg21[%c0_73, %c1, %c32], %155 {strides = array<i32>} : memref<2x16x160xf32, #tpu.memory_space<vmem>>, vector<2x15x32xf32>,
    %c0_74 = arith.constant 0 : index
    %c0_75 = arith.constant 0 : index
    %c64 = arith.constant 64 : index
    %157 = vector.load %arg21[%c0_74, %c0_75, %c64] : memref<2x16x160xf32, #tpu.memory_space<vmem>>, vector<2x16x32xf32>
    tpu.vector_store %arg21[%c0_74, %c0_75, %c64], %152 {strides = array<i32>} : memref<2x16x160xf32, #tpu.memory_space<vmem>>, vector<2x16x32xf32>,
    %158 = vector.extract_strided_slice %152 {offsets = [0, 1, 0], sizes = [2, 15, 32], strides = [1, 1, 1]} : vector<2x16x32xf32> to vector<2x15x32xf32>
    %c0_76 = arith.constant 0 : index
    %c0_77 = arith.constant 0 : index
    %c96 = arith.constant 96 : index
    %159 = vector.load %arg21[%c0_76, %c0_77, %c96] : memref<2x16x160xf32, #tpu.memory_space<vmem>>, vector<2x15x32xf32>
    tpu.vector_store %arg21[%c0_76, %c0_77, %c96], %158 {strides = array<i32>} : memref<2x16x160xf32, #tpu.memory_space<vmem>>, vector<2x15x32xf32>,
    %160 = vector.extract_strided_slice %152 {offsets = [0, 2, 0], sizes = [2, 14, 32], strides = [1, 1, 1]} : vector<2x16x32xf32> to vector<2x14x32xf32>
    %c0_78 = arith.constant 0 : index
    %c0_79 = arith.constant 0 : index
    %c128 = arith.constant 128 : index
    %161 = vector.load %arg21[%c0_78, %c0_79, %c128] : memref<2x16x160xf32, #tpu.memory_space<vmem>>, vector<2x14x32xf32>
    tpu.vector_store %arg21[%c0_78, %c0_79, %c128], %160 {strides = array<i32>} : memref<2x16x160xf32, #tpu.memory_space<vmem>>, vector<2x14x32xf32>,
    %c0_80 = arith.constant 0 : index
    %c0_81 = arith.constant 0 : index
    %c0_82 = arith.constant 0 : index
    %162 = vector.load %arg21[%c0_80, %c0_81, %c0_82] : memref<2x16x160xf32, #tpu.memory_space<vmem>>, vector<2x16x160xf32>
    %163 = vector.shape_cast %162 : vector<2x16x160xf32> to vector<32x160xf32>
    %164 = arith.truncf %163 : vector<32x160xf32> to vector<32x160xbf16>
    %c0_83 = arith.constant 0 : index
    %c0_84 = arith.constant 0 : index
    %c0_85 = arith.constant 0 : index
    %165 = vector.load %arg10[%c0_83, %c0_84, %c0_85] : memref<2x160x32xbf16, #tpu.memory_space<vmem>>, vector<1x160x32xbf16>
    %166 = vector.shape_cast %165 : vector<1x160x32xbf16> to vector<160x32xbf16>
    %cst_86 = arith.constant dense<0.000000e+00> : vector<32x32xf32>
    %167 = tpu.matmul %164, %166, %cst_86 {dimension_numbers = #tpu.dot_dimension_numbers<[1], [0], [0], [1], [0, 0, 1, 1], [], []>} : vector<32x160xbf16>, vector<160x32xbf16>, vector<32x32xf32> -> vector<32x32xf32>
    %c0_87 = arith.constant 0 : index
    %c0_88 = arith.constant 0 : index
    %c0_89 = arith.constant 0 : index
    %168 = vector.load %arg11[%c0_87, %c0_88, %c0_89] : memref<2x1x32xf32, #tpu.memory_space<vmem>>, vector<1x1x32xf32>
    %169 = vector.shape_cast %168 : vector<1x1x32xf32> to vector<1x32xf32>
    %170 = vector.broadcast %169 : vector<1x32xf32> to vector<32x32xf32>
    %171 = arith.addf %167, %170 : vector<32x32xf32>
    %c0_90 = arith.constant 0 : index
    %c0_91 = arith.constant 0 : index
    %c0_92 = arith.constant 0 : index
    %172 = vector.load %arg12[%c0_90, %c0_91, %c0_92] : memref<2x1x32xf32, #tpu.memory_space<vmem>>, vector<1x1x32xf32>
    %173 = vector.shape_cast %172 : vector<1x1x32xf32> to vector<1x32xf32>
    %c0_93 = arith.constant 0 : index
    %c0_94 = arith.constant 0 : index
    %c0_95 = arith.constant 0 : index
    %174 = vector.load %arg13[%c0_93, %c0_94, %c0_95] : memref<2x1x32xf32, #tpu.memory_space<vmem>>, vector<1x1x32xf32>
    %175 = vector.shape_cast %174 : vector<1x1x32xf32> to vector<1x32xf32>
    %cst_96 = arith.constant dense<0.000000e+00> : vector<32xf32>
    %176 = vector.multi_reduction <add>, %171, %cst_96 [1] : vector<32x32xf32> to vector<32xf32>
    %177 = vector.shape_cast %176 : vector<32xf32> to vector<32x1xf32>
    %cst_97 = arith.constant 3.200000e+01 : f32
    %178 = vector.broadcast %cst_97 : f32 to vector<32x1xf32>
    %179 = arith.divf %177, %178 : vector<32x1xf32>
    %180 = vector.broadcast %179 : vector<32x1xf32> to vector<32x32xf32>
    %181 = arith.subf %171, %180 : vector<32x32xf32>
    %182 = arith.mulf %181, %181 : vector<32x32xf32>
    %cst_98 = arith.constant dense<0.000000e+00> : vector<32xf32>
    %183 = vector.multi_reduction <add>, %182, %cst_98 [1] : vector<32x32xf32> to vector<32xf32>
    %184 = vector.shape_cast %183 : vector<32xf32> to vector<32x1xf32>
    %cst_99 = arith.constant 3.200000e+01 : f32
    %185 = vector.broadcast %cst_99 : f32 to vector<32x1xf32>
    %186 = arith.divf %184, %185 : vector<32x1xf32>
    %187 = vector.broadcast %179 : vector<32x1xf32> to vector<32x32xf32>
    %188 = arith.subf %171, %187 : vector<32x32xf32>
    %cst_100 = arith.constant 9.99999974E-6 : f32
    %189 = vector.broadcast %cst_100 : f32 to vector<32x1xf32>
    %190 = arith.addf %186, %189 : vector<32x1xf32>
    %191 = math.rsqrt %190 : vector<32x1xf32>
    %192 = vector.broadcast %191 : vector<32x1xf32> to vector<32x32xf32>
    %193 = arith.mulf %188, %192 : vector<32x32xf32>
    %194 = vector.broadcast %173 : vector<1x32xf32> to vector<32x32xf32>
    %195 = arith.mulf %193, %194 : vector<32x32xf32>
    %196 = vector.broadcast %175 : vector<1x32xf32> to vector<32x32xf32>
    %197 = arith.addf %195, %196 : vector<32x32xf32>
    %cst_101 = arith.constant 5.000000e-01 : f32
    %198 = vector.broadcast %cst_101 : f32 to vector<32x32xf32>
    %199 = arith.mulf %198, %197 : vector<32x32xf32>
    %cst_102 = arith.constant 0.707106769 : f32
    %200 = vector.broadcast %cst_102 : f32 to vector<32x32xf32>
    %201 = arith.mulf %197, %200 : vector<32x32xf32>
    %cst_103 = arith.constant 0.000000e+00 : f32
    %202 = vector.broadcast %cst_103 : f32 to vector<32x32xf32>
    %203 = arith.cmpf oge, %201, %202 : vector<32x32xf32>
    %cst_104 = arith.constant 1.000000e+00 : f32
    %cst_105 = arith.constant -1.000000e+00 : f32
    %204 = vector.broadcast %cst_104 : f32 to vector<32x32xf32>
    %205 = vector.broadcast %cst_105 : f32 to vector<32x32xf32>
    %206 = arith.select %203, %204, %205 : vector<32x32xi1>, vector<32x32xf32>
    %207 = math.absf %201 : vector<32x32xf32>
    %cst_106 = arith.constant 0.327591091 : f32
    %208 = vector.broadcast %cst_106 : f32 to vector<32x32xf32>
    %209 = arith.mulf %208, %207 : vector<32x32xf32>
    %cst_107 = arith.constant 1.000000e+00 : f32
    %210 = vector.broadcast %cst_107 : f32 to vector<32x32xf32>
    %211 = arith.addf %210, %209 : vector<32x32xf32>
    %cst_108 = arith.constant 1.000000e+00 : f32
    %212 = vector.broadcast %cst_108 : f32 to vector<32x32xf32>
    %213 = arith.divf %212, %211 : vector<32x32xf32>
    %cst_109 = arith.constant 1.06140542 : f32
    %214 = vector.broadcast %cst_109 : f32 to vector<32x32xf32>
    %215 = arith.mulf %214, %213 : vector<32x32xf32>
    %cst_110 = arith.constant -1.45315206 : f32
    %216 = vector.broadcast %cst_110 : f32 to vector<32x32xf32>
    %217 = arith.addf %215, %216 : vector<32x32xf32>
    %218 = arith.mulf %217, %213 : vector<32x32xf32>
    %cst_111 = arith.constant 1.42141378 : f32
    %219 = vector.broadcast %cst_111 : f32 to vector<32x32xf32>
    %220 = arith.addf %218, %219 : vector<32x32xf32>
    %221 = arith.mulf %220, %213 : vector<32x32xf32>
    %cst_112 = arith.constant -0.284496725 : f32
    %222 = vector.broadcast %cst_112 : f32 to vector<32x32xf32>
    %223 = arith.addf %221, %222 : vector<32x32xf32>
    %224 = arith.mulf %223, %213 : vector<32x32xf32>
    %cst_113 = arith.constant 0.254829586 : f32
    %225 = vector.broadcast %cst_113 : f32 to vector<32x32xf32>
    %226 = arith.addf %224, %225 : vector<32x32xf32>
    %227 = arith.mulf %226, %213 : vector<32x32xf32>
    %cst_114 = arith.constant 0.000000e+00 : f32
    %228 = vector.broadcast %cst_114 : f32 to vector<32x32xf32>
    %229 = arith.subf %228, %207 : vector<32x32xf32>
    %230 = arith.mulf %229, %207 : vector<32x32xf32>
    %231 = math.exp %230 : vector<32x32xf32>
    %232 = arith.mulf %227, %231 : vector<32x32xf32>
    %cst_115 = arith.constant 1.000000e+00 : f32
    %233 = vector.broadcast %cst_115 : f32 to vector<32x32xf32>
    %234 = arith.subf %233, %232 : vector<32x32xf32>
    %235 = arith.mulf %206, %234 : vector<32x32xf32>
    %cst_116 = arith.constant 1.000000e+00 : f32
    %236 = vector.broadcast %cst_116 : f32 to vector<32x32xf32>
    %237 = arith.addf %236, %235 : vector<32x32xf32>
    %238 = arith.mulf %199, %237 : vector<32x32xf32>
    %239 = arith.truncf %238 : vector<32x32xf32> to vector<32x32xbf16>
    %c0_117 = arith.constant 0 : index
    %c0_118 = arith.constant 0 : index
    %c0_119 = arith.constant 0 : index
    %240 = vector.load %arg14[%c0_117, %c0_118, %c0_119] : memref<2x32x32xbf16, #tpu.memory_space<vmem>>, vector<1x32x32xbf16>
    %241 = vector.shape_cast %240 : vector<1x32x32xbf16> to vector<32x32xbf16>
    %cst_120 = arith.constant dense<0.000000e+00> : vector<32x32xf32>
    %242 = tpu.matmul %239, %241, %cst_120 {dimension_numbers = #tpu.dot_dimension_numbers<[1], [0], [0], [1], [0, 0, 1, 1], [], []>} : vector<32x32xbf16>, vector<32x32xbf16>, vector<32x32xf32> -> vector<32x32xf32>
    %c0_121 = arith.constant 0 : index
    %c0_122 = arith.constant 0 : index
    %c0_123 = arith.constant 0 : index
    %243 = vector.load %arg15[%c0_121, %c0_122, %c0_123] : memref<2x1x32xf32, #tpu.memory_space<vmem>>, vector<1x1x32xf32>
    %244 = vector.shape_cast %243 : vector<1x1x32xf32> to vector<1x32xf32>
    %245 = vector.broadcast %244 : vector<1x32xf32> to vector<32x32xf32>
    %246 = arith.addf %242, %245 : vector<32x32xf32>
    %247 = arith.addf %7, %246 : vector<32x32xf32>
    %c1_124 = arith.constant 1 : index
    %c0_125 = arith.constant 0 : index
    %c0_126 = arith.constant 0 : index
    %248 = vector.load %arg4[%c1_124, %c0_125, %c0_126] : memref<2x1x32xf32, #tpu.memory_space<vmem>>, vector<1x1x32xf32>
    %249 = vector.shape_cast %248 : vector<1x1x32xf32> to vector<1x32xf32>
    %c1_127 = arith.constant 1 : index
    %c0_128 = arith.constant 0 : index
    %c0_129 = arith.constant 0 : index
    %250 = vector.load %arg5[%c1_127, %c0_128, %c0_129] : memref<2x1x32xf32, #tpu.memory_space<vmem>>, vector<1x1x32xf32>
    %251 = vector.shape_cast %250 : vector<1x1x32xf32> to vector<1x32xf32>
    %cst_130 = arith.constant dense<0.000000e+00> : vector<32xf32>
    %252 = vector.multi_reduction <add>, %247, %cst_130 [1] : vector<32x32xf32> to vector<32xf32>
    %253 = vector.shape_cast %252 : vector<32xf32> to vector<32x1xf32>
    %cst_131 = arith.constant 3.200000e+01 : f32
    %254 = vector.broadcast %cst_131 : f32 to vector<32x1xf32>
    %255 = arith.divf %253, %254 : vector<32x1xf32>
    %256 = vector.broadcast %255 : vector<32x1xf32> to vector<32x32xf32>
    %257 = arith.subf %247, %256 : vector<32x32xf32>
    %258 = arith.mulf %257, %257 : vector<32x32xf32>
    %cst_132 = arith.constant dense<0.000000e+00> : vector<32xf32>
    %259 = vector.multi_reduction <add>, %258, %cst_132 [1] : vector<32x32xf32> to vector<32xf32>
    %260 = vector.shape_cast %259 : vector<32xf32> to vector<32x1xf32>
    %cst_133 = arith.constant 3.200000e+01 : f32
    %261 = vector.broadcast %cst_133 : f32 to vector<32x1xf32>
    %262 = arith.divf %260, %261 : vector<32x1xf32>
    %263 = vector.broadcast %255 : vector<32x1xf32> to vector<32x32xf32>
    %264 = arith.subf %247, %263 : vector<32x32xf32>
    %cst_134 = arith.constant 9.99999974E-6 : f32
    %265 = vector.broadcast %cst_134 : f32 to vector<32x1xf32>
    %266 = arith.addf %262, %265 : vector<32x1xf32>
    %267 = math.rsqrt %266 : vector<32x1xf32>
    %268 = vector.broadcast %267 : vector<32x1xf32> to vector<32x32xf32>
    %269 = arith.mulf %264, %268 : vector<32x32xf32>
    %270 = vector.broadcast %249 : vector<1x32xf32> to vector<32x32xf32>
    %271 = arith.mulf %269, %270 : vector<32x32xf32>
    %272 = vector.broadcast %251 : vector<1x32xf32> to vector<32x32xf32>
    %273 = arith.addf %271, %272 : vector<32x32xf32>
    %cst_135 = arith.constant 5.000000e-01 : f32
    %274 = vector.broadcast %cst_135 : f32 to vector<32x32xf32>
    %275 = arith.mulf %274, %273 : vector<32x32xf32>
    %cst_136 = arith.constant 0.707106769 : f32
    %276 = vector.broadcast %cst_136 : f32 to vector<32x32xf32>
    %277 = arith.mulf %273, %276 : vector<32x32xf32>
    %cst_137 = arith.constant 0.000000e+00 : f32
    %278 = vector.broadcast %cst_137 : f32 to vector<32x32xf32>
    %279 = arith.cmpf oge, %277, %278 : vector<32x32xf32>
    %cst_138 = arith.constant 1.000000e+00 : f32
    %cst_139 = arith.constant -1.000000e+00 : f32
    %280 = vector.broadcast %cst_138 : f32 to vector<32x32xf32>
    %281 = vector.broadcast %cst_139 : f32 to vector<32x32xf32>
    %282 = arith.select %279, %280, %281 : vector<32x32xi1>, vector<32x32xf32>
    %283 = math.absf %277 : vector<32x32xf32>
    %cst_140 = arith.constant 0.327591091 : f32
    %284 = vector.broadcast %cst_140 : f32 to vector<32x32xf32>
    %285 = arith.mulf %284, %283 : vector<32x32xf32>
    %cst_141 = arith.constant 1.000000e+00 : f32
    %286 = vector.broadcast %cst_141 : f32 to vector<32x32xf32>
    %287 = arith.addf %286, %285 : vector<32x32xf32>
    %cst_142 = arith.constant 1.000000e+00 : f32
    %288 = vector.broadcast %cst_142 : f32 to vector<32x32xf32>
    %289 = arith.divf %288, %287 : vector<32x32xf32>
    %cst_143 = arith.constant 1.06140542 : f32
    %290 = vector.broadcast %cst_143 : f32 to vector<32x32xf32>
    %291 = arith.mulf %290, %289 : vector<32x32xf32>
    %cst_144 = arith.constant -1.45315206 : f32
    %292 = vector.broadcast %cst_144 : f32 to vector<32x32xf32>
    %293 = arith.addf %291, %292 : vector<32x32xf32>
    %294 = arith.mulf %293, %289 : vector<32x32xf32>
    %cst_145 = arith.constant 1.42141378 : f32
    %295 = vector.broadcast %cst_145 : f32 to vector<32x32xf32>
    %296 = arith.addf %294, %295 : vector<32x32xf32>
    %297 = arith.mulf %296, %289 : vector<32x32xf32>
    %cst_146 = arith.constant -0.284496725 : f32
    %298 = vector.broadcast %cst_146 : f32 to vector<32x32xf32>
    %299 = arith.addf %297, %298 : vector<32x32xf32>
    %300 = arith.mulf %299, %289 : vector<32x32xf32>
    %cst_147 = arith.constant 0.254829586 : f32
    %301 = vector.broadcast %cst_147 : f32 to vector<32x32xf32>
    %302 = arith.addf %300, %301 : vector<32x32xf32>
    %303 = arith.mulf %302, %289 : vector<32x32xf32>
    %cst_148 = arith.constant 0.000000e+00 : f32
    %304 = vector.broadcast %cst_148 : f32 to vector<32x32xf32>
    %305 = arith.subf %304, %283 : vector<32x32xf32>
    %306 = arith.mulf %305, %283 : vector<32x32xf32>
    %307 = math.exp %306 : vector<32x32xf32>
    %308 = arith.mulf %303, %307 : vector<32x32xf32>
    %cst_149 = arith.constant 1.000000e+00 : f32
    %309 = vector.broadcast %cst_149 : f32 to vector<32x32xf32>
    %310 = arith.subf %309, %308 : vector<32x32xf32>
    %311 = arith.mulf %282, %310 : vector<32x32xf32>
    %cst_150 = arith.constant 1.000000e+00 : f32
    %312 = vector.broadcast %cst_150 : f32 to vector<32x32xf32>
    %313 = arith.addf %312, %311 : vector<32x32xf32>
    %314 = arith.mulf %275, %313 : vector<32x32xf32>
    %315 = arith.truncf %314 : vector<32x32xf32> to vector<32x32xbf16>
    %c1_151 = arith.constant 1 : index
    %c0_152 = arith.constant 0 : index
    %c0_153 = arith.constant 0 : index
    %316 = vector.load %arg6[%c1_151, %c0_152, %c0_153] : memref<2x32x32xbf16, #tpu.memory_space<vmem>>, vector<1x32x32xbf16>
    %317 = vector.shape_cast %316 : vector<1x32x32xbf16> to vector<32x32xbf16>
    %cst_154 = arith.constant dense<0.000000e+00> : vector<32x32xf32>
    %318 = tpu.matmul %315, %317, %cst_154 {dimension_numbers = #tpu.dot_dimension_numbers<[1], [0], [0], [1], [0, 0, 1, 1], [], []>} : vector<32x32xbf16>, vector<32x32xbf16>, vector<32x32xf32> -> vector<32x32xf32>
    %c1_155 = arith.constant 1 : index
    %c0_156 = arith.constant 0 : index
    %c0_157 = arith.constant 0 : index
    %319 = vector.load %arg7[%c1_155, %c0_156, %c0_157] : memref<2x1x32xf32, #tpu.memory_space<vmem>>, vector<1x1x32xf32>
    %320 = vector.shape_cast %319 : vector<1x1x32xf32> to vector<1x32xf32>
    %321 = vector.broadcast %320 : vector<1x32xf32> to vector<32x32xf32>
    %322 = arith.addf %318, %321 : vector<32x32xf32>
    %c1_158 = arith.constant 1 : index
    %c0_159 = arith.constant 0 : index
    %c0_160 = arith.constant 0 : index
    %323 = vector.load %arg8[%c1_158, %c0_159, %c0_160] : memref<2x1x32xf32, #tpu.memory_space<vmem>>, vector<1x1x32xf32>
    %324 = vector.shape_cast %323 : vector<1x1x32xf32> to vector<1x32xf32>
    %c1_161 = arith.constant 1 : index
    %c0_162 = arith.constant 0 : index
    %c0_163 = arith.constant 0 : index
    %325 = vector.load %arg9[%c1_161, %c0_162, %c0_163] : memref<2x1x32xf32, #tpu.memory_space<vmem>>, vector<1x1x32xf32>
    %326 = vector.shape_cast %325 : vector<1x1x32xf32> to vector<1x32xf32>
    %cst_164 = arith.constant dense<0.000000e+00> : vector<32xf32>
    %327 = vector.multi_reduction <add>, %322, %cst_164 [1] : vector<32x32xf32> to vector<32xf32>
    %328 = vector.shape_cast %327 : vector<32xf32> to vector<32x1xf32>
    %cst_165 = arith.constant 3.200000e+01 : f32
    %329 = vector.broadcast %cst_165 : f32 to vector<32x1xf32>
    %330 = arith.divf %328, %329 : vector<32x1xf32>
    %331 = vector.broadcast %330 : vector<32x1xf32> to vector<32x32xf32>
    %332 = arith.subf %322, %331 : vector<32x32xf32>
    %333 = arith.mulf %332, %332 : vector<32x32xf32>
    %cst_166 = arith.constant dense<0.000000e+00> : vector<32xf32>
    %334 = vector.multi_reduction <add>, %333, %cst_166 [1] : vector<32x32xf32> to vector<32xf32>
    %335 = vector.shape_cast %334 : vector<32xf32> to vector<32x1xf32>
    %cst_167 = arith.constant 3.200000e+01 : f32
    %336 = vector.broadcast %cst_167 : f32 to vector<32x1xf32>
    %337 = arith.divf %335, %336 : vector<32x1xf32>
    %338 = vector.broadcast %330 : vector<32x1xf32> to vector<32x32xf32>
    %339 = arith.subf %322, %338 : vector<32x32xf32>
    %cst_168 = arith.constant 9.99999974E-6 : f32
    %340 = vector.broadcast %cst_168 : f32 to vector<32x1xf32>
    %341 = arith.addf %337, %340 : vector<32x1xf32>
    %342 = math.rsqrt %341 : vector<32x1xf32>
    %343 = vector.broadcast %342 : vector<32x1xf32> to vector<32x32xf32>
    %344 = arith.mulf %339, %343 : vector<32x32xf32>
    %345 = vector.broadcast %324 : vector<1x32xf32> to vector<32x32xf32>
    %346 = arith.mulf %344, %345 : vector<32x32xf32>
    %347 = vector.broadcast %326 : vector<1x32xf32> to vector<32x32xf32>
    %348 = arith.addf %346, %347 : vector<32x32xf32>
    %cst_169 = arith.constant 5.000000e-01 : f32
    %349 = vector.broadcast %cst_169 : f32 to vector<32x32xf32>
    %350 = arith.mulf %349, %348 : vector<32x32xf32>
    %cst_170 = arith.constant 0.707106769 : f32
    %351 = vector.broadcast %cst_170 : f32 to vector<32x32xf32>
    %352 = arith.mulf %348, %351 : vector<32x32xf32>
    %cst_171 = arith.constant 0.000000e+00 : f32
    %353 = vector.broadcast %cst_171 : f32 to vector<32x32xf32>
    %354 = arith.cmpf oge, %352, %353 : vector<32x32xf32>
    %cst_172 = arith.constant 1.000000e+00 : f32
    %cst_173 = arith.constant -1.000000e+00 : f32
    %355 = vector.broadcast %cst_172 : f32 to vector<32x32xf32>
    %356 = vector.broadcast %cst_173 : f32 to vector<32x32xf32>
    %357 = arith.select %354, %355, %356 : vector<32x32xi1>, vector<32x32xf32>
    %358 = math.absf %352 : vector<32x32xf32>
    %cst_174 = arith.constant 0.327591091 : f32
    %359 = vector.broadcast %cst_174 : f32 to vector<32x32xf32>
    %360 = arith.mulf %359, %358 : vector<32x32xf32>
    %cst_175 = arith.constant 1.000000e+00 : f32
    %361 = vector.broadcast %cst_175 : f32 to vector<32x32xf32>
    %362 = arith.addf %361, %360 : vector<32x32xf32>
    %cst_176 = arith.constant 1.000000e+00 : f32
    %363 = vector.broadcast %cst_176 : f32 to vector<32x32xf32>
    %364 = arith.divf %363, %362 : vector<32x32xf32>
    %cst_177 = arith.constant 1.06140542 : f32
    %365 = vector.broadcast %cst_177 : f32 to vector<32x32xf32>
    %366 = arith.mulf %365, %364 : vector<32x32xf32>
    %cst_178 = arith.constant -1.45315206 : f32
    %367 = vector.broadcast %cst_178 : f32 to vector<32x32xf32>
    %368 = arith.addf %366, %367 : vector<32x32xf32>
    %369 = arith.mulf %368, %364 : vector<32x32xf32>
    %cst_179 = arith.constant 1.42141378 : f32
    %370 = vector.broadcast %cst_179 : f32 to vector<32x32xf32>
    %371 = arith.addf %369, %370 : vector<32x32xf32>
    %372 = arith.mulf %371, %364 : vector<32x32xf32>
    %cst_180 = arith.constant -0.284496725 : f32
    %373 = vector.broadcast %cst_180 : f32 to vector<32x32xf32>
    %374 = arith.addf %372, %373 : vector<32x32xf32>
    %375 = arith.mulf %374, %364 : vector<32x32xf32>
    %cst_181 = arith.constant 0.254829586 : f32
    %376 = vector.broadcast %cst_181 : f32 to vector<32x32xf32>
    %377 = arith.addf %375, %376 : vector<32x32xf32>
    %378 = arith.mulf %377, %364 : vector<32x32xf32>
    %cst_182 = arith.constant 0.000000e+00 : f32
    %379 = vector.broadcast %cst_182 : f32 to vector<32x32xf32>
    %380 = arith.subf %379, %358 : vector<32x32xf32>
    %381 = arith.mulf %380, %358 : vector<32x32xf32>
    %382 = math.exp %381 : vector<32x32xf32>
    %383 = arith.mulf %378, %382 : vector<32x32xf32>
    %cst_183 = arith.constant 1.000000e+00 : f32
    %384 = vector.broadcast %cst_183 : f32 to vector<32x32xf32>
    %385 = arith.subf %384, %383 : vector<32x32xf32>
    %386 = arith.mulf %357, %385 : vector<32x32xf32>
    %cst_184 = arith.constant 1.000000e+00 : f32
    %387 = vector.broadcast %cst_184 : f32 to vector<32x32xf32>
    %388 = arith.addf %387, %386 : vector<32x32xf32>
    %389 = arith.mulf %350, %388 : vector<32x32xf32>
    %cst_185 = arith.constant 0.000000e+00 : f32
    %390 = vector.broadcast %cst_185 : f32 to vector<2x16x160xf32>
    %c0_186 = arith.constant 0 : index
    %c0_187 = arith.constant 0 : index
    %c0_188 = arith.constant 0 : index
    %391 = vector.load %arg21[%c0_186, %c0_187, %c0_188] : memref<2x16x160xf32, #tpu.memory_space<vmem>>, vector<2x16x160xf32>
    tpu.vector_store %arg21[%c0_186, %c0_187, %c0_188], %390 {strides = array<i32>} : memref<2x16x160xf32, #tpu.memory_space<vmem>>, vector<2x16x160xf32>,
    %392 = vector.shape_cast %389 : vector<32x32xf32> to vector<2x16x32xf32>
    %393 = vector.extract_strided_slice %392 {offsets = [0, 0, 0], sizes = [2, 12, 32], strides = [1, 1, 1]} : vector<2x16x32xf32> to vector<2x12x32xf32>
    %c0_189 = arith.constant 0 : index
    %c4 = arith.constant 4 : index
    %c0_190 = arith.constant 0 : index
    %394 = vector.load %arg21[%c0_189, %c4, %c0_190] : memref<2x16x160xf32, #tpu.memory_space<vmem>>, vector<2x12x32xf32>
    tpu.vector_store %arg21[%c0_189, %c4, %c0_190], %393 {strides = array<i32>} : memref<2x16x160xf32, #tpu.memory_space<vmem>>, vector<2x12x32xf32>,
    %395 = vector.extract_strided_slice %392 {offsets = [0, 0, 0], sizes = [2, 14, 32], strides = [1, 1, 1]} : vector<2x16x32xf32> to vector<2x14x32xf32>
    %c0_191 = arith.constant 0 : index
    %c2_192 = arith.constant 2 : index
    %c32_193 = arith.constant 32 : index
    %396 = vector.load %arg21[%c0_191, %c2_192, %c32_193] : memref<2x16x160xf32, #tpu.memory_space<vmem>>, vector<2x14x32xf32>
    tpu.vector_store %arg21[%c0_191, %c2_192, %c32_193], %395 {strides = array<i32>} : memref<2x16x160xf32, #tpu.memory_space<vmem>>, vector<2x14x32xf32>,
    %c0_194 = arith.constant 0 : index
    %c0_195 = arith.constant 0 : index
    %c64_196 = arith.constant 64 : index
    %397 = vector.load %arg21[%c0_194, %c0_195, %c64_196] : memref<2x16x160xf32, #tpu.memory_space<vmem>>, vector<2x16x32xf32>
    tpu.vector_store %arg21[%c0_194, %c0_195, %c64_196], %392 {strides = array<i32>} : memref<2x16x160xf32, #tpu.memory_space<vmem>>, vector<2x16x32xf32>,
    %398 = vector.extract_strided_slice %392 {offsets = [0, 2, 0], sizes = [2, 14, 32], strides = [1, 1, 1]} : vector<2x16x32xf32> to vector<2x14x32xf32>
    %c0_197 = arith.constant 0 : index
    %c0_198 = arith.constant 0 : index
    %c96_199 = arith.constant 96 : index
    %399 = vector.load %arg21[%c0_197, %c0_198, %c96_199] : memref<2x16x160xf32, #tpu.memory_space<vmem>>, vector<2x14x32xf32>
    tpu.vector_store %arg21[%c0_197, %c0_198, %c96_199], %398 {strides = array<i32>} : memref<2x16x160xf32, #tpu.memory_space<vmem>>, vector<2x14x32xf32>,
    %400 = vector.extract_strided_slice %392 {offsets = [0, 4, 0], sizes = [2, 12, 32], strides = [1, 1, 1]} : vector<2x16x32xf32> to vector<2x12x32xf32>
    %c0_200 = arith.constant 0 : index
    %c0_201 = arith.constant 0 : index
    %c128_202 = arith.constant 128 : index
    %401 = vector.load %arg21[%c0_200, %c0_201, %c128_202] : memref<2x16x160xf32, #tpu.memory_space<vmem>>, vector<2x12x32xf32>
    tpu.vector_store %arg21[%c0_200, %c0_201, %c128_202], %400 {strides = array<i32>} : memref<2x16x160xf32, #tpu.memory_space<vmem>>, vector<2x12x32xf32>,
    %c0_203 = arith.constant 0 : index
    %c0_204 = arith.constant 0 : index
    %c0_205 = arith.constant 0 : index
    %402 = vector.load %arg21[%c0_203, %c0_204, %c0_205] : memref<2x16x160xf32, #tpu.memory_space<vmem>>, vector<2x16x160xf32>
    %403 = vector.shape_cast %402 : vector<2x16x160xf32> to vector<32x160xf32>
    %404 = arith.truncf %403 : vector<32x160xf32> to vector<32x160xbf16>
    %c1_206 = arith.constant 1 : index
    %c0_207 = arith.constant 0 : index
    %c0_208 = arith.constant 0 : index
    %405 = vector.load %arg10[%c1_206, %c0_207, %c0_208] : memref<2x160x32xbf16, #tpu.memory_space<vmem>>, vector<1x160x32xbf16>
    %406 = vector.shape_cast %405 : vector<1x160x32xbf16> to vector<160x32xbf16>
    %cst_209 = arith.constant dense<0.000000e+00> : vector<32x32xf32>
    %407 = tpu.matmul %404, %406, %cst_209 {dimension_numbers = #tpu.dot_dimension_numbers<[1], [0], [0], [1], [0, 0, 1, 1], [], []>} : vector<32x160xbf16>, vector<160x32xbf16>, vector<32x32xf32> -> vector<32x32xf32>
    %c1_210 = arith.constant 1 : index
    %c0_211 = arith.constant 0 : index
    %c0_212 = arith.constant 0 : index
    %408 = vector.load %arg11[%c1_210, %c0_211, %c0_212] : memref<2x1x32xf32, #tpu.memory_space<vmem>>, vector<1x1x32xf32>
    %409 = vector.shape_cast %408 : vector<1x1x32xf32> to vector<1x32xf32>
    %410 = vector.broadcast %409 : vector<1x32xf32> to vector<32x32xf32>
    %411 = arith.addf %407, %410 : vector<32x32xf32>
    %c1_213 = arith.constant 1 : index
    %c0_214 = arith.constant 0 : index
    %c0_215 = arith.constant 0 : index
    %412 = vector.load %arg12[%c1_213, %c0_214, %c0_215] : memref<2x1x32xf32, #tpu.memory_space<vmem>>, vector<1x1x32xf32>
    %413 = vector.shape_cast %412 : vector<1x1x32xf32> to vector<1x32xf32>
    %c1_216 = arith.constant 1 : index
    %c0_217 = arith.constant 0 : index
    %c0_218 = arith.constant 0 : index
    %414 = vector.load %arg13[%c1_216, %c0_217, %c0_218] : memref<2x1x32xf32, #tpu.memory_space<vmem>>, vector<1x1x32xf32>
    %415 = vector.shape_cast %414 : vector<1x1x32xf32> to vector<1x32xf32>
    %cst_219 = arith.constant dense<0.000000e+00> : vector<32xf32>
    %416 = vector.multi_reduction <add>, %411, %cst_219 [1] : vector<32x32xf32> to vector<32xf32>
    %417 = vector.shape_cast %416 : vector<32xf32> to vector<32x1xf32>
    %cst_220 = arith.constant 3.200000e+01 : f32
    %418 = vector.broadcast %cst_220 : f32 to vector<32x1xf32>
    %419 = arith.divf %417, %418 : vector<32x1xf32>
    %420 = vector.broadcast %419 : vector<32x1xf32> to vector<32x32xf32>
    %421 = arith.subf %411, %420 : vector<32x32xf32>
    %422 = arith.mulf %421, %421 : vector<32x32xf32>
    %cst_221 = arith.constant dense<0.000000e+00> : vector<32xf32>
    %423 = vector.multi_reduction <add>, %422, %cst_221 [1] : vector<32x32xf32> to vector<32xf32>
    %424 = vector.shape_cast %423 : vector<32xf32> to vector<32x1xf32>
    %cst_222 = arith.constant 3.200000e+01 : f32
    %425 = vector.broadcast %cst_222 : f32 to vector<32x1xf32>
    %426 = arith.divf %424, %425 : vector<32x1xf32>
    %427 = vector.broadcast %419 : vector<32x1xf32> to vector<32x32xf32>
    %428 = arith.subf %411, %427 : vector<32x32xf32>
    %cst_223 = arith.constant 9.99999974E-6 : f32
    %429 = vector.broadcast %cst_223 : f32 to vector<32x1xf32>
    %430 = arith.addf %426, %429 : vector<32x1xf32>
    %431 = math.rsqrt %430 : vector<32x1xf32>
    %432 = vector.broadcast %431 : vector<32x1xf32> to vector<32x32xf32>
    %433 = arith.mulf %428, %432 : vector<32x32xf32>
    %434 = vector.broadcast %413 : vector<1x32xf32> to vector<32x32xf32>
    %435 = arith.mulf %433, %434 : vector<32x32xf32>
    %436 = vector.broadcast %415 : vector<1x32xf32> to vector<32x32xf32>
    %437 = arith.addf %435, %436 : vector<32x32xf32>
    %cst_224 = arith.constant 5.000000e-01 : f32
    %438 = vector.broadcast %cst_224 : f32 to vector<32x32xf32>
    %439 = arith.mulf %438, %437 : vector<32x32xf32>
    %cst_225 = arith.constant 0.707106769 : f32
    %440 = vector.broadcast %cst_225 : f32 to vector<32x32xf32>
    %441 = arith.mulf %437, %440 : vector<32x32xf32>
    %cst_226 = arith.constant 0.000000e+00 : f32
    %442 = vector.broadcast %cst_226 : f32 to vector<32x32xf32>
    %443 = arith.cmpf oge, %441, %442 : vector<32x32xf32>
    %cst_227 = arith.constant 1.000000e+00 : f32
    %cst_228 = arith.constant -1.000000e+00 : f32
    %444 = vector.broadcast %cst_227 : f32 to vector<32x32xf32>
    %445 = vector.broadcast %cst_228 : f32 to vector<32x32xf32>
    %446 = arith.select %443, %444, %445 : vector<32x32xi1>, vector<32x32xf32>
    %447 = math.absf %441 : vector<32x32xf32>
    %cst_229 = arith.constant 0.327591091 : f32
    %448 = vector.broadcast %cst_229 : f32 to vector<32x32xf32>
    %449 = arith.mulf %448, %447 : vector<32x32xf32>
    %cst_230 = arith.constant 1.000000e+00 : f32
    %450 = vector.broadcast %cst_230 : f32 to vector<32x32xf32>
    %451 = arith.addf %450, %449 : vector<32x32xf32>
    %cst_231 = arith.constant 1.000000e+00 : f32
    %452 = vector.broadcast %cst_231 : f32 to vector<32x32xf32>
    %453 = arith.divf %452, %451 : vector<32x32xf32>
    %cst_232 = arith.constant 1.06140542 : f32
    %454 = vector.broadcast %cst_232 : f32 to vector<32x32xf32>
    %455 = arith.mulf %454, %453 : vector<32x32xf32>
    %cst_233 = arith.constant -1.45315206 : f32
    %456 = vector.broadcast %cst_233 : f32 to vector<32x32xf32>
    %457 = arith.addf %455, %456 : vector<32x32xf32>
    %458 = arith.mulf %457, %453 : vector<32x32xf32>
    %cst_234 = arith.constant 1.42141378 : f32
    %459 = vector.broadcast %cst_234 : f32 to vector<32x32xf32>
    %460 = arith.addf %458, %459 : vector<32x32xf32>
    %461 = arith.mulf %460, %453 : vector<32x32xf32>
    %cst_235 = arith.constant -0.284496725 : f32
    %462 = vector.broadcast %cst_235 : f32 to vector<32x32xf32>
    %463 = arith.addf %461, %462 : vector<32x32xf32>
    %464 = arith.mulf %463, %453 : vector<32x32xf32>
    %cst_236 = arith.constant 0.254829586 : f32
    %465 = vector.broadcast %cst_236 : f32 to vector<32x32xf32>
    %466 = arith.addf %464, %465 : vector<32x32xf32>
    %467 = arith.mulf %466, %453 : vector<32x32xf32>
    %cst_237 = arith.constant 0.000000e+00 : f32
    %468 = vector.broadcast %cst_237 : f32 to vector<32x32xf32>
    %469 = arith.subf %468, %447 : vector<32x32xf32>
    %470 = arith.mulf %469, %447 : vector<32x32xf32>
    %471 = math.exp %470 : vector<32x32xf32>
    %472 = arith.mulf %467, %471 : vector<32x32xf32>
    %cst_238 = arith.constant 1.000000e+00 : f32
    %473 = vector.broadcast %cst_238 : f32 to vector<32x32xf32>
    %474 = arith.subf %473, %472 : vector<32x32xf32>
    %475 = arith.mulf %446, %474 : vector<32x32xf32>
    %cst_239 = arith.constant 1.000000e+00 : f32
    %476 = vector.broadcast %cst_239 : f32 to vector<32x32xf32>
    %477 = arith.addf %476, %475 : vector<32x32xf32>
    %478 = arith.mulf %439, %477 : vector<32x32xf32>
    %479 = arith.truncf %478 : vector<32x32xf32> to vector<32x32xbf16>
    %c1_240 = arith.constant 1 : index
    %c0_241 = arith.constant 0 : index
    %c0_242 = arith.constant 0 : index
    %480 = vector.load %arg14[%c1_240, %c0_241, %c0_242] : memref<2x32x32xbf16, #tpu.memory_space<vmem>>, vector<1x32x32xbf16>
    %481 = vector.shape_cast %480 : vector<1x32x32xbf16> to vector<32x32xbf16>
    %cst_243 = arith.constant dense<0.000000e+00> : vector<32x32xf32>
    %482 = tpu.matmul %479, %481, %cst_243 {dimension_numbers = #tpu.dot_dimension_numbers<[1], [0], [0], [1], [0, 0, 1, 1], [], []>} : vector<32x32xbf16>, vector<32x32xbf16>, vector<32x32xf32> -> vector<32x32xf32>
    %c1_244 = arith.constant 1 : index
    %c0_245 = arith.constant 0 : index
    %c0_246 = arith.constant 0 : index
    %483 = vector.load %arg15[%c1_244, %c0_245, %c0_246] : memref<2x1x32xf32, #tpu.memory_space<vmem>>, vector<1x1x32xf32>
    %484 = vector.shape_cast %483 : vector<1x1x32xf32> to vector<1x32xf32>
    %485 = vector.broadcast %484 : vector<1x32xf32> to vector<32x32xf32>
    %486 = arith.addf %482, %485 : vector<32x32xf32>
    %487 = arith.addf %247, %486 : vector<32x32xf32>
    %488 = arith.truncf %487 : vector<32x32xf32> to vector<32x32xbf16>
    %c0_247 = arith.constant 0 : index
    %c0_248 = arith.constant 0 : index
    %489 = vector.load %arg16[%c0_247, %c0_248] : memref<32x16xbf16, #tpu.memory_space<vmem>>, vector<32x16xbf16>
    %cst_249 = arith.constant dense<0.000000e+00> : vector<32x16xf32>
    %490 = tpu.matmul %488, %489, %cst_249 {dimension_numbers = #tpu.dot_dimension_numbers<[1], [0], [0], [1], [0, 0, 1, 1], [], []>} : vector<32x32xbf16>, vector<32x16xbf16>, vector<32x16xf32> -> vector<32x16xf32>
    %c0_250 = arith.constant 0 : index
    %c0_251 = arith.constant 0 : index
    %491 = vector.load %arg17[%c0_250, %c0_251] : memref<1x16xf32, #tpu.memory_space<vmem>>, vector<1x16xf32>
    %492 = vector.broadcast %491 : vector<1x16xf32> to vector<32x16xf32>
    %493 = arith.addf %490, %492 : vector<32x16xf32>
    %cst_252 = arith.constant 0.000000e+00 : f32
    %494 = vector.broadcast %cst_252 : f32 to vector<32x16xf32>
    %495 = arith.maximumf %493, %494 : vector<32x16xf32>
    %496 = vector.shape_cast %495 : vector<32x16xf32> to vector<2x16x16xf32>
    %cst_253 = arith.constant dense<0xFF800000> : vector<2x16xf32>
    %497 = vector.multi_reduction <maximumf>, %496, %cst_253 [1] : vector<2x16x16xf32> to vector<2x16xf32>
    %c0_254 = arith.constant 0 : index
    %c0_255 = arith.constant 0 : index
    %498 = vector.load %arg18[%c0_254, %c0_255] : memref<1x16xf32, #tpu.memory_space<vmem>>, vector<1x16xf32>
    %499 = vector.broadcast %498 : vector<1x16xf32> to vector<2x16xf32>
    %500 = arith.mulf %497, %499 : vector<2x16xf32>
    %cst_256 = arith.constant dense<0.000000e+00> : vector<2xf32>
    %501 = vector.multi_reduction <add>, %500, %cst_256 [1] : vector<2x16xf32> to vector<2xf32>
    %502 = vector.shape_cast %501 : vector<2xf32> to vector<2x1xf32>
    %c0_257 = arith.constant 0 : index
    %c0_258 = arith.constant 0 : index
    %503 = vector.load %arg19[%c0_257, %c0_258] : memref<1x1xf32, #tpu.memory_space<vmem>>, vector<1x1xf32>
    %504 = vector.broadcast %503 : vector<1x1xf32> to vector<2x1xf32>
    %505 = arith.addf %502, %504 : vector<2x1xf32>
    %506 = vector.shape_cast %505 : vector<2x1xf32> to vector<2x1x1xf32>
    %c0_259 = arith.constant 0 : index
    %c0_260 = arith.constant 0 : index
    %c0_261 = arith.constant 0 : index
    %507 = vector.load %arg20[%c0_259, %c0_260, %c0_261] : memref<2x1x1xf32, #tpu.memory_space<vmem>>, vector<2x1x1xf32>
    tpu.vector_store %arg20[%c0_259, %c0_260, %c0_261], %506 {strides = array<i32>} : memref<2x1x1xf32, #tpu.memory_space<vmem>>, vector<2x1x1xf32>,
    return
  }
  func.func @transform_0(%arg0: i32) -> (i32, i32, i32) {
    %c0_i32 = arith.constant 0 : i32
    %c0_i32_0 = arith.constant 0 : i32
    %c0_i32_1 = arith.constant 0 : i32
    return %arg0, %c0_i32, %c0_i32_0 : i32, i32, i32
  }
  func.func @transform_1(%arg0: i32) -> (i32, i32) {
    %c0_i32 = arith.constant 0 : i32
    %c0_i32_0 = arith.constant 0 : i32
    %c0_i32_1 = arith.constant 0 : i32
    return %c0_i32, %c0_i32_0 : i32, i32
  }
  func.func @transform_2(%arg0: i32) -> (i32, i32) {
    %c0_i32 = arith.constant 0 : i32
    %c0_i32_0 = arith.constant 0 : i32
    %c0_i32_1 = arith.constant 0 : i32
    return %c0_i32, %c0_i32_0 : i32, i32
  }
  func.func @transform_3(%arg0: i32) -> (i32, i32, i32) {
    %c0_i32 = arith.constant 0 : i32
    %c0_i32_0 = arith.constant 0 : i32
    %c0_i32_1 = arith.constant 0 : i32
    %c0_i32_2 = arith.constant 0 : i32
    return %c0_i32, %c0_i32_0, %c0_i32_1 : i32, i32, i32
  }
  func.func @transform_4(%arg0: i32) -> (i32, i32, i32) {
    %c0_i32 = arith.constant 0 : i32
    %c0_i32_0 = arith.constant 0 : i32
    %c0_i32_1 = arith.constant 0 : i32
    %c0_i32_2 = arith.constant 0 : i32
    return %c0_i32, %c0_i32_0, %c0_i32_1 : i32, i32, i32
  }
  func.func @transform_5(%arg0: i32) -> (i32, i32, i32) {
    %c0_i32 = arith.constant 0 : i32
    %c0_i32_0 = arith.constant 0 : i32
    %c0_i32_1 = arith.constant 0 : i32
    %c0_i32_2 = arith.constant 0 : i32
    return %c0_i32, %c0_i32_0, %c0_i32_1 : i32, i32, i32
  }
  func.func @transform_6(%arg0: i32) -> (i32, i32, i32) {
    %c0_i32 = arith.constant 0 : i32
    %c0_i32_0 = arith.constant 0 : i32
    %c0_i32_1 = arith.constant 0 : i32
    %c0_i32_2 = arith.constant 0 : i32
    return %c0_i32, %c0_i32_0, %c0_i32_1 : i32, i32, i32
  }
  func.func @transform_7(%arg0: i32) -> (i32, i32, i32) {
    %c0_i32 = arith.constant 0 : i32
    %c0_i32_0 = arith.constant 0 : i32
    %c0_i32_1 = arith.constant 0 : i32
    %c0_i32_2 = arith.constant 0 : i32
    return %c0_i32, %c0_i32_0, %c0_i32_1 : i32, i32, i32
  }
  func.func @transform_8(%arg0: i32) -> (i32, i32, i32) {
    %c0_i32 = arith.constant 0 : i32
    %c0_i32_0 = arith.constant 0 : i32
    %c0_i32_1 = arith.constant 0 : i32
    %c0_i32_2 = arith.constant 0 : i32
    return %c0_i32, %c0_i32_0, %c0_i32_1 : i32, i32, i32
  }
  func.func @transform_9(%arg0: i32) -> (i32, i32, i32) {
    %c0_i32 = arith.constant 0 : i32
    %c0_i32_0 = arith.constant 0 : i32
    %c0_i32_1 = arith.constant 0 : i32
    %c0_i32_2 = arith.constant 0 : i32
    return %c0_i32, %c0_i32_0, %c0_i32_1 : i32, i32, i32
  }
  func.func @transform_10(%arg0: i32) -> (i32, i32, i32) {
    %c0_i32 = arith.constant 0 : i32
    %c0_i32_0 = arith.constant 0 : i32
    %c0_i32_1 = arith.constant 0 : i32
    %c0_i32_2 = arith.constant 0 : i32
    return %c0_i32, %c0_i32_0, %c0_i32_1 : i32, i32, i32
  }
  func.func @transform_11(%arg0: i32) -> (i32, i32, i32) {
    %c0_i32 = arith.constant 0 : i32
    %c0_i32_0 = arith.constant 0 : i32
    %c0_i32_1 = arith.constant 0 : i32
    %c0_i32_2 = arith.constant 0 : i32
    return %c0_i32, %c0_i32_0, %c0_i32_1 : i32, i32, i32
  }
  func.func @transform_12(%arg0: i32) -> (i32, i32, i32) {
    %c0_i32 = arith.constant 0 : i32
    %c0_i32_0 = arith.constant 0 : i32
    %c0_i32_1 = arith.constant 0 : i32
    %c0_i32_2 = arith.constant 0 : i32
    return %c0_i32, %c0_i32_0, %c0_i32_1 : i32, i32, i32
  }
  func.func @transform_13(%arg0: i32) -> (i32, i32, i32) {
    %c0_i32 = arith.constant 0 : i32
    %c0_i32_0 = arith.constant 0 : i32
    %c0_i32_1 = arith.constant 0 : i32
    %c0_i32_2 = arith.constant 0 : i32
    return %c0_i32, %c0_i32_0, %c0_i32_1 : i32, i32, i32
  }
  func.func @transform_14(%arg0: i32) -> (i32, i32, i32) {
    %c0_i32 = arith.constant 0 : i32
    %c0_i32_0 = arith.constant 0 : i32
    %c0_i32_1 = arith.constant 0 : i32
    %c0_i32_2 = arith.constant 0 : i32
    return %c0_i32, %c0_i32_0, %c0_i32_1 : i32, i32, i32
  }
  func.func @transform_15(%arg0: i32) -> (i32, i32) {
    %c0_i32 = arith.constant 0 : i32
    %c0_i32_0 = arith.constant 0 : i32
    %c0_i32_1 = arith.constant 0 : i32
    return %c0_i32, %c0_i32_0 : i32, i32
  }
  func.func @transform_16(%arg0: i32) -> (i32, i32) {
    %c0_i32 = arith.constant 0 : i32
    %c0_i32_0 = arith.constant 0 : i32
    %c0_i32_1 = arith.constant 0 : i32
    return %c0_i32, %c0_i32_0 : i32, i32
  }
  func.func @transform_17(%arg0: i32) -> (i32, i32) {
    %c0_i32 = arith.constant 0 : i32
    %c0_i32_0 = arith.constant 0 : i32
    %c0_i32_1 = arith.constant 0 : i32
    return %c0_i32, %c0_i32_0 : i32, i32
  }
  func.func @transform_18(%arg0: i32) -> (i32, i32) {
    %c0_i32 = arith.constant 0 : i32
    %c0_i32_0 = arith.constant 0 : i32
    %c0_i32_1 = arith.constant 0 : i32
    return %c0_i32, %c0_i32_0 : i32, i32
  }
  func.func @transform_19(%arg0: i32) -> (i32, i32, i32) {
    %c0_i32 = arith.constant 0 : i32
    %c0_i32_0 = arith.constant 0 : i32
    %c0_i32_1 = arith.constant 0 : i32
    return %arg0, %c0_i32, %c0_i32_0 : i32, i32, i32
  }
}

</mosaic_0001>

<llo_original>
// kernel: bytenet_single_seq_forward.1
$region0: #{bytenet_single_seq_forward.1}
  #allocation0 [shape = 'u32[]', space=smem, size = 0x4, offset = 0x4, fixed_abs, tag = 'smem constant byte address 0x4 - core index']
  #allocation1 [shape = 'u32[72,128]{1,0:T(1,128)}', space=vmem, size = 0x9000, scoped, tag = 'internal scratch']
  #allocation2 [shape = 'f32[2,16,160]{2,1,0:T(8,128)}', space=vmem, size = 0x8000, scoped, tag = 'scratch operand']
  #allocation3 [shape = 'f32[1,1]{1,0:T(1,128)S(1)}', space=vmem, size = 0x200, scoped, tag = 'scoped memory for bytenet_single_seq_forward.1']
  %s0 = inlined_call_operand.vmem [shape: f32[2,16,20], index: 0, kind: input, shape index: {}]
  %s1 = inlined_call_operand.vmem [shape: bf16[20,32], index: 1, kind: input, shape index: {}]
  %s2 = inlined_call_operand.vmem [shape: f32[1,32], index: 2, kind: input, shape index: {}]
  %s3 = inlined_call_operand.vmem [shape: f32[2,1,32], index: 3, kind: input, shape index: {}]
  %s4 = inlined_call_operand.vmem [shape: f32[2,1,32], index: 4, kind: input, shape index: {}]
  %s5 = inlined_call_operand.vmem [shape: bf16[2,32,32], index: 5, kind: input, shape index: {}]
  %s6 = inlined_call_operand.vmem [shape: f32[2,1,32], index: 6, kind: input, shape index: {}]
  %s7 = inlined_call_operand.vmem [shape: f32[2,1,32], index: 7, kind: input, shape index: {}]
  %s8 = inlined_call_operand.vmem [shape: f32[2,1,32], index: 8, kind: input, shape index: {}]
  %s9 = inlined_call_operand.vmem [shape: bf16[2,160,32], index: 9, kind: input, shape index: {}]
  %s10 = inlined_call_operand.vmem [shape: f32[2,1,32], index: 10, kind: input, shape index: {}]
  %s11 = inlined_call_operand.vmem [shape: f32[2,1,32], index: 11, kind: input, shape index: {}]
  %s12 = inlined_call_operand.vmem [shape: f32[2,1,32], index: 12, kind: input, shape index: {}]
  %s13 = inlined_call_operand.vmem [shape: bf16[2,32,32], index: 13, kind: input, shape index: {}]
  %s14 = inlined_call_operand.vmem [shape: f32[2,1,32], index: 14, kind: input, shape index: {}]
  %s15 = inlined_call_operand.vmem [shape: bf16[32,16], index: 15, kind: input, shape index: {}]
  %s16 = inlined_call_operand.vmem [shape: f32[1,16], index: 16, kind: input, shape index: {}]
  %s17 = inlined_call_operand.vmem [shape: f32[1,16], index: 17, kind: input, shape index: {}]
  %s18 = inlined_call_operand.<no memory space> [shape: f32[1,1], index: 18, kind: input, shape index: {}]
  %s19 = inlined_call_operand.vmem [shape: f32[2,1,1], index: 19, kind: output, shape index: {}]
  %s20 = sld [smem:[#allocation0]]
  $region86: #{bytenet_single_seq_forward.1} parent=0
    _
  %s22 = ssub.s32 1, %s20
  %s23 = scalar_select 0, %s22, %s20
  %v24 = vstv %s18
  %25 = vst [vmem:[#allocation3] sm:$0x1] %v24
  // Predicated region
  $region2: #{bytenet_single_seq_forward.1} parent=0 // pred_check
    _
  $region3: #{bytenet_single_seq_forward.1} parent=0 // pred_check_branch
    %27 = sbr.rel (0) target = $region5
  $region4: #{bytenet_single_seq_forward.1} parent=0 // pred_region
    _
  $region5: #{bytenet_single_seq_forward.1} parent=0 // pred_fallthru
    _
  // Predicated region
  $region6: #{bytenet_single_seq_forward.1} parent=0 // pred_check
    _
  $region7: #{bytenet_single_seq_forward.1} parent=0 // pred_check_branch
    %29 = sbr.rel (0) target = $region9
  $region8: #{bytenet_single_seq_forward.1} parent=0 // pred_region
    _
  $region9: #{bytenet_single_seq_forward.1} parent=0 // pred_fallthru
    _
  // Predicated region
  $region10: #{bytenet_single_seq_forward.1} parent=0 // pred_check
    _
  $region11: #{bytenet_single_seq_forward.1} parent=0 // pred_check_branch
    %31 = sbr.rel (0) target = $region13
  $region12: #{bytenet_single_seq_forward.1} parent=0 // pred_region
    _
  $region13: #{bytenet_single_seq_forward.1} parent=0 // pred_fallthru
    _
  // Predicated region
  $region14: #{bytenet_single_seq_forward.1} parent=0 // pred_check
    _
  $region15: #{bytenet_single_seq_forward.1} parent=0 // pred_check_branch
    %33 = sbr.rel (0) target = $region17
  $region16: #{bytenet_single_seq_forward.1} parent=0 // pred_region
    _
  $region17: #{bytenet_single_seq_forward.1} parent=0 // pred_fallthru
    _
  // Predicated region
  $region18: #{bytenet_single_seq_forward.1} parent=0 // pred_check
    _
  $region19: #{bytenet_single_seq_forward.1} parent=0 // pred_check_branch
    %35 = sbr.rel (0) target = $region21
  $region20: #{bytenet_single_seq_forward.1} parent=0 // pred_region
    _
  $region21: #{bytenet_single_seq_forward.1} parent=0 // pred_fallthru
    _
  // Predicated region
  $region22: #{bytenet_single_seq_forward.1} parent=0 // pred_check
    _
  $region23: #{bytenet_single_seq_forward.1} parent=0 // pred_check_branch
    %37 = sbr.rel (0) target = $region25
  $region24: #{bytenet_single_seq_forward.1} parent=0 // pred_region
    _
  $region25: #{bytenet_single_seq_forward.1} parent=0 // pred_fallthru
    _
  // Predicated region
  $region26: #{bytenet_single_seq_forward.1} parent=0 // pred_check
    _
  $region27: #{bytenet_single_seq_forward.1} parent=0 // pred_check_branch
    %39 = sbr.rel (0) target = $region29
  $region28: #{bytenet_single_seq_forward.1} parent=0 // pred_region
    _
  $region29: #{bytenet_single_seq_forward.1} parent=0 // pred_fallthru
    _
  // Predicated region
  $region30: #{bytenet_single_seq_forward.1} parent=0 // pred_check
    _
  $region31: #{bytenet_single_seq_forward.1} parent=0 // pred_check_branch
    %41 = sbr.rel (0) target = $region33
  $region32: #{bytenet_single_seq_forward.1} parent=0 // pred_region
    _
  $region33: #{bytenet_single_seq_forward.1} parent=0 // pred_fallthru
    _
  // Predicated region
  $region34: #{bytenet_single_seq_forward.1} parent=0 // pred_check
    _
  $region35: #{bytenet_single_seq_forward.1} parent=0 // pred_check_branch
    %43 = sbr.rel (0) target = $region37
  $region36: #{bytenet_single_seq_forward.1} parent=0 // pred_region
    _
  $region37: #{bytenet_single_seq_forward.1} parent=0 // pred_fallthru
    _
  // Predicated region
  $region38: #{bytenet_single_seq_forward.1} parent=0 // pred_check
    _
  $region39: #{bytenet_single_seq_forward.1} parent=0 // pred_check_branch
    %45 = sbr.rel (0) target = $region41
  $region40: #{bytenet_single_seq_forward.1} parent=0 // pred_region
    _
  $region41: #{bytenet_single_seq_forward.1} parent=0 // pred_fallthru
    _
  // Predicated region
  $region42: #{bytenet_single_seq_forward.1} parent=0 // pred_check
    _
  $region43: #{bytenet_single_seq_forward.1} parent=0 // pred_check_branch
    %47 = sbr.rel (0) target = $region45
  $region44: #{bytenet_single_seq_forward.1} parent=0 // pred_region
    _
  $region45: #{bytenet_single_seq_forward.1} parent=0 // pred_fallthru
    _
  // Predicated region
  $region46: #{bytenet_single_seq_forward.1} parent=0 // pred_check
    _
  $region47: #{bytenet_single_seq_forward.1} parent=0 // pred_check_branch
    %49 = sbr.rel (0) target = $region49
  $region48: #{bytenet_single_seq_forward.1} parent=0 // pred_region
    _
  $region49: #{bytenet_single_seq_forward.1} parent=0 // pred_fallthru
    _
  // Predicated region
  $region50: #{bytenet_single_seq_forward.1} parent=0 // pred_check
    _
  $region51: #{bytenet_single_seq_forward.1} parent=0 // pred_check_branch
    %51 = sbr.rel (0) target = $region53
  $region52: #{bytenet_single_seq_forward.1} parent=0 // pred_region
    _
  $region53: #{bytenet_single_seq_forward.1} parent=0 // pred_fallthru
    _
  // Predicated region
  $region54: #{bytenet_single_seq_forward.1} parent=0 // pred_check
    _
  $region55: #{bytenet_single_seq_forward.1} parent=0 // pred_check_branch
    %53 = sbr.rel (0) target = $region57
  $region56: #{bytenet_single_seq_forward.1} parent=0 // pred_region
    _
  $region57: #{bytenet_single_seq_forward.1} parent=0 // pred_fallthru
    _
  // Predicated region
  $region58: #{bytenet_single_seq_forward.1} parent=0 // pred_check
    _
  $region59: #{bytenet_single_seq_forward.1} parent=0 // pred_check_branch
    %55 = sbr.rel (0) target = $region61
  $region60: #{bytenet_single_seq_forward.1} parent=0 // pred_region
    _
  $region61: #{bytenet_single_seq_forward.1} parent=0 // pred_fallthru
    _
  // Predicated region
  $region62: #{bytenet_single_seq_forward.1} parent=0 // pred_check
    _
  $region63: #{bytenet_single_seq_forward.1} parent=0 // pred_check_branch
    %57 = sbr.rel (0) target = $region65
  $region64: #{bytenet_single_seq_forward.1} parent=0 // pred_region
    _
  $region65: #{bytenet_single_seq_forward.1} parent=0 // pred_fallthru
    _
  // Predicated region
  $region66: #{bytenet_single_seq_forward.1} parent=0 // pred_check
    _
  $region67: #{bytenet_single_seq_forward.1} parent=0 // pred_check_branch
    %59 = sbr.rel (0) target = $region69
  $region68: #{bytenet_single_seq_forward.1} parent=0 // pred_region
    _
  $region69: #{bytenet_single_seq_forward.1} parent=0 // pred_fallthru
    _
  // Predicated region
  $region70: #{bytenet_single_seq_forward.1} parent=0 // pred_check
    _
  $region71: #{bytenet_single_seq_forward.1} parent=0 // pred_check_branch
    %61 = sbr.rel (0) target = $region73
  $region72: #{bytenet_single_seq_forward.1} parent=0 // pred_region
    _
  $region73: #{bytenet_single_seq_forward.1} parent=0 // pred_fallthru
    _
  // Predicated region
  $region74: #{bytenet_single_seq_forward.1} parent=0 // pred_check
    _
  $region75: #{bytenet_single_seq_forward.1} parent=0 // pred_check_branch
    %63 = sbr.rel (0) target = $region77
  $region76: #{bytenet_single_seq_forward.1} parent=0 // pred_region
    _
  $region77: #{bytenet_single_seq_forward.1} parent=0 // pred_fallthru
    _
  %v65 = vld [vmem:[%s0] sm:$0xff]
  %v66 = vld [vmem:[%s0 + $0x8] sm:$0xff]
  %v67 = vld [vmem:[%s0 + $0x10] sm:$0xff]
  %v68 = vld [vmem:[%s0 + $0x18] sm:$0xff]
  %v69 = vpack.c.bf16 %v66, %v65
  %v70 = vpack.c.bf16 %v68, %v67
  %v71 = vld [vmem:[%s1] sm:$0xf]
  %v72 = vld [vmem:[%s1 + $0x4] sm:$0xf]
  %v73 = vld [vmem:[%s1 + $0x8] sm:$0x3]
  %v74 = vld [vmem:[%s2] sm:$0x1]
  %v76 = vperm.slane %v74, 0
  %v81 = vunpack.c.l.b16 %v71
  %v82 = vunpack.c.l.b16 %v72
  %v83 = vunpack.c.l.b16 %v73
  %v84 = vpack.c.b16 %v82, %v81
  %v85 = vpack.c.b16 %v83, %v83
  %vm87 = vcmask 162816
  %v89 = vsel %vm87, %v69, 0
  %v92 = vsel %vm87, %v70, 0
  %vm94 = vcmask 1041408
  %v96 = vsel %vm94, %v85, 0
  %98 = vmatpush.bf16.msra.mxu0 0
  %99 = vmatpush.bf16.msra.mxu0 0
  %100 = vmatpush.bf16.msra.mxu0 0
  %101 = vmatpush.bf16.msra.mxu0 0
  %102 = vmatpush.bf16.msra.mxu0 0
  %103 = vmatpush.bf16.msra.mxu0 0
  %104 = vmatpush.bf16.msra.mxu0 %v96
  %105 = vmatpush.bf16.msra.mxu0 %v84
  %106 = vmatmul.bf16.gmra.mxu0 %v89
  %v107 = vpop.f32.mrf.mxu0
  %v108 = vadd.f32 %v76, %v107
  %v109 = vpop.f32.mrf.mxu0
  %v110 = vadd.f32 %v76, %v109
  %111 = vmatmul.bf16.gmra.mxu0 %v92
  %v112 = vpop.f32.mrf.mxu0
  %v113 = vadd.f32 %v76, %v112
  %v114 = vpop.f32.mrf.mxu0
  %v115 = vadd.f32 %v76, %v114
  %116 = vdwg.mxu0
  %v117 = vld [vmem:[%s3] sm:$0x1]
  %v118 = vld [vmem:[%s4] sm:$0x1]
  %vm119 = vcmask 261120
  %v120 = vsel %vm119, %v108, 0.0
  %121 = vadd.xlane.f32.xlu0 %v120
  %v122 = vpop.xlane.xlu0 %121
  %v123 = vsel %vm119, %v110, 0.0
  %124 = vadd.xlane.f32.xlu0 %v123
  %v125 = vpop.xlane.xlu0 %124
  %v126 = vsel %vm119, %v113, 0.0
  %127 = vadd.xlane.f32.xlu0 %v126
  %v128 = vpop.xlane.xlu0 %127
  %v129 = vsel %vm119, %v115, 0.0
  %130 = vadd.xlane.f32.xlu0 %v129
  %v131 = vpop.xlane.xlu0 %130
  %v132 = vrcp.pop 32.0
  %v133 = vmul.f32 32.0, %v132
  %v134 = vsub.f32 1.0, %v133
  %v135 = vmul.f32 %v132, %v134
  %v136 = vadd.f32 %v132, %v135
  %vm137 = vweird.f32 %v132
  %v138 = vsel %vm137, %v132, %v136
  %v139 = vmul.f32 %v122, %v138
  %v140 = vmul.f32 %v125, %v138
  %v141 = vmul.f32 %v128, %v138
  %v142 = vmul.f32 %v131, %v138
  %v143 = vsub.f32 %v108, %v139
  %v144 = vsub.f32 %v110, %v140
  %v145 = vsub.f32 %v113, %v141
  %v146 = vsub.f32 %v115, %v142
  %v147 = vmul.f32 %v143, %v143
  %v148 = vmul.f32 %v144, %v144
  %v149 = vmul.f32 %v145, %v145
  %v150 = vmul.f32 %v146, %v146
  %v151 = vsel %vm119, %v147, 0.0
  %152 = vadd.xlane.f32.xlu0 %v151
  %v153 = vpop.xlane.xlu0 %152
  %v154 = vsel %vm119, %v148, 0.0
  %155 = vadd.xlane.f32.xlu0 %v154
  %v156 = vpop.xlane.xlu0 %155
  %v157 = vsel %vm119, %v149, 0.0
  %158 = vadd.xlane.f32.xlu0 %v157
  %v159 = vpop.xlane.xlu0 %158
  %v160 = vsel %vm119, %v150, 0.0
  %161 = vadd.xlane.f32.xlu0 %v160
  %v162 = vpop.xlane.xlu0 %161
  %v163 = vmul.f32 %v153, %v138
  %v164 = vmul.f32 %v156, %v138
  %v165 = vmul.f32 %v159, %v138
  %v166 = vmul.f32 %v162, %v138
  %v167 = vadd.f32 %v163, 1e-05
  %v168 = vadd.f32 %v164, 1e-05
  %v169 = vadd.f32 %v165, 1e-05
  %v170 = vadd.f32 %v166, 1e-05
  %v171 = vrsqrt.pop %v167
  %v172 = vmul.f32 %v171, %v167
  %v173 = vmul.f32 %v172, %v171
  %v174 = vmul.f32 0.5, %v173
  %v175 = vsub.f32 1.5, %v174
  %v176 = vmul.f32 %v171, %v175
  %vm177 = vweird.f32 %v167
  %vm178 = vweird.f32 %v171
  %vm179 = vmor %vm177, %vm178
  %v180 = vsel %vm179, %v171, %v176
  %v181 = vrsqrt.pop %v168
  %v182 = vmul.f32 %v181, %v168
  %v183 = vmul.f32 %v182, %v181
  %v184 = vmul.f32 0.5, %v183
  %v185 = vsub.f32 1.5, %v184
  %v186 = vmul.f32 %v181, %v185
  %vm187 = vweird.f32 %v168
  %vm188 = vweird.f32 %v181
  %vm189 = vmor %vm187, %vm188
  %v190 = vsel %vm189, %v181, %v186
  %v191 = vrsqrt.pop %v169
  %v192 = vmul.f32 %v191, %v169
  %v193 = vmul.f32 %v192, %v191
  %v194 = vmul.f32 0.5, %v193
  %v195 = vsub.f32 1.5, %v194
  %v196 = vmul.f32 %v191, %v195
  %vm197 = vweird.f32 %v169
  %vm198 = vweird.f32 %v191
  %vm199 = vmor %vm197, %vm198
  %v200 = vsel %vm199, %v191, %v196
  %v201 = vrsqrt.pop %v170
  %v202 = vmul.f32 %v201, %v170
  %v203 = vmul.f32 %v202, %v201
  %v204 = vmul.f32 0.5, %v203
  %v205 = vsub.f32 1.5, %v204
  %v206 = vmul.f32 %v201, %v205
  %vm207 = vweird.f32 %v170
  %vm208 = vweird.f32 %v201
  %vm209 = vmor %vm207, %vm208
  %v210 = vsel %vm209, %v201, %v206
  %v211 = vmul.f32 %v143, %v180
  %v212 = vmul.f32 %v144, %v190
  %v213 = vmul.f32 %v145, %v200
  %v214 = vmul.f32 %v146, %v210
  %v216 = vperm.slane %v117, 0
  %v218 = vmul.f32 %v211, %v216
  %v219 = vmul.f32 %v212, %v216
  %v220 = vmul.f32 %v213, %v216
  %v221 = vmul.f32 %v214, %v216
  %v223 = vperm.slane %v118, 0
  %v225 = vadd.f32 %v218, %v223
  %v226 = vadd.f32 %v219, %v223
  %v227 = vadd.f32 %v220, %v223
  %v228 = vadd.f32 %v221, %v223
  %v229 = vmul.f32 %v225, 0.5
  %v230 = vmul.f32 %v226, 0.5
  %v231 = vmul.f32 %v227, 0.5
  %v232 = vmul.f32 %v228, 0.5
  %v233 = vmul.f32 %v225, 0.70710677
  %v234 = vmul.f32 %v226, 0.70710677
  %v235 = vmul.f32 %v227, 0.70710677
  %v236 = vmul.f32 %v228, 0.70710677
  %vm237 = vcmp.ge.f32.partialorder %v233, 0.0
  %vm238 = vcmp.ge.f32.partialorder %v234, 0.0
  %vm239 = vcmp.ge.f32.partialorder %v235, 0.0
  %vm240 = vcmp.ge.f32.partialorder %v236, 0.0
  %v241 = vsel %vm237, 1.0, -1.0
  %v242 = vsel %vm238, 1.0, -1.0
  %v243 = vsel %vm239, 1.0, -1.0
  %v244 = vsel %vm240, 1.0, -1.0
  %v245 = vand.u32 2147483647, %v233
  %v246 = vand.u32 2147483647, %v234
  %v247 = vand.u32 2147483647, %v235
  %v248 = vand.u32 2147483647, %v236
  %v249 = vmul.f32 %v245, 0.3275911
  %v250 = vmul.f32 %v246, 0.3275911
  %v251 = vmul.f32 %v247, 0.3275911
  %v252 = vmul.f32 %v248, 0.3275911
  %v253 = vadd.f32 %v249, 1.0
  %v254 = vadd.f32 %v250, 1.0
  %v255 = vadd.f32 %v251, 1.0
  %v256 = vadd.f32 %v252, 1.0
  %v257 = vrcp.pop %v253
  %v258 = vmul.f32 %v253, %v257
  %v259 = vsub.f32 1.0, %v258
  %v260 = vmul.f32 %v257, %v259
  %v261 = vadd.f32 %v257, %v260
  %vm262 = vweird.f32 %v253
  %vm263 = vweird.f32 %v257
  %vm264 = vmor %vm262, %vm263
  %v265 = vsel %vm264, %v257, %v261
  %v266 = vand.u32 2147483647, %v253
  %vm267 = vcmp.eq.f32.partialorder %v266, 8.507059e+37
  %v268 = vand.u32 %v253, 2147483648
  %v269 = vor.u32 1.1754944e-38, %v268
  %v270 = vsel %vm267, %v269, %v265
  %v271 = vmul.f32 1.0, %v270
  %v272 = vrcp.pop %v254
  %v273 = vmul.f32 %v254, %v272
  %v274 = vsub.f32 1.0, %v273
  %v275 = vmul.f32 %v272, %v274
  %v276 = vadd.f32 %v272, %v275
  %vm277 = vweird.f32 %v254
  %vm278 = vweird.f32 %v272
  %vm279 = vmor %vm277, %vm278
  %v280 = vsel %vm279, %v272, %v276
  %v281 = vand.u32 2147483647, %v254
  %vm282 = vcmp.eq.f32.partialorder %v281, 8.507059e+37
  %v283 = vand.u32 %v254, 2147483648
  %v284 = vor.u32 1.1754944e-38, %v283
  %v285 = vsel %vm282, %v284, %v280
  %v286 = vmul.f32 1.0, %v285
  %v287 = vrcp.pop %v255
  %v288 = vmul.f32 %v255, %v287
  %v289 = vsub.f32 1.0, %v288
  %v290 = vmul.f32 %v287, %v289
  %v291 = vadd.f32 %v287, %v290
  %vm292 = vweird.f32 %v255
  %vm293 = vweird.f32 %v287
  %vm294 = vmor %vm292, %vm293
  %v295 = vsel %vm294, %v287, %v291
  %v296 = vand.u32 2147483647, %v255
  %vm297 = vcmp.eq.f32.partialorder %v296, 8.507059e+37
  %v298 = vand.u32 %v255, 2147483648
  %v299 = vor.u32 1.1754944e-38, %v298
  %v300 = vsel %vm297, %v299, %v295
  %v301 = vmul.f32 1.0, %v300
  %v302 = vrcp.pop %v256
  %v303 = vmul.f32 %v256, %v302
  %v304 = vsub.f32 1.0, %v303
  %v305 = vmul.f32 %v302, %v304
  %v306 = vadd.f32 %v302, %v305
  %vm307 = vweird.f32 %v256
  %vm308 = vweird.f32 %v302
  %vm309 = vmor %vm307, %vm308
  %v310 = vsel %vm309, %v302, %v306
  %v311 = vand.u32 2147483647, %v256
  %vm312 = vcmp.eq.f32.partialorder %v311, 8.507059e+37
  %v313 = vand.u32 %v256, 2147483648
  %v314 = vor.u32 1.1754944e-38, %v313
  %v315 = vsel %vm312, %v314, %v310
  %v316 = vmul.f32 1.0, %v315
  %v317 = vmul.f32 %v271, 1.0614054
  %v318 = vmul.f32 %v286, 1.0614054
  %v319 = vmul.f32 %v301, 1.0614054
  %v320 = vmul.f32 %v316, 1.0614054
  %v321 = vadd.f32 %v317, -1.4531521
  %v322 = vadd.f32 %v318, -1.4531521
  %v323 = vadd.f32 %v319, -1.4531521
  %v324 = vadd.f32 %v320, -1.4531521
  %v325 = vmul.f32 %v321, %v271
  %v326 = vmul.f32 %v322, %v286
  %v327 = vmul.f32 %v323, %v301
  %v328 = vmul.f32 %v324, %v316
  %v329 = vadd.f32 %v325, 1.4214138
  %v330 = vadd.f32 %v326, 1.4214138
  %v331 = vadd.f32 %v327, 1.4214138
  %v332 = vadd.f32 %v328, 1.4214138
  %v333 = vmul.f32 %v329, %v271
  %v334 = vmul.f32 %v330, %v286
  %v335 = vmul.f32 %v331, %v301
  %v336 = vmul.f32 %v332, %v316
  %v337 = vadd.f32 %v333, -0.28449672
  %v338 = vadd.f32 %v334, -0.28449672
  %v339 = vadd.f32 %v335, -0.28449672
  %v340 = vadd.f32 %v336, -0.28449672
  %v341 = vmul.f32 %v337, %v271
  %v342 = vmul.f32 %v338, %v286
  %v343 = vmul.f32 %v339, %v301
  %v344 = vmul.f32 %v340, %v316
  %v345 = vadd.f32 %v341, 0.2548296
  %v346 = vadd.f32 %v342, 0.2548296
  %v347 = vadd.f32 %v343, 0.2548296
  %v348 = vadd.f32 %v344, 0.2548296
  %v349 = vmul.f32 %v345, %v271
  %v350 = vmul.f32 %v346, %v286
  %v351 = vmul.f32 %v347, %v301
  %v352 = vmul.f32 %v348, %v316
  %v353 = vsub.f32 0.0, %v245
  %v354 = vsub.f32 0.0, %v246
  %v355 = vsub.f32 0.0, %v247
  %v356 = vsub.f32 0.0, %v248
  %v357 = vmul.f32 %v353, %v245
  %v358 = vmul.f32 %v354, %v246
  %v359 = vmul.f32 %v355, %v247
  %v360 = vmul.f32 %v356, %v248
  %v361 = vmul.f32 %v357, 1.442695
  %v362 = vpow.pop %v361
  %v363 = vmul.f32 %v358, 1.442695
  %v364 = vpow.pop %v363
  %v365 = vmul.f32 %v359, 1.442695
  %v366 = vpow.pop %v365
  %v367 = vmul.f32 %v360, 1.442695
  %v368 = vpow.pop %v367
  %v369 = vmul.f32 %v349, %v362
  %v370 = vmul.f32 %v350, %v364
  %v371 = vmul.f32 %v351, %v366
  %v372 = vmul.f32 %v352, %v368
  %v373 = vsub.f32 1.0, %v369
  %v374 = vsub.f32 1.0, %v370
  %v375 = vsub.f32 1.0, %v371
  %v376 = vsub.f32 1.0, %v372
  %v377 = vmul.f32 %v241, %v373
  %v378 = vmul.f32 %v242, %v374
  %v379 = vmul.f32 %v243, %v375
  %v380 = vmul.f32 %v244, %v376
  %v381 = vadd.f32 %v377, 1.0
  %v382 = vadd.f32 %v378, 1.0
  %v383 = vadd.f32 %v379, 1.0
  %v384 = vadd.f32 %v380, 1.0
  %v385 = vmul.f32 %v229, %v381
  %v386 = vmul.f32 %v230, %v382
  %v387 = vmul.f32 %v231, %v383
  %v388 = vmul.f32 %v232, %v384
  %v389 = vpack.c.bf16 %v386, %v385
  %v390 = vpack.c.bf16 %v388, %v387
  %v391 = vld [vmem:[%s5] sm:$0xf]
  %v392 = vld [vmem:[%s5 + $0x4] sm:$0xf]
  %v393 = vld [vmem:[%s5 + $0x8] sm:$0xf]
  %v394 = vld [vmem:[%s5 + $0xc] sm:$0xf]
  %v395 = vld [vmem:[%s6] sm:$0x1]
  %v397 = vperm.slane %v395, 0
  %v403 = vunpack.c.l.b16 %v391
  %v404 = vunpack.c.l.b16 %v392
  %v405 = vunpack.c.l.b16 %v393
  %v406 = vunpack.c.l.b16 %v394
  %v407 = vpack.c.b16 %v404, %v403
  %v408 = vpack.c.b16 %v406, %v405
  %v412 = vsel %vm119, %v389, 0
  %v415 = vsel %vm119, %v390, 0
  %417 = vmatpush.bf16.msra.mxu0 0
  %418 = vmatpush.bf16.msra.mxu0 0
  %419 = vmatpush.bf16.msra.mxu0 0
  %420 = vmatpush.bf16.msra.mxu0 0
  %421 = vmatpush.bf16.msra.mxu0 0
  %422 = vmatpush.bf16.msra.mxu0 0
  %423 = vmatpush.bf16.msra.mxu0 %v408
  %424 = vmatpush.bf16.msra.mxu0 %v407
  %425 = vmatmul.bf16.gmra.mxu0 %v412
  %v426 = vpop.f32.mrf.mxu0
  %v427 = vadd.f32 %v397, %v426
  %v428 = vpop.f32.mrf.mxu0
  %v429 = vadd.f32 %v397, %v428
  %430 = vmatmul.bf16.gmra.mxu0 %v415
  %v431 = vpop.f32.mrf.mxu0
  %v432 = vadd.f32 %v397, %v431
  %v433 = vpop.f32.mrf.mxu0
  %v434 = vadd.f32 %v397, %v433
  %435 = vdwg.mxu0
  %v436 = vld [vmem:[%s7] sm:$0x1]
  %v437 = vld [vmem:[%s8] sm:$0x1]
  %v438 = vsel %vm119, %v427, 0.0
  %439 = vadd.xlane.f32.xlu0 %v438
  %v440 = vpop.xlane.xlu0 %439
  %v441 = vsel %vm119, %v429, 0.0
  %442 = vadd.xlane.f32.xlu0 %v441
  %v443 = vpop.xlane.xlu0 %442
  %v444 = vsel %vm119, %v432, 0.0
  %445 = vadd.xlane.f32.xlu0 %v444
  %v446 = vpop.xlane.xlu0 %445
  %v447 = vsel %vm119, %v434, 0.0
  %448 = vadd.xlane.f32.xlu0 %v447
  %v449 = vpop.xlane.xlu0 %448
  %v450 = vmul.f32 %v440, %v138
  %v451 = vmul.f32 %v443, %v138
  %v452 = vmul.f32 %v446, %v138
  %v453 = vmul.f32 %v449, %v138
  %v454 = vsub.f32 %v427, %v450
  %v455 = vsub.f32 %v429, %v451
  %v456 = vsub.f32 %v432, %v452
  %v457 = vsub.f32 %v434, %v453
  %v458 = vmul.f32 %v454, %v454
  %v459 = vmul.f32 %v455, %v455
  %v460 = vmul.f32 %v456, %v456
  %v461 = vmul.f32 %v457, %v457
  %v462 = vsel %vm119, %v458, 0.0
  %463 = vadd.xlane.f32.xlu0 %v462
  %v464 = vpop.xlane.xlu0 %463
  %v465 = vsel %vm119, %v459, 0.0
  %466 = vadd.xlane.f32.xlu0 %v465
  %v467 = vpop.xlane.xlu0 %466
  %v468 = vsel %vm119, %v460, 0.0
  %469 = vadd.xlane.f32.xlu0 %v468
  %v470 = vpop.xlane.xlu0 %469
  %v471 = vsel %vm119, %v461, 0.0
  %472 = vadd.xlane.f32.xlu0 %v471
  %v473 = vpop.xlane.xlu0 %472
  %v474 = vmul.f32 %v464, %v138
  %v475 = vmul.f32 %v467, %v138
  %v476 = vmul.f32 %v470, %v138
  %v477 = vmul.f32 %v473, %v138
  %v478 = vadd.f32 %v474, 1e-05
  %v479 = vadd.f32 %v475, 1e-05
  %v480 = vadd.f32 %v476, 1e-05
  %v481 = vadd.f32 %v477, 1e-05
  %v482 = vrsqrt.pop %v478
  %v483 = vmul.f32 %v482, %v478
  %v484 = vmul.f32 %v483, %v482
  %v485 = vmul.f32 0.5, %v484
  %v486 = vsub.f32 1.5, %v485
  %v487 = vmul.f32 %v482, %v486
  %vm488 = vweird.f32 %v478
  %vm489 = vweird.f32 %v482
  %vm490 = vmor %vm488, %vm489
  %v491 = vsel %vm490, %v482, %v487
  %v492 = vrsqrt.pop %v479
  %v493 = vmul.f32 %v492, %v479
  %v494 = vmul.f32 %v493, %v492
  %v495 = vmul.f32 0.5, %v494
  %v496 = vsub.f32 1.5, %v495
  %v497 = vmul.f32 %v492, %v496
  %vm498 = vweird.f32 %v479
  %vm499 = vweird.f32 %v492
  %vm500 = vmor %vm498, %vm499
  %v501 = vsel %vm500, %v492, %v497
  %v502 = vrsqrt.pop %v480
  %v503 = vmul.f32 %v502, %v480
  %v504 = vmul.f32 %v503, %v502
  %v505 = vmul.f32 0.5, %v504
  %v506 = vsub.f32 1.5, %v505
  %v507 = vmul.f32 %v502, %v506
  %vm508 = vweird.f32 %v480
  %vm509 = vweird.f32 %v502
  %vm510 = vmor %vm508, %vm509
  %v511 = vsel %vm510, %v502, %v507
  %v512 = vrsqrt.pop %v481
  %v513 = vmul.f32 %v512, %v481
  %v514 = vmul.f32 %v513, %v512
  %v515 = vmul.f32 0.5, %v514
  %v516 = vsub.f32 1.5, %v515
  %v517 = vmul.f32 %v512, %v516
  %vm518 = vweird.f32 %v481
  %vm519 = vweird.f32 %v512
  %vm520 = vmor %vm518, %vm519
  %v521 = vsel %vm520, %v512, %v517
  %v522 = vmul.f32 %v454, %v491
  %v523 = vmul.f32 %v455, %v501
  %v524 = vmul.f32 %v456, %v511
  %v525 = vmul.f32 %v457, %v521
  %v527 = vperm.slane %v436, 0
  %v529 = vmul.f32 %v522, %v527
  %v530 = vmul.f32 %v523, %v527
  %v531 = vmul.f32 %v524, %v527
  %v532 = vmul.f32 %v525, %v527
  %v534 = vperm.slane %v437, 0
  %v536 = vadd.f32 %v529, %v534
  %v537 = vadd.f32 %v530, %v534
  %v538 = vadd.f32 %v531, %v534
  %v539 = vadd.f32 %v532, %v534
  %v540 = vmul.f32 %v536, 0.5
  %v541 = vmul.f32 %v537, 0.5
  %v542 = vmul.f32 %v538, 0.5
  %v543 = vmul.f32 %v539, 0.5
  %v544 = vmul.f32 %v536, 0.70710677
  %v545 = vmul.f32 %v537, 0.70710677
  %v546 = vmul.f32 %v538, 0.70710677
  %v547 = vmul.f32 %v539, 0.70710677
  %vm548 = vcmp.ge.f32.partialorder %v544, 0.0
  %vm549 = vcmp.ge.f32.partialorder %v545, 0.0
  %vm550 = vcmp.ge.f32.partialorder %v546, 0.0
  %vm551 = vcmp.ge.f32.partialorder %v547, 0.0
  %v552 = vsel %vm548, 1.0, -1.0
  %v553 = vsel %vm549, 1.0, -1.0
  %v554 = vsel %vm550, 1.0, -1.0
  %v555 = vsel %vm551, 1.0, -1.0
  %v556 = vand.u32 2147483647, %v544
  %v557 = vand.u32 2147483647, %v545
  %v558 = vand.u32 2147483647, %v546
  %v559 = vand.u32 2147483647, %v547
  %v560 = vmul.f32 %v556, 0.3275911
  %v561 = vmul.f32 %v557, 0.3275911
  %v562 = vmul.f32 %v558, 0.3275911
  %v563 = vmul.f32 %v559, 0.3275911
  %v564 = vadd.f32 %v560, 1.0
  %v565 = vadd.f32 %v561, 1.0
  %v566 = vadd.f32 %v562, 1.0
  %v567 = vadd.f32 %v563, 1.0
  %v568 = vrcp.pop %v564
  %v569 = vmul.f32 %v564, %v568
  %v570 = vsub.f32 1.0, %v569
  %v571 = vmul.f32 %v568, %v570
  %v572 = vadd.f32 %v568, %v571
  %vm573 = vweird.f32 %v564
  %vm574 = vweird.f32 %v568
  %vm575 = vmor %vm573, %vm574
  %v576 = vsel %vm575, %v568, %v572
  %v577 = vand.u32 2147483647, %v564
  %vm578 = vcmp.eq.f32.partialorder %v577, 8.507059e+37
  %v579 = vand.u32 %v564, 2147483648
  %v580 = vor.u32 1.1754944e-38, %v579
  %v581 = vsel %vm578, %v580, %v576
  %v582 = vmul.f32 1.0, %v581
  %v583 = vrcp.pop %v565
  %v584 = vmul.f32 %v565, %v583
  %v585 = vsub.f32 1.0, %v584
  %v586 = vmul.f32 %v583, %v585
  %v587 = vadd.f32 %v583, %v586
  %vm588 = vweird.f32 %v565
  %vm589 = vweird.f32 %v583
  %vm590 = vmor %vm588, %vm589
  %v591 = vsel %vm590, %v583, %v587
  %v592 = vand.u32 2147483647, %v565
  %vm593 = vcmp.eq.f32.partialorder %v592, 8.507059e+37
  %v594 = vand.u32 %v565, 2147483648
  %v595 = vor.u32 1.1754944e-38, %v594
  %v596 = vsel %vm593, %v595, %v591
  %v597 = vmul.f32 1.0, %v596
  %v598 = vrcp.pop %v566
  %v599 = vmul.f32 %v566, %v598
  %v600 = vsub.f32 1.0, %v599
  %v601 = vmul.f32 %v598, %v600
  %v602 = vadd.f32 %v598, %v601
  %vm603 = vweird.f32 %v566
  %vm604 = vweird.f32 %v598
  %vm605 = vmor %vm603, %vm604
  %v606 = vsel %vm605, %v598, %v602
  %v607 = vand.u32 2147483647, %v566
  %vm608 = vcmp.eq.f32.partialorder %v607, 8.507059e+37
  %v609 = vand.u32 %v566, 2147483648
  %v610 = vor.u32 1.1754944e-38, %v609
  %v611 = vsel %vm608, %v610, %v606
  %v612 = vmul.f32 1.0, %v611
  %v613 = vrcp.pop %v567
  %v614 = vmul.f32 %v567, %v613
  %v615 = vsub.f32 1.0, %v614
  %v616 = vmul.f32 %v613, %v615
  %v617 = vadd.f32 %v613, %v616
  %vm618 = vweird.f32 %v567
  %vm619 = vweird.f32 %v613
  %vm620 = vmor %vm618, %vm619
  %v621 = vsel %vm620, %v613, %v617
  %v622 = vand.u32 2147483647, %v567
  %vm623 = vcmp.eq.f32.partialorder %v622, 8.507059e+37
  %v624 = vand.u32 %v567, 2147483648
  %v625 = vor.u32 1.1754944e-38, %v624
  %v626 = vsel %vm623, %v625, %v621
  %v627 = vmul.f32 1.0, %v626
  %v628 = vmul.f32 %v582, 1.0614054
  %v629 = vmul.f32 %v597, 1.0614054
  %v630 = vmul.f32 %v612, 1.0614054
  %v631 = vmul.f32 %v627, 1.0614054
  %v632 = vadd.f32 %v628, -1.4531521
  %v633 = vadd.f32 %v629, -1.4531521
  %v634 = vadd.f32 %v630, -1.4531521
  %v635 = vadd.f32 %v631, -1.4531521
  %v636 = vmul.f32 %v632, %v582
  %v637 = vmul.f32 %v633, %v597
  %v638 = vmul.f32 %v634, %v612
  %v639 = vmul.f32 %v635, %v627
  %v640 = vadd.f32 %v636, 1.4214138
  %v641 = vadd.f32 %v637, 1.4214138
  %v642 = vadd.f32 %v638, 1.4214138
  %v643 = vadd.f32 %v639, 1.4214138
  %v644 = vmul.f32 %v640, %v582
  %v645 = vmul.f32 %v641, %v597
  %v646 = vmul.f32 %v642, %v612
  %v647 = vmul.f32 %v643, %v627
  %v648 = vadd.f32 %v644, -0.28449672
  %v649 = vadd.f32 %v645, -0.28449672
  %v650 = vadd.f32 %v646, -0.28449672
  %v651 = vadd.f32 %v647, -0.28449672
  %v652 = vmul.f32 %v648, %v582
  %v653 = vmul.f32 %v649, %v597
  %v654 = vmul.f32 %v650, %v612
  %v655 = vmul.f32 %v651, %v627
  %v656 = vadd.f32 %v652, 0.2548296
  %v657 = vadd.f32 %v653, 0.2548296
  %v658 = vadd.f32 %v654, 0.2548296
  %v659 = vadd.f32 %v655, 0.2548296
  %v660 = vmul.f32 %v656, %v582
  %v661 = vmul.f32 %v657, %v597
  %v662 = vmul.f32 %v658, %v612
  %v663 = vmul.f32 %v659, %v627
  %v664 = vsub.f32 0.0, %v556
  %v665 = vsub.f32 0.0, %v557
  %v666 = vsub.f32 0.0, %v558
  %v667 = vsub.f32 0.0, %v559
  %v668 = vmul.f32 %v664, %v556
  %v669 = vmul.f32 %v665, %v557
  %v670 = vmul.f32 %v666, %v558
  %v671 = vmul.f32 %v667, %v559
  %v672 = vmul.f32 %v668, 1.442695
  %v673 = vpow.pop %v672
  %v674 = vmul.f32 %v669, 1.442695
  %v675 = vpow.pop %v674
  %v676 = vmul.f32 %v670, 1.442695
  %v677 = vpow.pop %v676
  %v678 = vmul.f32 %v671, 1.442695
  %v679 = vpow.pop %v678
  %v680 = vmul.f32 %v660, %v673
  %v681 = vmul.f32 %v661, %v675
  %v682 = vmul.f32 %v662, %v677
  %v683 = vmul.f32 %v663, %v679
  %v684 = vsub.f32 1.0, %v680
  %v685 = vsub.f32 1.0, %v681
  %v686 = vsub.f32 1.0, %v682
  %v687 = vsub.f32 1.0, %v683
  %v688 = vmul.f32 %v552, %v684
  %v689 = vmul.f32 %v553, %v685
  %v690 = vmul.f32 %v554, %v686
  %v691 = vmul.f32 %v555, %v687
  %v692 = vadd.f32 %v688, 1.0
  %v693 = vadd.f32 %v689, 1.0
  %v694 = vadd.f32 %v690, 1.0
  %v695 = vadd.f32 %v691, 1.0
  %v696 = vmul.f32 %v540, %v692
  %v697 = vmul.f32 %v541, %v693
  %v698 = vmul.f32 %v542, %v694
  %v699 = vmul.f32 %v543, %v695
  %700 = vst [vmem:[#allocation2] sm:$0xff] 0.0
  %701 = vst.msk [vmem:[#allocation2 + $0x8] sm:$0xff] %vm119, 0.0
  %702 = vst [vmem:[#allocation2 + $0x10] sm:$0xff] 0.0
  %703 = vst.msk [vmem:[#allocation2 + $0x18] sm:$0xff] %vm119, 0.0
  %704 = vst [vmem:[#allocation2 + $0x20] sm:$0xff] 0.0
  %705 = vst.msk [vmem:[#allocation2 + $0x28] sm:$0xff] %vm119, 0.0
  %706 = vst [vmem:[#allocation2 + $0x30] sm:$0xff] 0.0
  %707 = vst.msk [vmem:[#allocation2 + $0x38] sm:$0xff] %vm119, 0.0
  %v712 = vrot.slane %v696, 6
  %v713 = vrot.slane %v697, 6
  %v714 = vsel %vm94, %v712, %v713
  %v715 = vrot.slane %v698, 6
  %v716 = vrot.slane %v699, 6
  %v717 = vsel %vm94, %v715, %v716
  %vm722 = vcmask 261122
  %723 = vst.msk [vmem:[#allocation2] sm:$0xfc] %vm722, %v712
  %724 = vst.msk [vmem:[#allocation2 + $0x10] sm:$0xff] %vm119, %v714
  %725 = vst.msk [vmem:[#allocation2 + $0x20] sm:$0xfc] %vm722, %v715
  %726 = vst.msk [vmem:[#allocation2 + $0x30] sm:$0xff] %vm119, %v717
  %vm727 = vcmask 1040384
  %v728 = vrot.slane %v696, 7
  %v729 = vrot.slane %v697, 7
  %v730 = vsel %vm727, %v728, %v729
  %v731 = vrot.slane %v698, 7
  %v732 = vrot.slane %v699, 7
  %v733 = vsel %vm727, %v731, %v732
  %734 = vrot.lane.b32.xlu0 %v728, 32
  %v735 = vpop.permute.xlu0 %734
  %736 = vrot.lane.b32.xlu0 %v730, 32
  %v737 = vpop.permute.xlu0 %736
  %738 = vrot.lane.b32.xlu0 %v731, 32
  %v739 = vpop.permute.xlu0 %738
  %740 = vrot.lane.b32.xlu0 %v733, 32
  %v741 = vpop.permute.xlu0 %740
  %vm746 = vcmask 523521
  %747 = vst.msk [vmem:[#allocation2] sm:$0xfe] %vm746, %v735
  %vm748 = vcmask 523520
  %749 = vst.msk [vmem:[#allocation2 + $0x10] sm:$0xff] %vm748, %v737
  %750 = vst.msk [vmem:[#allocation2 + $0x20] sm:$0xfe] %vm746, %v739
  %751 = vst.msk [vmem:[#allocation2 + $0x30] sm:$0xff] %vm748, %v741
  %752 = vrot.lane.b32.xlu0 %v696, 64
  %v753 = vpop.permute.xlu0 %752
  %754 = vrot.lane.b32.xlu0 %v697, 64
  %v755 = vpop.permute.xlu0 %754
  %756 = vrot.lane.b32.xlu0 %v698, 64
  %v757 = vpop.permute.xlu0 %756
  %758 = vrot.lane.b32.xlu0 %v699, 64
  %v759 = vpop.permute.xlu0 %758
  %vm764 = vcmask 785920
  %765 = vst.msk [vmem:[#allocation2] sm:$0xff] %vm764, %v753
  %766 = vst.msk [vmem:[#allocation2 + $0x10] sm:$0xff] %vm764, %v755
  %767 = vst.msk [vmem:[#allocation2 + $0x20] sm:$0xff] %vm764, %v757
  %768 = vst.msk [vmem:[#allocation2 + $0x30] sm:$0xff] %vm764, %v759
  %vm769 = vcmask 1046528
  %v770 = vrot.slane %v696, 1
  %v771 = vrot.slane %v697, 1
  %v772 = vsel %vm769, %v770, %v771
  %v773 = vrot.slane %v698, 1
  %v774 = vrot.slane %v699, 1
  %v775 = vsel %vm769, %v773, %v774
  %776 = vrot.lane.b32.xlu0 %v772, 96
  %v777 = vpop.permute.xlu0 %776
  %778 = vrot.lane.b32.xlu0 %v771, 96
  %v779 = vpop.permute.xlu0 %778
  %780 = vrot.lane.b32.xlu0 %v775, 96
  %v781 = vpop.permute.xlu0 %780
  %782 = vrot.lane.b32.xlu0 %v774, 96
  %v783 = vpop.permute.xlu0 %782
  %vm788 = vcmask 1048320
  %789 = vst.msk [vmem:[#allocation2] sm:$0xff] %vm788, %v777
  %vm790 = vcmask 1047296
  %791 = vst.msk [vmem:[#allocation2 + $0x10] sm:$0x7f] %vm790, %v779
  %792 = vst.msk [vmem:[#allocation2 + $0x20] sm:$0xff] %vm788, %v781
  %793 = vst.msk [vmem:[#allocation2 + $0x30] sm:$0x7f] %vm790, %v783
  %vm794 = vcmask 1045504
  %v795 = vrot.slane %v696, 2
  %v796 = vrot.slane %v697, 2
  %v797 = vsel %vm794, %v795, %v796
  %v798 = vrot.slane %v698, 2
  %v799 = vrot.slane %v699, 2
  %v800 = vsel %vm794, %v798, %v799
  %805 = vst.msk [vmem:[#allocation2 + $0x8] sm:$0xff] %vm119, %v797
  %vm806 = vcmask 259072
  %807 = vst.msk [vmem:[#allocation2 + $0x18] sm:$0x3f] %vm806, %v796
  %808 = vst.msk [vmem:[#allocation2 + $0x28] sm:$0xff] %vm119, %v800
  %809 = vst.msk [vmem:[#allocation2 + $0x38] sm:$0x3f] %vm806, %v799
  %v810 = vld [vmem:[#allocation2] sm:$0xff]
  %v811 = vld [vmem:[#allocation2 + $0x8] sm:$0xff]
  %v812 = vld [vmem:[#allocation2 + $0x10] sm:$0xff]
  %v813 = vld [vmem:[#allocation2 + $0x18] sm:$0xff]
  %v814 = vld [vmem:[#allocation2 + $0x20] sm:$0xff]
  %v815 = vld [vmem:[#allocation2 + $0x28] sm:$0xff]
  %v816 = vld [vmem:[#allocation2 + $0x30] sm:$0xff]
  %v817 = vld [vmem:[#allocation2 + $0x38] sm:$0xff]
  %v818 = vpack.c.bf16 %v812, %v810
  %v819 = vpack.c.bf16 %v813, %v811
  %v820 = vpack.c.bf16 %v816, %v814
  %v821 = vpack.c.bf16 %v817, %v815
  %v822 = vld [vmem:[%s9] sm:$0xf]
  %v823 = vld [vmem:[%s9 + $0x4] sm:$0xf]
  %v824 = vld [vmem:[%s9 + $0x8] sm:$0xf]
  %v825 = vld [vmem:[%s9 + $0xc] sm:$0xf]
  %v826 = vld [vmem:[%s9 + $0x10] sm:$0xf]
  %v827 = vld [vmem:[%s9 + $0x14] sm:$0xf]
  %v828 = vld [vmem:[%s9 + $0x18] sm:$0xf]
  %v829 = vld [vmem:[%s9 + $0x1c] sm:$0xf]
  %v830 = vld [vmem:[%s9 + $0x20] sm:$0xf]
  %v831 = vld [vmem:[%s9 + $0x24] sm:$0xf]
  %v832 = vld [vmem:[%s9 + $0x28] sm:$0xf]
  %v833 = vld [vmem:[%s9 + $0x2c] sm:$0xf]
  %v834 = vld [vmem:[%s9 + $0x30] sm:$0xf]
  %v835 = vld [vmem:[%s9 + $0x34] sm:$0xf]
  %v836 = vld [vmem:[%s9 + $0x38] sm:$0xf]
  %v837 = vld [vmem:[%s9 + $0x3c] sm:$0xf]
  %v838 = vld [vmem:[%s9 + $0x40] sm:$0xf]
  %v839 = vld [vmem:[%s9 + $0x44] sm:$0xf]
  %v840 = vld [vmem:[%s9 + $0x48] sm:$0xf]
  %v841 = vld [vmem:[%s9 + $0x4c] sm:$0xf]
  %v842 = vld [vmem:[%s10] sm:$0x1]
  %v844 = vperm.slane %v842, 0
  %v866 = vunpack.c.l.b16 %v822
  %v867 = vunpack.c.l.b16 %v823
  %v868 = vunpack.c.l.b16 %v824
  %v869 = vunpack.c.l.b16 %v825
  %v870 = vunpack.c.l.b16 %v826
  %v871 = vunpack.c.l.b16 %v827
  %v872 = vunpack.c.l.b16 %v828
  %v873 = vunpack.c.l.b16 %v829
  %v874 = vunpack.c.l.b16 %v830
  %v875 = vunpack.c.l.b16 %v831
  %v876 = vunpack.c.l.b16 %v832
  %v877 = vunpack.c.l.b16 %v833
  %v878 = vunpack.c.l.b16 %v834
  %v879 = vunpack.c.l.b16 %v835
  %v880 = vunpack.c.l.b16 %v836
  %v881 = vunpack.c.l.b16 %v837
  %v882 = vunpack.c.l.b16 %v838
  %v883 = vunpack.c.l.b16 %v839
  %v884 = vunpack.c.l.b16 %v840
  %v885 = vunpack.c.l.b16 %v841
  %v886 = vpack.c.b16 %v867, %v866
  %v887 = vpack.c.b16 %v869, %v868
  %v888 = vpack.c.b16 %v871, %v870
  %v889 = vpack.c.b16 %v873, %v872
  %v890 = vpack.c.b16 %v875, %v874
  %v891 = vpack.c.b16 %v877, %v876
  %v892 = vpack.c.b16 %v879, %v878
  %v893 = vpack.c.b16 %v881, %v880
  %v894 = vpack.c.b16 %v883, %v882
  %v895 = vpack.c.b16 %v885, %v884
  %v907 = vsel %vm119, %v819, 0
  %v910 = vsel %vm119, %v821, 0
  %912 = vmatpush.bf16.msra.mxu0 %v893
  %913 = vmatpush.bf16.msra.mxu0 %v892
  %914 = vmatpush.bf16.msra.mxu0 %v891
  %915 = vmatpush.bf16.msra.mxu0 %v890
  %916 = vmatpush.bf16.msra.mxu0 %v889
  %917 = vmatpush.bf16.msra.mxu0 %v888
  %918 = vmatpush.bf16.msra.mxu0 %v887
  %919 = vmatpush.bf16.msra.mxu0 %v886
  %920 = vmatmul.bf16.gmra.mxu0 %v818
  %v921 = vpop.f32.mrf.mxu0
  %v922 = vadd.f32 %v844, %v921
  %v923 = vpop.f32.mrf.mxu0
  %v924 = vadd.f32 %v844, %v923
  %925 = vmatmul.bf16.gmra.mxu0 %v820
  %v926 = vpop.f32.mrf.mxu0
  %v927 = vadd.f32 %v844, %v926
  %v928 = vpop.f32.mrf.mxu0
  %v929 = vadd.f32 %v844, %v928
  %930 = vdwg.mxu0
  %931 = vmatpush.bf16.msra.mxu0 0
  %932 = vmatpush.bf16.msra.mxu0 0
  %933 = vmatpush.bf16.msra.mxu0 0
  %934 = vmatpush.bf16.msra.mxu0 0
  %935 = vmatpush.bf16.msra.mxu0 0
  %936 = vmatpush.bf16.msra.mxu0 0
  %937 = vmatpush.bf16.msra.mxu0 %v895
  %938 = vmatpush.bf16.msra.mxu0 %v894
  %939 = vmatmul.bf16.gmra.mxu0 %v907
  %v940 = vpop.f32.mrf.mxu0
  %v941 = vadd.f32 %v922, %v940
  %v942 = vpop.f32.mrf.mxu0
  %v943 = vadd.f32 %v924, %v942
  %944 = vmatmul.bf16.gmra.mxu0 %v910
  %v945 = vpop.f32.mrf.mxu0
  %v946 = vadd.f32 %v927, %v945
  %v947 = vpop.f32.mrf.mxu0
  %v948 = vadd.f32 %v929, %v947
  %949 = vdwg.mxu0
  %v950 = vld [vmem:[%s11] sm:$0x1]
  %v951 = vld [vmem:[%s12] sm:$0x1]
  %v952 = vsel %vm119, %v941, 0.0
  %953 = vadd.xlane.f32.xlu0 %v952
  %v954 = vpop.xlane.xlu0 %953
  %v955 = vsel %vm119, %v943, 0.0
  %956 = vadd.xlane.f32.xlu0 %v955
  %v957 = vpop.xlane.xlu0 %956
  %v958 = vsel %vm119, %v946, 0.0
  %959 = vadd.xlane.f32.xlu0 %v958
  %v960 = vpop.xlane.xlu0 %959
  %v961 = vsel %vm119, %v948, 0.0
  %962 = vadd.xlane.f32.xlu0 %v961
  %v963 = vpop.xlane.xlu0 %962
  %v964 = vmul.f32 %v954, %v138
  %v965 = vmul.f32 %v957, %v138
  %v966 = vmul.f32 %v960, %v138
  %v967 = vmul.f32 %v963, %v138
  %v968 = vsub.f32 %v941, %v964
  %v969 = vsub.f32 %v943, %v965
  %v970 = vsub.f32 %v946, %v966
  %v971 = vsub.f32 %v948, %v967
  %v972 = vmul.f32 %v968, %v968
  %v973 = vmul.f32 %v969, %v969
  %v974 = vmul.f32 %v970, %v970
  %v975 = vmul.f32 %v971, %v971
  %v976 = vsel %vm119, %v972, 0.0
  %977 = vadd.xlane.f32.xlu0 %v976
  %v978 = vpop.xlane.xlu0 %977
  %v979 = vsel %vm119, %v973, 0.0
  %980 = vadd.xlane.f32.xlu0 %v979
  %v981 = vpop.xlane.xlu0 %980
  %v982 = vsel %vm119, %v974, 0.0
  %983 = vadd.xlane.f32.xlu0 %v982
  %v984 = vpop.xlane.xlu0 %983
  %v985 = vsel %vm119, %v975, 0.0
  %986 = vadd.xlane.f32.xlu0 %v985
  %v987 = vpop.xlane.xlu0 %986
  %v988 = vmul.f32 %v978, %v138
  %v989 = vmul.f32 %v981, %v138
  %v990 = vmul.f32 %v984, %v138
  %v991 = vmul.f32 %v987, %v138
  %v992 = vadd.f32 %v988, 1e-05
  %v993 = vadd.f32 %v989, 1e-05
  %v994 = vadd.f32 %v990, 1e-05
  %v995 = vadd.f32 %v991, 1e-05
  %v996 = vrsqrt.pop %v992
  %v997 = vmul.f32 %v996, %v992
  %v998 = vmul.f32 %v997, %v996
  %v999 = vmul.f32 0.5, %v998
  %v1000 = vsub.f32 1.5, %v999
  %v1001 = vmul.f32 %v996, %v1000
  %vm1002 = vweird.f32 %v992
  %vm1003 = vweird.f32 %v996
  %vm1004 = vmor %vm1002, %vm1003
  %v1005 = vsel %vm1004, %v996, %v1001
  %v1006 = vrsqrt.pop %v993
  %v1007 = vmul.f32 %v1006, %v993
  %v1008 = vmul.f32 %v1007, %v1006
  %v1009 = vmul.f32 0.5, %v1008
  %v1010 = vsub.f32 1.5, %v1009
  %v1011 = vmul.f32 %v1006, %v1010
  %vm1012 = vweird.f32 %v993
  %vm1013 = vweird.f32 %v1006
  %vm1014 = vmor %vm1012, %vm1013
  %v1015 = vsel %vm1014, %v1006, %v1011
  %v1016 = vrsqrt.pop %v994
  %v1017 = vmul.f32 %v1016, %v994
  %v1018 = vmul.f32 %v1017, %v1016
  %v1019 = vmul.f32 0.5, %v1018
  %v1020 = vsub.f32 1.5, %v1019
  %v1021 = vmul.f32 %v1016, %v1020
  %vm1022 = vweird.f32 %v994
  %vm1023 = vweird.f32 %v1016
  %vm1024 = vmor %vm1022, %vm1023
  %v1025 = vsel %vm1024, %v1016, %v1021
  %v1026 = vrsqrt.pop %v995
  %v1027 = vmul.f32 %v1026, %v995
  %v1028 = vmul.f32 %v1027, %v1026
  %v1029 = vmul.f32 0.5, %v1028
  %v1030 = vsub.f32 1.5, %v1029
  %v1031 = vmul.f32 %v1026, %v1030
  %vm1032 = vweird.f32 %v995
  %vm1033 = vweird.f32 %v1026
  %vm1034 = vmor %vm1032, %vm1033
  %v1035 = vsel %vm1034, %v1026, %v1031
  %v1036 = vmul.f32 %v968, %v1005
  %v1037 = vmul.f32 %v969, %v1015
  %v1038 = vmul.f32 %v970, %v1025
  %v1039 = vmul.f32 %v971, %v1035
  %v1041 = vperm.slane %v950, 0
  %v1043 = vmul.f32 %v1036, %v1041
  %v1044 = vmul.f32 %v1037, %v1041
  %v1045 = vmul.f32 %v1038, %v1041
  %v1046 = vmul.f32 %v1039, %v1041
  %v1048 = vperm.slane %v951, 0
  %v1050 = vadd.f32 %v1043, %v1048
  %v1051 = vadd.f32 %v1044, %v1048
  %v1052 = vadd.f32 %v1045, %v1048
  %v1053 = vadd.f32 %v1046, %v1048
  %v1054 = vmul.f32 %v1050, 0.5
  %v1055 = vmul.f32 %v1051, 0.5
  %v1056 = vmul.f32 %v1052, 0.5
  %v1057 = vmul.f32 %v1053, 0.5
  %v1058 = vmul.f32 %v1050, 0.70710677
  %v1059 = vmul.f32 %v1051, 0.70710677
  %v1060 = vmul.f32 %v1052, 0.70710677
  %v1061 = vmul.f32 %v1053, 0.70710677
  %vm1062 = vcmp.ge.f32.partialorder %v1058, 0.0
  %vm1063 = vcmp.ge.f32.partialorder %v1059, 0.0
  %vm1064 = vcmp.ge.f32.partialorder %v1060, 0.0
  %vm1065 = vcmp.ge.f32.partialorder %v1061, 0.0
  %v1066 = vsel %vm1062, 1.0, -1.0
  %v1067 = vsel %vm1063, 1.0, -1.0
  %v1068 = vsel %vm1064, 1.0, -1.0
  %v1069 = vsel %vm1065, 1.0, -1.0
  %v1070 = vand.u32 2147483647, %v1058
  %v1071 = vand.u32 2147483647, %v1059
  %v1072 = vand.u32 2147483647, %v1060
  %v1073 = vand.u32 2147483647, %v1061
  %v1074 = vmul.f32 %v1070, 0.3275911
  %v1075 = vmul.f32 %v1071, 0.3275911
  %v1076 = vmul.f32 %v1072, 0.3275911
  %v1077 = vmul.f32 %v1073, 0.3275911
  %v1078 = vadd.f32 %v1074, 1.0
  %v1079 = vadd.f32 %v1075, 1.0
  %v1080 = vadd.f32 %v1076, 1.0
  %v1081 = vadd.f32 %v1077, 1.0
  %v1082 = vrcp.pop %v1078
  %v1083 = vmul.f32 %v1078, %v1082
  %v1084 = vsub.f32 1.0, %v1083
  %v1085 = vmul.f32 %v1082, %v1084
  %v1086 = vadd.f32 %v1082, %v1085
  %vm1087 = vweird.f32 %v1078
  %vm1088 = vweird.f32 %v1082
  %vm1089 = vmor %vm1087, %vm1088
  %v1090 = vsel %vm1089, %v1082, %v1086
  %v1091 = vand.u32 2147483647, %v1078
  %vm1092 = vcmp.eq.f32.partialorder %v1091, 8.507059e+37
  %v1093 = vand.u32 %v1078, 2147483648
  %v1094 = vor.u32 1.1754944e-38, %v1093
  %v1095 = vsel %vm1092, %v1094, %v1090
  %v1096 = vmul.f32 1.0, %v1095
  %v1097 = vrcp.pop %v1079
  %v1098 = vmul.f32 %v1079, %v1097
  %v1099 = vsub.f32 1.0, %v1098
  %v1100 = vmul.f32 %v1097, %v1099
  %v1101 = vadd.f32 %v1097, %v1100
  %vm1102 = vweird.f32 %v1079
  %vm1103 = vweird.f32 %v1097
  %vm1104 = vmor %vm1102, %vm1103
  %v1105 = vsel %vm1104, %v1097, %v1101
  %v1106 = vand.u32 2147483647, %v1079
  %vm1107 = vcmp.eq.f32.partialorder %v1106, 8.507059e+37
  %v1108 = vand.u32 %v1079, 2147483648
  %v1109 = vor.u32 1.1754944e-38, %v1108
  %v1110 = vsel %vm1107, %v1109, %v1105
  %v1111 = vmul.f32 1.0, %v1110
  %v1112 = vrcp.pop %v1080
  %v1113 = vmul.f32 %v1080, %v1112
  %v1114 = vsub.f32 1.0, %v1113
  %v1115 = vmul.f32 %v1112, %v1114
  %v1116 = vadd.f32 %v1112, %v1115
  %vm1117 = vweird.f32 %v1080
  %vm1118 = vweird.f32 %v1112
  %vm1119 = vmor %vm1117, %vm1118
  %v1120 = vsel %vm1119, %v1112, %v1116
  %v1121 = vand.u32 2147483647, %v1080
  %vm1122 = vcmp.eq.f32.partialorder %v1121, 8.507059e+37
  %v1123 = vand.u32 %v1080, 2147483648
  %v1124 = vor.u32 1.1754944e-38, %v1123
  %v1125 = vsel %vm1122, %v1124, %v1120
  %v1126 = vmul.f32 1.0, %v1125
  %v1127 = vrcp.pop %v1081
  %v1128 = vmul.f32 %v1081, %v1127
  %v1129 = vsub.f32 1.0, %v1128
  %v1130 = vmul.f32 %v1127, %v1129
  %v1131 = vadd.f32 %v1127, %v1130
  %vm1132 = vweird.f32 %v1081
  %vm1133 = vweird.f32 %v1127
  %vm1134 = vmor %vm1132, %vm1133
  %v1135 = vsel %vm1134, %v1127, %v1131
  %v1136 = vand.u32 2147483647, %v1081
  %vm1137 = vcmp.eq.f32.partialorder %v1136, 8.507059e+37
  %v1138 = vand.u32 %v1081, 2147483648
  %v1139 = vor.u32 1.1754944e-38, %v1138
  %v1140 = vsel %vm1137, %v1139, %v1135
  %v1141 = vmul.f32 1.0, %v1140
  %v1142 = vmul.f32 %v1096, 1.0614054
  %v1143 = vmul.f32 %v1111, 1.0614054
  %v1144 = vmul.f32 %v1126, 1.0614054
  %v1145 = vmul.f32 %v1141, 1.0614054
  %v1146 = vadd.f32 %v1142, -1.4531521
  %v1147 = vadd.f32 %v1143, -1.4531521
  %v1148 = vadd.f32 %v1144, -1.4531521
  %v1149 = vadd.f32 %v1145, -1.4531521
  %v1150 = vmul.f32 %v1146, %v1096
  %v1151 = vmul.f32 %v1147, %v1111
  %v1152 = vmul.f32 %v1148, %v1126
  %v1153 = vmul.f32 %v1149, %v1141
  %v1154 = vadd.f32 %v1150, 1.4214138
  %v1155 = vadd.f32 %v1151, 1.4214138
  %v1156 = vadd.f32 %v1152, 1.4214138
  %v1157 = vadd.f32 %v1153, 1.4214138
  %v1158 = vmul.f32 %v1154, %v1096
  %v1159 = vmul.f32 %v1155, %v1111
  %v1160 = vmul.f32 %v1156, %v1126
  %v1161 = vmul.f32 %v1157, %v1141
  %v1162 = vadd.f32 %v1158, -0.28449672
  %v1163 = vadd.f32 %v1159, -0.28449672
  %v1164 = vadd.f32 %v1160, -0.28449672
  %v1165 = vadd.f32 %v1161, -0.28449672
  %v1166 = vmul.f32 %v1162, %v1096
  %v1167 = vmul.f32 %v1163, %v1111
  %v1168 = vmul.f32 %v1164, %v1126
  %v1169 = vmul.f32 %v1165, %v1141
  %v1170 = vadd.f32 %v1166, 0.2548296
  %v1171 = vadd.f32 %v1167, 0.2548296
  %v1172 = vadd.f32 %v1168, 0.2548296
  %v1173 = vadd.f32 %v1169, 0.2548296
  %v1174 = vmul.f32 %v1170, %v1096
  %v1175 = vmul.f32 %v1171, %v1111
  %v1176 = vmul.f32 %v1172, %v1126
  %v1177 = vmul.f32 %v1173, %v1141
  %v1178 = vsub.f32 0.0, %v1070
  %v1179 = vsub.f32 0.0, %v1071
  %v1180 = vsub.f32 0.0, %v1072
  %v1181 = vsub.f32 0.0, %v1073
  %v1182 = vmul.f32 %v1178, %v1070
  %v1183 = vmul.f32 %v1179, %v1071
  %v1184 = vmul.f32 %v1180, %v1072
  %v1185 = vmul.f32 %v1181, %v1073
  %v1186 = vmul.f32 %v1182, 1.442695
  %v1187 = vpow.pop %v1186
  %v1188 = vmul.f32 %v1183, 1.442695
  %v1189 = vpow.pop %v1188
  %v1190 = vmul.f32 %v1184, 1.442695
  %v1191 = vpow.pop %v1190
  %v1192 = vmul.f32 %v1185, 1.442695
  %v1193 = vpow.pop %v1192
  %v1194 = vmul.f32 %v1174, %v1187
  %v1195 = vmul.f32 %v1175, %v1189
  %v1196 = vmul.f32 %v1176, %v1191
  %v1197 = vmul.f32 %v1177, %v1193
  %v1198 = vsub.f32 1.0, %v1194
  %v1199 = vsub.f32 1.0, %v1195
  %v1200 = vsub.f32 1.0, %v1196
  %v1201 = vsub.f32 1.0, %v1197
  %v1202 = vmul.f32 %v1066, %v1198
  %v1203 = vmul.f32 %v1067, %v1199
  %v1204 = vmul.f32 %v1068, %v1200
  %v1205 = vmul.f32 %v1069, %v1201
  %v1206 = vadd.f32 %v1202, 1.0
  %v1207 = vadd.f32 %v1203, 1.0
  %v1208 = vadd.f32 %v1204, 1.0
  %v1209 = vadd.f32 %v1205, 1.0
  %v1210 = vmul.f32 %v1054, %v1206
  %v1211 = vmul.f32 %v1055, %v1207
  %v1212 = vmul.f32 %v1056, %v1208
  %v1213 = vmul.f32 %v1057, %v1209
  %v1214 = vpack.c.bf16 %v1211, %v1210
  %v1215 = vpack.c.bf16 %v1213, %v1212
  %v1216 = vld [vmem:[%s13] sm:$0xf]
  %v1217 = vld [vmem:[%s13 + $0x4] sm:$0xf]
  %v1218 = vld [vmem:[%s13 + $0x8] sm:$0xf]
  %v1219 = vld [vmem:[%s13 + $0xc] sm:$0xf]
  %v1220 = vld [vmem:[%s14] sm:$0x1]
  %v1222 = vperm.slane %v1220, 0
  %v1228 = vunpack.c.l.b16 %v1216
  %v1229 = vunpack.c.l.b16 %v1217
  %v1230 = vunpack.c.l.b16 %v1218
  %v1231 = vunpack.c.l.b16 %v1219
  %v1232 = vpack.c.b16 %v1229, %v1228
  %v1233 = vpack.c.b16 %v1231, %v1230
  %v1237 = vsel %vm119, %v1214, 0
  %v1240 = vsel %vm119, %v1215, 0
  %1242 = vmatpush.bf16.msra.mxu0 0
  %1243 = vmatpush.bf16.msra.mxu0 0
  %1244 = vmatpush.bf16.msra.mxu0 0
  %1245 = vmatpush.bf16.msra.mxu0 0
  %1246 = vmatpush.bf16.msra.mxu0 0
  %1247 = vmatpush.bf16.msra.mxu0 0
  %1248 = vmatpush.bf16.msra.mxu0 %v1233
  %1249 = vmatpush.bf16.msra.mxu0 %v1232
  %1250 = vmatmul.bf16.gmra.mxu0 %v1237
  %v1251 = vpop.f32.mrf.mxu0
  %v1252 = vadd.f32 %v1222, %v1251
  %v1253 = vpop.f32.mrf.mxu0
  %v1254 = vadd.f32 %v1222, %v1253
  %1255 = vmatmul.bf16.gmra.mxu0 %v1240
  %v1256 = vpop.f32.mrf.mxu0
  %v1257 = vadd.f32 %v1222, %v1256
  %v1258 = vpop.f32.mrf.mxu0
  %v1259 = vadd.f32 %v1222, %v1258
  %1260 = vdwg.mxu0
  %v1261 = vadd.f32 %v108, %v1252
  %v1262 = vadd.f32 %v110, %v1254
  %v1263 = vadd.f32 %v113, %v1257
  %v1264 = vadd.f32 %v115, %v1259
  %s1265 = scalar_lea.vmem %s3, 1
  %v1266 = vld [vmem:[%s1265] sm:$0x1]
  %s1267 = scalar_lea.vmem %s4, 1
  %v1268 = vld [vmem:[%s1267] sm:$0x1]
  %v1269 = vsel %vm119, %v1261, 0.0
  %1270 = vadd.xlane.f32.xlu0 %v1269
  %v1271 = vpop.xlane.xlu0 %1270
  %v1272 = vsel %vm119, %v1262, 0.0
  %1273 = vadd.xlane.f32.xlu0 %v1272
  %v1274 = vpop.xlane.xlu0 %1273
  %v1275 = vsel %vm119, %v1263, 0.0
  %1276 = vadd.xlane.f32.xlu0 %v1275
  %v1277 = vpop.xlane.xlu0 %1276
  %v1278 = vsel %vm119, %v1264, 0.0
  %1279 = vadd.xlane.f32.xlu0 %v1278
  %v1280 = vpop.xlane.xlu0 %1279
  %v1281 = vmul.f32 %v1271, %v138
  %v1282 = vmul.f32 %v1274, %v138
  %v1283 = vmul.f32 %v1277, %v138
  %v1284 = vmul.f32 %v1280, %v138
  %v1285 = vsub.f32 %v1261, %v1281
  %v1286 = vsub.f32 %v1262, %v1282
  %v1287 = vsub.f32 %v1263, %v1283
  %v1288 = vsub.f32 %v1264, %v1284
  %v1289 = vmul.f32 %v1285, %v1285
  %v1290 = vmul.f32 %v1286, %v1286
  %v1291 = vmul.f32 %v1287, %v1287
  %v1292 = vmul.f32 %v1288, %v1288
  %v1293 = vsel %vm119, %v1289, 0.0
  %1294 = vadd.xlane.f32.xlu0 %v1293
  %v1295 = vpop.xlane.xlu0 %1294
  %v1296 = vsel %vm119, %v1290, 0.0
  %1297 = vadd.xlane.f32.xlu0 %v1296
  %v1298 = vpop.xlane.xlu0 %1297
  %v1299 = vsel %vm119, %v1291, 0.0
  %1300 = vadd.xlane.f32.xlu0 %v1299
  %v1301 = vpop.xlane.xlu0 %1300
  %v1302 = vsel %vm119, %v1292, 0.0
  %1303 = vadd.xlane.f32.xlu0 %v1302
  %v1304 = vpop.xlane.xlu0 %1303
  %v1305 = vmul.f32 %v1295, %v138
  %v1306 = vmul.f32 %v1298, %v138
  %v1307 = vmul.f32 %v1301, %v138
  %v1308 = vmul.f32 %v1304, %v138
  %v1309 = vadd.f32 %v1305, 1e-05
  %v1310 = vadd.f32 %v1306, 1e-05
  %v1311 = vadd.f32 %v1307, 1e-05
  %v1312 = vadd.f32 %v1308, 1e-05
  %v1313 = vrsqrt.pop %v1309
  %v1314 = vmul.f32 %v1313, %v1309
  %v1315 = vmul.f32 %v1314, %v1313
  %v1316 = vmul.f32 0.5, %v1315
  %v1317 = vsub.f32 1.5, %v1316
  %v1318 = vmul.f32 %v1313, %v1317
  %vm1319 = vweird.f32 %v1309
  %vm1320 = vweird.f32 %v1313
  %vm1321 = vmor %vm1319, %vm1320
  %v1322 = vsel %vm1321, %v1313, %v1318
  %v1323 = vrsqrt.pop %v1310
  %v1324 = vmul.f32 %v1323, %v1310
  %v1325 = vmul.f32 %v1324, %v1323
  %v1326 = vmul.f32 0.5, %v1325
  %v1327 = vsub.f32 1.5, %v1326
  %v1328 = vmul.f32 %v1323, %v1327
  %vm1329 = vweird.f32 %v1310
  %vm1330 = vweird.f32 %v1323
  %vm1331 = vmor %vm1329, %vm1330
  %v1332 = vsel %vm1331, %v1323, %v1328
  %v1333 = vrsqrt.pop %v1311
  %v1334 = vmul.f32 %v1333, %v1311
  %v1335 = vmul.f32 %v1334, %v1333
  %v1336 = vmul.f32 0.5, %v1335
  %v1337 = vsub.f32 1.5, %v1336
  %v1338 = vmul.f32 %v1333, %v1337
  %vm1339 = vweird.f32 %v1311
  %vm1340 = vweird.f32 %v1333
  %vm1341 = vmor %vm1339, %vm1340
  %v1342 = vsel %vm1341, %v1333, %v1338
  %v1343 = vrsqrt.pop %v1312
  %v1344 = vmul.f32 %v1343, %v1312
  %v1345 = vmul.f32 %v1344, %v1343
  %v1346 = vmul.f32 0.5, %v1345
  %v1347 = vsub.f32 1.5, %v1346
  %v1348 = vmul.f32 %v1343, %v1347
  %vm1349 = vweird.f32 %v1312
  %vm1350 = vweird.f32 %v1343
  %vm1351 = vmor %vm1349, %vm1350
  %v1352 = vsel %vm1351, %v1343, %v1348
  %v1353 = vmul.f32 %v1285, %v1322
  %v1354 = vmul.f32 %v1286, %v1332
  %v1355 = vmul.f32 %v1287, %v1342
  %v1356 = vmul.f32 %v1288, %v1352
  %v1358 = vperm.slane %v1266, 0
  %v1360 = vmul.f32 %v1353, %v1358
  %v1361 = vmul.f32 %v1354, %v1358
  %v1362 = vmul.f32 %v1355, %v1358
  %v1363 = vmul.f32 %v1356, %v1358
  %v1365 = vperm.slane %v1268, 0
  %v1367 = vadd.f32 %v1360, %v1365
  %v1368 = vadd.f32 %v1361, %v1365
  %v1369 = vadd.f32 %v1362, %v1365
  %v1370 = vadd.f32 %v1363, %v1365
  %v1371 = vmul.f32 %v1367, 0.5
  %v1372 = vmul.f32 %v1368, 0.5
  %v1373 = vmul.f32 %v1369, 0.5
  %v1374 = vmul.f32 %v1370, 0.5
  %v1375 = vmul.f32 %v1367, 0.70710677
  %v1376 = vmul.f32 %v1368, 0.70710677
  %v1377 = vmul.f32 %v1369, 0.70710677
  %v1378 = vmul.f32 %v1370, 0.70710677
  %vm1379 = vcmp.ge.f32.partialorder %v1375, 0.0
  %vm1380 = vcmp.ge.f32.partialorder %v1376, 0.0
  %vm1381 = vcmp.ge.f32.partialorder %v1377, 0.0
  %vm1382 = vcmp.ge.f32.partialorder %v1378, 0.0
  %v1383 = vsel %vm1379, 1.0, -1.0
  %v1384 = vsel %vm1380, 1.0, -1.0
  %v1385 = vsel %vm1381, 1.0, -1.0
  %v1386 = vsel %vm1382, 1.0, -1.0
  %v1387 = vand.u32 2147483647, %v1375
  %v1388 = vand.u32 2147483647, %v1376
  %v1389 = vand.u32 2147483647, %v1377
  %v1390 = vand.u32 2147483647, %v1378
  %v1391 = vmul.f32 %v1387, 0.3275911
  %v1392 = vmul.f32 %v1388, 0.3275911
  %v1393 = vmul.f32 %v1389, 0.3275911
  %v1394 = vmul.f32 %v1390, 0.3275911
  %v1395 = vadd.f32 %v1391, 1.0
  %v1396 = vadd.f32 %v1392, 1.0
  %v1397 = vadd.f32 %v1393, 1.0
  %v1398 = vadd.f32 %v1394, 1.0
  %v1399 = vrcp.pop %v1395
  %v1400 = vmul.f32 %v1395, %v1399
  %v1401 = vsub.f32 1.0, %v1400
  %v1402 = vmul.f32 %v1399, %v1401
  %v1403 = vadd.f32 %v1399, %v1402
  %vm1404 = vweird.f32 %v1395
  %vm1405 = vweird.f32 %v1399
  %vm1406 = vmor %vm1404, %vm1405
  %v1407 = vsel %vm1406, %v1399, %v1403
  %v1408 = vand.u32 2147483647, %v1395
  %vm1409 = vcmp.eq.f32.partialorder %v1408, 8.507059e+37
  %v1410 = vand.u32 %v1395, 2147483648
  %v1411 = vor.u32 1.1754944e-38, %v1410
  %v1412 = vsel %vm1409, %v1411, %v1407
  %v1413 = vmul.f32 1.0, %v1412
  %v1414 = vrcp.pop %v1396
  %v1415 = vmul.f32 %v1396, %v1414
  %v1416 = vsub.f32 1.0, %v1415
  %v1417 = vmul.f32 %v1414, %v1416
  %v1418 = vadd.f32 %v1414, %v1417
  %vm1419 = vweird.f32 %v1396
  %vm1420 = vweird.f32 %v1414
  %vm1421 = vmor %vm1419, %vm1420
  %v1422 = vsel %vm1421, %v1414, %v1418
  %v1423 = vand.u32 2147483647, %v1396
  %vm1424 = vcmp.eq.f32.partialorder %v1423, 8.507059e+37
  %v1425 = vand.u32 %v1396, 2147483648
  %v1426 = vor.u32 1.1754944e-38, %v1425
  %v1427 = vsel %vm1424, %v1426, %v1422
  %v1428 = vmul.f32 1.0, %v1427
  %v1429 = vrcp.pop %v1397
  %v1430 = vmul.f32 %v1397, %v1429
  %v1431 = vsub.f32 1.0, %v1430
  %v1432 = vmul.f32 %v1429, %v1431
  %v1433 = vadd.f32 %v1429, %v1432
  %vm1434 = vweird.f32 %v1397
  %vm1435 = vweird.f32 %v1429
  %vm1436 = vmor %vm1434, %vm1435
  %v1437 = vsel %vm1436, %v1429, %v1433
  %v1438 = vand.u32 2147483647, %v1397
  %vm1439 = vcmp.eq.f32.partialorder %v1438, 8.507059e+37
  %v1440 = vand.u32 %v1397, 2147483648
  %v1441 = vor.u32 1.1754944e-38, %v1440
  %v1442 = vsel %vm1439, %v1441, %v1437
  %v1443 = vmul.f32 1.0, %v1442
  %v1444 = vrcp.pop %v1398
  %v1445 = vmul.f32 %v1398, %v1444
  %v1446 = vsub.f32 1.0, %v1445
  %v1447 = vmul.f32 %v1444, %v1446
  %v1448 = vadd.f32 %v1444, %v1447
  %vm1449 = vweird.f32 %v1398
  %vm1450 = vweird.f32 %v1444
  %vm1451 = vmor %vm1449, %vm1450
  %v1452 = vsel %vm1451, %v1444, %v1448
  %v1453 = vand.u32 2147483647, %v1398
  %vm1454 = vcmp.eq.f32.partialorder %v1453, 8.507059e+37
  %v1455 = vand.u32 %v1398, 2147483648
  %v1456 = vor.u32 1.1754944e-38, %v1455
  %v1457 = vsel %vm1454, %v1456, %v1452
  %v1458 = vmul.f32 1.0, %v1457
  %v1459 = vmul.f32 %v1413, 1.0614054
  %v1460 = vmul.f32 %v1428, 1.0614054
  %v1461 = vmul.f32 %v1443, 1.0614054
  %v1462 = vmul.f32 %v1458, 1.0614054
  %v1463 = vadd.f32 %v1459, -1.4531521
  %v1464 = vadd.f32 %v1460, -1.4531521
  %v1465 = vadd.f32 %v1461, -1.4531521
  %v1466 = vadd.f32 %v1462, -1.4531521
  %v1467 = vmul.f32 %v1463, %v1413
  %v1468 = vmul.f32 %v1464, %v1428
  %v1469 = vmul.f32 %v1465, %v1443
  %v1470 = vmul.f32 %v1466, %v1458
  %v1471 = vadd.f32 %v1467, 1.4214138
  %v1472 = vadd.f32 %v1468, 1.4214138
  %v1473 = vadd.f32 %v1469, 1.4214138
  %v1474 = vadd.f32 %v1470, 1.4214138
  %v1475 = vmul.f32 %v1471, %v1413
  %v1476 = vmul.f32 %v1472, %v1428
  %v1477 = vmul.f32 %v1473, %v1443
  %v1478 = vmul.f32 %v1474, %v1458
  %v1479 = vadd.f32 %v1475, -0.28449672
  %v1480 = vadd.f32 %v1476, -0.28449672
  %v1481 = vadd.f32 %v1477, -0.28449672
  %v1482 = vadd.f32 %v1478, -0.28449672
  %v1483 = vmul.f32 %v1479, %v1413
  %v1484 = vmul.f32 %v1480, %v1428
  %v1485 = vmul.f32 %v1481, %v1443
  %v1486 = vmul.f32 %v1482, %v1458
  %v1487 = vadd.f32 %v1483, 0.2548296
  %v1488 = vadd.f32 %v1484, 0.2548296
  %v1489 = vadd.f32 %v1485, 0.2548296
  %v1490 = vadd.f32 %v1486, 0.2548296
  %v1491 = vmul.f32 %v1487, %v1413
  %v1492 = vmul.f32 %v1488, %v1428
  %v1493 = vmul.f32 %v1489, %v1443
  %v1494 = vmul.f32 %v1490, %v1458
  %v1495 = vsub.f32 0.0, %v1387
  %v1496 = vsub.f32 0.0, %v1388
  %v1497 = vsub.f32 0.0, %v1389
  %v1498 = vsub.f32 0.0, %v1390
  %v1499 = vmul.f32 %v1495, %v1387
  %v1500 = vmul.f32 %v1496, %v1388
  %v1501 = vmul.f32 %v1497, %v1389
  %v1502 = vmul.f32 %v1498, %v1390
  %v1503 = vmul.f32 %v1499, 1.442695
  %v1504 = vpow.pop %v1503
  %v1505 = vmul.f32 %v1500, 1.442695
  %v1506 = vpow.pop %v1505
  %v1507 = vmul.f32 %v1501, 1.442695
  %v1508 = vpow.pop %v1507
  %v1509 = vmul.f32 %v1502, 1.442695
  %v1510 = vpow.pop %v1509
  %v1511 = vmul.f32 %v1491, %v1504
  %v1512 = vmul.f32 %v1492, %v1506
  %v1513 = vmul.f32 %v1493, %v1508
  %v1514 = vmul.f32 %v1494, %v1510
  %v1515 = vsub.f32 1.0, %v1511
  %v1516 = vsub.f32 1.0, %v1512
  %v1517 = vsub.f32 1.0, %v1513
  %v1518 = vsub.f32 1.0, %v1514
  %v1519 = vmul.f32 %v1383, %v1515
  %v1520 = vmul.f32 %v1384, %v1516
  %v1521 = vmul.f32 %v1385, %v1517
  %v1522 = vmul.f32 %v1386, %v1518
  %v1523 = vadd.f32 %v1519, 1.0
  %v1524 = vadd.f32 %v1520, 1.0
  %v1525 = vadd.f32 %v1521, 1.0
  %v1526 = vadd.f32 %v1522, 1.0
  %v1527 = vmul.f32 %v1371, %v1523
  %v1528 = vmul.f32 %v1372, %v1524
  %v1529 = vmul.f32 %v1373, %v1525
  %v1530 = vmul.f32 %v1374, %v1526
  %v1531 = vpack.c.bf16 %v1528, %v1527
  %v1532 = vpack.c.bf16 %v1530, %v1529
  %s1533 = scalar_lea.vmem %s5, 16
  %v1534 = vld [vmem:[%s1533] sm:$0xf]
  %v1535 = vld [vmem:[%s1533 + $0x4] sm:$0xf]
  %v1536 = vld [vmem:[%s1533 + $0x8] sm:$0xf]
  %v1537 = vld [vmem:[%s1533 + $0xc] sm:$0xf]
  %s1538 = scalar_lea.vmem %s6, 1
  %v1539 = vld [vmem:[%s1538] sm:$0x1]
  %v1541 = vperm.slane %v1539, 0
  %v1547 = vunpack.c.l.b16 %v1534
  %v1548 = vunpack.c.l.b16 %v1535
  %v1549 = vunpack.c.l.b16 %v1536
  %v1550 = vunpack.c.l.b16 %v1537
  %v1551 = vpack.c.b16 %v1548, %v1547
  %v1552 = vpack.c.b16 %v1550, %v1549
  %v1556 = vsel %vm119, %v1531, 0
  %v1559 = vsel %vm119, %v1532, 0
  %1561 = vmatpush.bf16.msra.mxu0 0
  %1562 = vmatpush.bf16.msra.mxu0 0
  %1563 = vmatpush.bf16.msra.mxu0 0
  %1564 = vmatpush.bf16.msra.mxu0 0
  %1565 = vmatpush.bf16.msra.mxu0 0
  %1566 = vmatpush.bf16.msra.mxu0 0
  %1567 = vmatpush.bf16.msra.mxu0 %v1552
  %1568 = vmatpush.bf16.msra.mxu0 %v1551
  %1569 = vmatmul.bf16.gmra.mxu0 %v1556
  %v1570 = vpop.f32.mrf.mxu0
  %v1571 = vadd.f32 %v1541, %v1570
  %v1572 = vpop.f32.mrf.mxu0
  %v1573 = vadd.f32 %v1541, %v1572
  %1574 = vmatmul.bf16.gmra.mxu0 %v1559
  %v1575 = vpop.f32.mrf.mxu0
  %v1576 = vadd.f32 %v1541, %v1575
  %v1577 = vpop.f32.mrf.mxu0
  %v1578 = vadd.f32 %v1541, %v1577
  %1579 = vdwg.mxu0
  %s1580 = scalar_lea.vmem %s7, 1
  %v1581 = vld [vmem:[%s1580] sm:$0x1]
  %s1582 = scalar_lea.vmem %s8, 1
  %v1583 = vld [vmem:[%s1582] sm:$0x1]
  %v1584 = vsel %vm119, %v1571, 0.0
  %1585 = vadd.xlane.f32.xlu0 %v1584
  %v1586 = vpop.xlane.xlu0 %1585
  %v1587 = vsel %vm119, %v1573, 0.0
  %1588 = vadd.xlane.f32.xlu0 %v1587
  %v1589 = vpop.xlane.xlu0 %1588
  %v1590 = vsel %vm119, %v1576, 0.0
  %1591 = vadd.xlane.f32.xlu0 %v1590
  %v1592 = vpop.xlane.xlu0 %1591
  %v1593 = vsel %vm119, %v1578, 0.0
  %1594 = vadd.xlane.f32.xlu0 %v1593
  %v1595 = vpop.xlane.xlu0 %1594
  %v1596 = vmul.f32 %v1586, %v138
  %v1597 = vmul.f32 %v1589, %v138
  %v1598 = vmul.f32 %v1592, %v138
  %v1599 = vmul.f32 %v1595, %v138
  %v1600 = vsub.f32 %v1571, %v1596
  %v1601 = vsub.f32 %v1573, %v1597
  %v1602 = vsub.f32 %v1576, %v1598
  %v1603 = vsub.f32 %v1578, %v1599
  %v1604 = vmul.f32 %v1600, %v1600
  %v1605 = vmul.f32 %v1601, %v1601
  %v1606 = vmul.f32 %v1602, %v1602
  %v1607 = vmul.f32 %v1603, %v1603
  %v1608 = vsel %vm119, %v1604, 0.0
  %1609 = vadd.xlane.f32.xlu0 %v1608
  %v1610 = vpop.xlane.xlu0 %1609
  %v1611 = vsel %vm119, %v1605, 0.0
  %1612 = vadd.xlane.f32.xlu0 %v1611
  %v1613 = vpop.xlane.xlu0 %1612
  %v1614 = vsel %vm119, %v1606, 0.0
  %1615 = vadd.xlane.f32.xlu0 %v1614
  %v1616 = vpop.xlane.xlu0 %1615
  %v1617 = vsel %vm119, %v1607, 0.0
  %1618 = vadd.xlane.f32.xlu0 %v1617
  %v1619 = vpop.xlane.xlu0 %1618
  %v1620 = vmul.f32 %v1610, %v138
  %v1621 = vmul.f32 %v1613, %v138
  %v1622 = vmul.f32 %v1616, %v138
  %v1623 = vmul.f32 %v1619, %v138
  %v1624 = vadd.f32 %v1620, 1e-05
  %v1625 = vadd.f32 %v1621, 1e-05
  %v1626 = vadd.f32 %v1622, 1e-05
  %v1627 = vadd.f32 %v1623, 1e-05
  %v1628 = vrsqrt.pop %v1624
  %v1629 = vmul.f32 %v1628, %v1624
  %v1630 = vmul.f32 %v1629, %v1628
  %v1631 = vmul.f32 0.5, %v1630
  %v1632 = vsub.f32 1.5, %v1631
  %v1633 = vmul.f32 %v1628, %v1632
  %vm1634 = vweird.f32 %v1624
  %vm1635 = vweird.f32 %v1628
  %vm1636 = vmor %vm1634, %vm1635
  %v1637 = vsel %vm1636, %v1628, %v1633
  %v1638 = vrsqrt.pop %v1625
  %v1639 = vmul.f32 %v1638, %v1625
  %v1640 = vmul.f32 %v1639, %v1638
  %v1641 = vmul.f32 0.5, %v1640
  %v1642 = vsub.f32 1.5, %v1641
  %v1643 = vmul.f32 %v1638, %v1642
  %vm1644 = vweird.f32 %v1625
  %vm1645 = vweird.f32 %v1638
  %vm1646 = vmor %vm1644, %vm1645
  %v1647 = vsel %vm1646, %v1638, %v1643
  %v1648 = vrsqrt.pop %v1626
  %v1649 = vmul.f32 %v1648, %v1626
  %v1650 = vmul.f32 %v1649, %v1648
  %v1651 = vmul.f32 0.5, %v1650
  %v1652 = vsub.f32 1.5, %v1651
  %v1653 = vmul.f32 %v1648, %v1652
  %vm1654 = vweird.f32 %v1626
  %vm1655 = vweird.f32 %v1648
  %vm1656 = vmor %vm1654, %vm1655
  %v1657 = vsel %vm1656, %v1648, %v1653
  %v1658 = vrsqrt.pop %v1627
  %v1659 = vmul.f32 %v1658, %v1627
  %v1660 = vmul.f32 %v1659, %v1658
  %v1661 = vmul.f32 0.5, %v1660
  %v1662 = vsub.f32 1.5, %v1661
  %v1663 = vmul.f32 %v1658, %v1662
  %vm1664 = vweird.f32 %v1627
  %vm1665 = vweird.f32 %v1658
  %vm1666 = vmor %vm1664, %vm1665
  %v1667 = vsel %vm1666, %v1658, %v1663
  %v1668 = vmul.f32 %v1600, %v1637
  %v1669 = vmul.f32 %v1601, %v1647
  %v1670 = vmul.f32 %v1602, %v1657
  %v1671 = vmul.f32 %v1603, %v1667
  %v1673 = vperm.slane %v1581, 0
  %v1675 = vmul.f32 %v1668, %v1673
  %v1676 = vmul.f32 %v1669, %v1673
  %v1677 = vmul.f32 %v1670, %v1673
  %v1678 = vmul.f32 %v1671, %v1673
  %v1680 = vperm.slane %v1583, 0
  %v1682 = vadd.f32 %v1675, %v1680
  %v1683 = vadd.f32 %v1676, %v1680
  %v1684 = vadd.f32 %v1677, %v1680
  %v1685 = vadd.f32 %v1678, %v1680
  %v1686 = vmul.f32 %v1682, 0.5
  %v1687 = vmul.f32 %v1683, 0.5
  %v1688 = vmul.f32 %v1684, 0.5
  %v1689 = vmul.f32 %v1685, 0.5
  %v1690 = vmul.f32 %v1682, 0.70710677
  %v1691 = vmul.f32 %v1683, 0.70710677
  %v1692 = vmul.f32 %v1684, 0.70710677
  %v1693 = vmul.f32 %v1685, 0.70710677
  %vm1694 = vcmp.ge.f32.partialorder %v1690, 0.0
  %vm1695 = vcmp.ge.f32.partialorder %v1691, 0.0
  %vm1696 = vcmp.ge.f32.partialorder %v1692, 0.0
  %vm1697 = vcmp.ge.f32.partialorder %v1693, 0.0
  %v1698 = vsel %vm1694, 1.0, -1.0
  %v1699 = vsel %vm1695, 1.0, -1.0
  %v1700 = vsel %vm1696, 1.0, -1.0
  %v1701 = vsel %vm1697, 1.0, -1.0
  %v1702 = vand.u32 2147483647, %v1690
  %v1703 = vand.u32 2147483647, %v1691
  %v1704 = vand.u32 2147483647, %v1692
  %v1705 = vand.u32 2147483647, %v1693
  %v1706 = vmul.f32 %v1702, 0.3275911
  %v1707 = vmul.f32 %v1703, 0.3275911
  %v1708 = vmul.f32 %v1704, 0.3275911
  %v1709 = vmul.f32 %v1705, 0.3275911
  %v1710 = vadd.f32 %v1706, 1.0
  %v1711 = vadd.f32 %v1707, 1.0
  %v1712 = vadd.f32 %v1708, 1.0
  %v1713 = vadd.f32 %v1709, 1.0
  %v1714 = vrcp.pop %v1710
  %v1715 = vmul.f32 %v1710, %v1714
  %v1716 = vsub.f32 1.0, %v1715
  %v1717 = vmul.f32 %v1714, %v1716
  %v1718 = vadd.f32 %v1714, %v1717
  %vm1719 = vweird.f32 %v1710
  %vm1720 = vweird.f32 %v1714
  %vm1721 = vmor %vm1719, %vm1720
  %v1722 = vsel %vm1721, %v1714, %v1718
  %v1723 = vand.u32 2147483647, %v1710
  %vm1724 = vcmp.eq.f32.partialorder %v1723, 8.507059e+37
  %v1725 = vand.u32 %v1710, 2147483648
  %v1726 = vor.u32 1.1754944e-38, %v1725
  %v1727 = vsel %vm1724, %v1726, %v1722
  %v1728 = vmul.f32 1.0, %v1727
  %v1729 = vrcp.pop %v1711
  %v1730 = vmul.f32 %v1711, %v1729
  %v1731 = vsub.f32 1.0, %v1730
  %v1732 = vmul.f32 %v1729, %v1731
  %v1733 = vadd.f32 %v1729, %v1732
  %vm1734 = vweird.f32 %v1711
  %vm1735 = vweird.f32 %v1729
  %vm1736 = vmor %vm1734, %vm1735
  %v1737 = vsel %vm1736, %v1729, %v1733
  %v1738 = vand.u32 2147483647, %v1711
  %vm1739 = vcmp.eq.f32.partialorder %v1738, 8.507059e+37
  %v1740 = vand.u32 %v1711, 2147483648
  %v1741 = vor.u32 1.1754944e-38, %v1740
  %v1742 = vsel %vm1739, %v1741, %v1737
  %v1743 = vmul.f32 1.0, %v1742
  %v1744 = vrcp.pop %v1712
  %v1745 = vmul.f32 %v1712, %v1744
  %v1746 = vsub.f32 1.0, %v1745
  %v1747 = vmul.f32 %v1744, %v1746
  %v1748 = vadd.f32 %v1744, %v1747
  %vm1749 = vweird.f32 %v1712
  %vm1750 = vweird.f32 %v1744
  %vm1751 = vmor %vm1749, %vm1750
  %v1752 = vsel %vm1751, %v1744, %v1748
  %v1753 = vand.u32 2147483647, %v1712
  %vm1754 = vcmp.eq.f32.partialorder %v1753, 8.507059e+37
  %v1755 = vand.u32 %v1712, 2147483648
  %v1756 = vor.u32 1.1754944e-38, %v1755
  %v1757 = vsel %vm1754, %v1756, %v1752
  %v1758 = vmul.f32 1.0, %v1757
  %v1759 = vrcp.pop %v1713
  %v1760 = vmul.f32 %v1713, %v1759
  %v1761 = vsub.f32 1.0, %v1760
  %v1762 = vmul.f32 %v1759, %v1761
  %v1763 = vadd.f32 %v1759, %v1762
  %vm1764 = vweird.f32 %v1713
  %vm1765 = vweird.f32 %v1759
  %vm1766 = vmor %vm1764, %vm1765
  %v1767 = vsel %vm1766, %v1759, %v1763
  %v1768 = vand.u32 2147483647, %v1713
  %vm1769 = vcmp.eq.f32.partialorder %v1768, 8.507059e+37
  %v1770 = vand.u32 %v1713, 2147483648
  %v1771 = vor.u32 1.1754944e-38, %v1770
  %v1772 = vsel %vm1769, %v1771, %v1767
  %v1773 = vmul.f32 1.0, %v1772
  %v1774 = vmul.f32 %v1728, 1.0614054
  %v1775 = vmul.f32 %v1743, 1.0614054
  %v1776 = vmul.f32 %v1758, 1.0614054
  %v1777 = vmul.f32 %v1773, 1.0614054
  %v1778 = vadd.f32 %v1774, -1.4531521
  %v1779 = vadd.f32 %v1775, -1.4531521
  %v1780 = vadd.f32 %v1776, -1.4531521
  %v1781 = vadd.f32 %v1777, -1.4531521
  %v1782 = vmul.f32 %v1778, %v1728
  %v1783 = vmul.f32 %v1779, %v1743
  %v1784 = vmul.f32 %v1780, %v1758
  %v1785 = vmul.f32 %v1781, %v1773
  %v1786 = vadd.f32 %v1782, 1.4214138
  %v1787 = vadd.f32 %v1783, 1.4214138
  %v1788 = vadd.f32 %v1784, 1.4214138
  %v1789 = vadd.f32 %v1785, 1.4214138
  %v1790 = vmul.f32 %v1786, %v1728
  %v1791 = vmul.f32 %v1787, %v1743
  %v1792 = vmul.f32 %v1788, %v1758
  %v1793 = vmul.f32 %v1789, %v1773
  %v1794 = vadd.f32 %v1790, -0.28449672
  %v1795 = vadd.f32 %v1791, -0.28449672
  %v1796 = vadd.f32 %v1792, -0.28449672
  %v1797 = vadd.f32 %v1793, -0.28449672
  %v1798 = vmul.f32 %v1794, %v1728
  %v1799 = vmul.f32 %v1795, %v1743
  %v1800 = vmul.f32 %v1796, %v1758
  %v1801 = vmul.f32 %v1797, %v1773
  %v1802 = vadd.f32 %v1798, 0.2548296
  %v1803 = vadd.f32 %v1799, 0.2548296
  %v1804 = vadd.f32 %v1800, 0.2548296
  %v1805 = vadd.f32 %v1801, 0.2548296
  %v1806 = vmul.f32 %v1802, %v1728
  %v1807 = vmul.f32 %v1803, %v1743
  %v1808 = vmul.f32 %v1804, %v1758
  %v1809 = vmul.f32 %v1805, %v1773
  %v1810 = vsub.f32 0.0, %v1702
  %v1811 = vsub.f32 0.0, %v1703
  %v1812 = vsub.f32 0.0, %v1704
  %v1813 = vsub.f32 0.0, %v1705
  %v1814 = vmul.f32 %v1810, %v1702
  %v1815 = vmul.f32 %v1811, %v1703
  %v1816 = vmul.f32 %v1812, %v1704
  %v1817 = vmul.f32 %v1813, %v1705
  %v1818 = vmul.f32 %v1814, 1.442695
  %v1819 = vpow.pop %v1818
  %v1820 = vmul.f32 %v1815, 1.442695
  %v1821 = vpow.pop %v1820
  %v1822 = vmul.f32 %v1816, 1.442695
  %v1823 = vpow.pop %v1822
  %v1824 = vmul.f32 %v1817, 1.442695
  %v1825 = vpow.pop %v1824
  %v1826 = vmul.f32 %v1806, %v1819
  %v1827 = vmul.f32 %v1807, %v1821
  %v1828 = vmul.f32 %v1808, %v1823
  %v1829 = vmul.f32 %v1809, %v1825
  %v1830 = vsub.f32 1.0, %v1826
  %v1831 = vsub.f32 1.0, %v1827
  %v1832 = vsub.f32 1.0, %v1828
  %v1833 = vsub.f32 1.0, %v1829
  %v1834 = vmul.f32 %v1698, %v1830
  %v1835 = vmul.f32 %v1699, %v1831
  %v1836 = vmul.f32 %v1700, %v1832
  %v1837 = vmul.f32 %v1701, %v1833
  %v1838 = vadd.f32 %v1834, 1.0
  %v1839 = vadd.f32 %v1835, 1.0
  %v1840 = vadd.f32 %v1836, 1.0
  %v1841 = vadd.f32 %v1837, 1.0
  %v1842 = vmul.f32 %v1686, %v1838
  %v1843 = vmul.f32 %v1687, %v1839
  %v1844 = vmul.f32 %v1688, %v1840
  %v1845 = vmul.f32 %v1689, %v1841
  %1846 = vst [vmem:[#allocation2] sm:$0xff] 0.0
  %1847 = vst.msk [vmem:[#allocation2 + $0x8] sm:$0xff] %vm119, 0.0
  %1848 = vst [vmem:[#allocation2 + $0x10] sm:$0xff] 0.0
  %1849 = vst.msk [vmem:[#allocation2 + $0x18] sm:$0xff] %vm119, 0.0
  %1850 = vst [vmem:[#allocation2 + $0x20] sm:$0xff] 0.0
  %1851 = vst.msk [vmem:[#allocation2 + $0x28] sm:$0xff] %vm119, 0.0
  %1852 = vst [vmem:[#allocation2 + $0x30] sm:$0xff] 0.0
  %1853 = vst.msk [vmem:[#allocation2 + $0x38] sm:$0xff] %vm119, 0.0
  %vm1858 = vcmask 1043456
  %v1859 = vrot.slane %v1842, 4
  %v1860 = vrot.slane %v1843, 4
  %v1861 = vsel %vm1858, %v1859, %v1860
  %v1862 = vrot.slane %v1844, 4
  %v1863 = vrot.slane %v1845, 4
  %v1864 = vsel %vm1858, %v1862, %v1863
  %vm1869 = vcmask 261124
  %1870 = vst.msk [vmem:[#allocation2] sm:$0xf0] %vm1869, %v1859
  %1871 = vst.msk [vmem:[#allocation2 + $0x10] sm:$0xff] %vm119, %v1861
  %1872 = vst.msk [vmem:[#allocation2 + $0x20] sm:$0xf0] %vm1869, %v1862
  %1873 = vst.msk [vmem:[#allocation2 + $0x30] sm:$0xff] %vm119, %v1864
  %v1874 = vrot.slane %v1842, 6
  %v1875 = vrot.slane %v1843, 6
  %v1876 = vsel %vm94, %v1874, %v1875
  %v1877 = vrot.slane %v1844, 6
  %v1878 = vrot.slane %v1845, 6
  %v1879 = vsel %vm94, %v1877, %v1878
  %1880 = vrot.lane.b32.xlu0 %v1874, 32
  %v1881 = vpop.permute.xlu0 %1880
  %1882 = vrot.lane.b32.xlu0 %v1876, 32
  %v1883 = vpop.permute.xlu0 %1882
  %1884 = vrot.lane.b32.xlu0 %v1877, 32
  %v1885 = vpop.permute.xlu0 %1884
  %1886 = vrot.lane.b32.xlu0 %v1879, 32
  %v1887 = vpop.permute.xlu0 %1886
  %vm1892 = vcmask 523522
  %1893 = vst.msk [vmem:[#allocation2] sm:$0xfc] %vm1892, %v1881
  %1894 = vst.msk [vmem:[#allocation2 + $0x10] sm:$0xff] %vm748, %v1883
  %1895 = vst.msk [vmem:[#allocation2 + $0x20] sm:$0xfc] %vm1892, %v1885
  %1896 = vst.msk [vmem:[#allocation2 + $0x30] sm:$0xff] %vm748, %v1887
  %1897 = vrot.lane.b32.xlu0 %v1842, 64
  %v1898 = vpop.permute.xlu0 %1897
  %1899 = vrot.lane.b32.xlu0 %v1843, 64
  %v1900 = vpop.permute.xlu0 %1899
  %1901 = vrot.lane.b32.xlu0 %v1844, 64
  %v1902 = vpop.permute.xlu0 %1901
  %1903 = vrot.lane.b32.xlu0 %v1845, 64
  %v1904 = vpop.permute.xlu0 %1903
  %1909 = vst.msk [vmem:[#allocation2] sm:$0xff] %vm764, %v1898
  %1910 = vst.msk [vmem:[#allocation2 + $0x10] sm:$0xff] %vm764, %v1900
  %1911 = vst.msk [vmem:[#allocation2 + $0x20] sm:$0xff] %vm764, %v1902
  %1912 = vst.msk [vmem:[#allocation2 + $0x30] sm:$0xff] %vm764, %v1904
  %v1913 = vrot.slane %v1842, 2
  %v1914 = vrot.slane %v1843, 2
  %v1915 = vsel %vm794, %v1913, %v1914
  %v1916 = vrot.slane %v1844, 2
  %v1917 = vrot.slane %v1845, 2
  %v1918 = vsel %vm794, %v1916, %v1917
  %1919 = vrot.lane.b32.xlu0 %v1915, 96
  %v1920 = vpop.permute.xlu0 %1919
  %1921 = vrot.lane.b32.xlu0 %v1914, 96
  %v1922 = vpop.permute.xlu0 %1921
  %1923 = vrot.lane.b32.xlu0 %v1918, 96
  %v1924 = vpop.permute.xlu0 %1923
  %1925 = vrot.lane.b32.xlu0 %v1917, 96
  %v1926 = vpop.permute.xlu0 %1925
  %1931 = vst.msk [vmem:[#allocation2] sm:$0xff] %vm788, %v1920
  %vm1932 = vcmask 1046272
  %1933 = vst.msk [vmem:[#allocation2 + $0x10] sm:$0x3f] %vm1932, %v1922
  %1934 = vst.msk [vmem:[#allocation2 + $0x20] sm:$0xff] %vm788, %v1924
  %1935 = vst.msk [vmem:[#allocation2 + $0x30] sm:$0x3f] %vm1932, %v1926
  %1938 = vst.msk [vmem:[#allocation2 + $0x8] sm:$0xff] %vm119, %v1861
  %vm1939 = vcmask 257024
  %1940 = vst.msk [vmem:[#allocation2 + $0x18] sm:$0xf] %vm1939, %v1860
  %1941 = vst.msk [vmem:[#allocation2 + $0x28] sm:$0xff] %vm119, %v1864
  %1942 = vst.msk [vmem:[#allocation2 + $0x38] sm:$0xf] %vm1939, %v1863
  %v1943 = vld [vmem:[#allocation2] sm:$0xff]
  %v1944 = vld [vmem:[#allocation2 + $0x8] sm:$0xff]
  %v1945 = vld [vmem:[#allocation2 + $0x10] sm:$0xff]
  %v1946 = vld [vmem:[#allocation2 + $0x18] sm:$0xff]
  %v1947 = vld [vmem:[#allocation2 + $0x20] sm:$0xff]
  %v1948 = vld [vmem:[#allocation2 + $0x28] sm:$0xff]
  %v1949 = vld [vmem:[#allocation2 + $0x30] sm:$0xff]
  %v1950 = vld [vmem:[#allocation2 + $0x38] sm:$0xff]
  %v1951 = vpack.c.bf16 %v1945, %v1943
  %v1952 = vpack.c.bf16 %v1946, %v1944
  %v1953 = vpack.c.bf16 %v1949, %v1947
  %v1954 = vpack.c.bf16 %v1950, %v1948
  %s1955 = scalar_lea.vmem %s9, 80
  %v1956 = vld [vmem:[%s1955] sm:$0xf]
  %v1957 = vld [vmem:[%s1955 + $0x4] sm:$0xf]
  %v1958 = vld [vmem:[%s1955 + $0x8] sm:$0xf]
  %v1959 = vld [vmem:[%s1955 + $0xc] sm:$0xf]
  %v1960 = vld [vmem:[%s1955 + $0x10] sm:$0xf]
  %v1961 = vld [vmem:[%s1955 + $0x14] sm:$0xf]
  %v1962 = vld [vmem:[%s1955 + $0x18] sm:$0xf]
  %v1963 = vld [vmem:[%s1955 + $0x1c] sm:$0xf]
  %v1964 = vld [vmem:[%s1955 + $0x20] sm:$0xf]
  %v1965 = vld [vmem:[%s1955 + $0x24] sm:$0xf]
  %v1966 = vld [vmem:[%s1955 + $0x28] sm:$0xf]
  %v1967 = vld [vmem:[%s1955 + $0x2c] sm:$0xf]
  %v1968 = vld [vmem:[%s1955 + $0x30] sm:$0xf]
  %v1969 = vld [vmem:[%s1955 + $0x34] sm:$0xf]
  %v1970 = vld [vmem:[%s1955 + $0x38] sm:$0xf]
  %v1971 = vld [vmem:[%s1955 + $0x3c] sm:$0xf]
  %v1972 = vld [vmem:[%s1955 + $0x40] sm:$0xf]
  %v1973 = vld [vmem:[%s1955 + $0x44] sm:$0xf]
  %v1974 = vld [vmem:[%s1955 + $0x48] sm:$0xf]
  %v1975 = vld [vmem:[%s1955 + $0x4c] sm:$0xf]
  %s1976 = scalar_lea.vmem %s10, 1
  %v1977 = vld [vmem:[%s1976] sm:$0x1]
  %v1979 = vperm.slane %v1977, 0
  %v2001 = vunpack.c.l.b16 %v1956
  %v2002 = vunpack.c.l.b16 %v1957
  %v2003 = vunpack.c.l.b16 %v1958
  %v2004 = vunpack.c.l.b16 %v1959
  %v2005 = vunpack.c.l.b16 %v1960
  %v2006 = vunpack.c.l.b16 %v1961
  %v2007 = vunpack.c.l.b16 %v1962
  %v2008 = vunpack.c.l.b16 %v1963
  %v2009 = vunpack.c.l.b16 %v1964
  %v2010 = vunpack.c.l.b16 %v1965
  %v2011 = vunpack.c.l.b16 %v1966
  %v2012 = vunpack.c.l.b16 %v1967
  %v2013 = vunpack.c.l.b16 %v1968
  %v2014 = vunpack.c.l.b16 %v1969
  %v2015 = vunpack.c.l.b16 %v1970
  %v2016 = vunpack.c.l.b16 %v1971
  %v2017 = vunpack.c.l.b16 %v1972
  %v2018 = vunpack.c.l.b16 %v1973
  %v2019 = vunpack.c.l.b16 %v1974
  %v2020 = vunpack.c.l.b16 %v1975
  %v2021 = vpack.c.b16 %v2002, %v2001
  %v2022 = vpack.c.b16 %v2004, %v2003
  %v2023 = vpack.c.b16 %v2006, %v2005
  %v2024 = vpack.c.b16 %v2008, %v2007
  %v2025 = vpack.c.b16 %v2010, %v2009
  %v2026 = vpack.c.b16 %v2012, %v2011
  %v2027 = vpack.c.b16 %v2014, %v2013
  %v2028 = vpack.c.b16 %v2016, %v2015
  %v2029 = vpack.c.b16 %v2018, %v2017
  %v2030 = vpack.c.b16 %v2020, %v2019
  %v2042 = vsel %vm119, %v1952, 0
  %v2045 = vsel %vm119, %v1954, 0
  %2047 = vmatpush.bf16.msra.mxu0 %v2028
  %2048 = vmatpush.bf16.msra.mxu0 %v2027
  %2049 = vmatpush.bf16.msra.mxu0 %v2026
  %2050 = vmatpush.bf16.msra.mxu0 %v2025
  %2051 = vmatpush.bf16.msra.mxu0 %v2024
  %2052 = vmatpush.bf16.msra.mxu0 %v2023
  %2053 = vmatpush.bf16.msra.mxu0 %v2022
  %2054 = vmatpush.bf16.msra.mxu0 %v2021
  %2055 = vmatmul.bf16.gmra.mxu0 %v1951
  %v2056 = vpop.f32.mrf.mxu0
  %v2057 = vadd.f32 %v1979, %v2056
  %v2058 = vpop.f32.mrf.mxu0
  %v2059 = vadd.f32 %v1979, %v2058
  %2060 = vmatmul.bf16.gmra.mxu0 %v1953
  %v2061 = vpop.f32.mrf.mxu0
  %v2062 = vadd.f32 %v1979, %v2061
  %v2063 = vpop.f32.mrf.mxu0
  %v2064 = vadd.f32 %v1979, %v2063
  %2065 = vdwg.mxu0
  %2066 = vmatpush.bf16.msra.mxu0 0
  %2067 = vmatpush.bf16.msra.mxu0 0
  %2068 = vmatpush.bf16.msra.mxu0 0
  %2069 = vmatpush.bf16.msra.mxu0 0
  %2070 = vmatpush.bf16.msra.mxu0 0
  %2071 = vmatpush.bf16.msra.mxu0 0
  %2072 = vmatpush.bf16.msra.mxu0 %v2030
  %2073 = vmatpush.bf16.msra.mxu0 %v2029
  %2074 = vmatmul.bf16.gmra.mxu0 %v2042
  %v2075 = vpop.f32.mrf.mxu0
  %v2076 = vadd.f32 %v2057, %v2075
  %v2077 = vpop.f32.mrf.mxu0
  %v2078 = vadd.f32 %v2059, %v2077
  %2079 = vmatmul.bf16.gmra.mxu0 %v2045
  %v2080 = vpop.f32.mrf.mxu0
  %v2081 = vadd.f32 %v2062, %v2080
  %v2082 = vpop.f32.mrf.mxu0
  %v2083 = vadd.f32 %v2064, %v2082
  %2084 = vdwg.mxu0
  %s2085 = scalar_lea.vmem %s11, 1
  %v2086 = vld [vmem:[%s2085] sm:$0x1]
  %s2087 = scalar_lea.vmem %s12, 1
  %v2088 = vld [vmem:[%s2087] sm:$0x1]
  %v2089 = vsel %vm119, %v2076, 0.0
  %2090 = vadd.xlane.f32.xlu0 %v2089
  %v2091 = vpop.xlane.xlu0 %2090
  %v2092 = vsel %vm119, %v2078, 0.0
  %2093 = vadd.xlane.f32.xlu0 %v2092
  %v2094 = vpop.xlane.xlu0 %2093
  %v2095 = vsel %vm119, %v2081, 0.0
  %2096 = vadd.xlane.f32.xlu0 %v2095
  %v2097 = vpop.xlane.xlu0 %2096
  %v2098 = vsel %vm119, %v2083, 0.0
  %2099 = vadd.xlane.f32.xlu0 %v2098
  %v2100 = vpop.xlane.xlu0 %2099
  %v2101 = vmul.f32 %v2091, %v138
  %v2102 = vmul.f32 %v2094, %v138
  %v2103 = vmul.f32 %v2097, %v138
  %v2104 = vmul.f32 %v2100, %v138
  %v2105 = vsub.f32 %v2076, %v2101
  %v2106 = vsub.f32 %v2078, %v2102
  %v2107 = vsub.f32 %v2081, %v2103
  %v2108 = vsub.f32 %v2083, %v2104
  %v2109 = vmul.f32 %v2105, %v2105
  %v2110 = vmul.f32 %v2106, %v2106
  %v2111 = vmul.f32 %v2107, %v2107
  %v2112 = vmul.f32 %v2108, %v2108
  %v2113 = vsel %vm119, %v2109, 0.0
  %2114 = vadd.xlane.f32.xlu0 %v2113
  %v2115 = vpop.xlane.xlu0 %2114
  %v2116 = vsel %vm119, %v2110, 0.0
  %2117 = vadd.xlane.f32.xlu0 %v2116
  %v2118 = vpop.xlane.xlu0 %2117
  %v2119 = vsel %vm119, %v2111, 0.0
  %2120 = vadd.xlane.f32.xlu0 %v2119
  %v2121 = vpop.xlane.xlu0 %2120
  %v2122 = vsel %vm119, %v2112, 0.0
  %2123 = vadd.xlane.f32.xlu0 %v2122
  %v2124 = vpop.xlane.xlu0 %2123
  %v2125 = vmul.f32 %v2115, %v138
  %v2126 = vmul.f32 %v2118, %v138
  %v2127 = vmul.f32 %v2121, %v138
  %v2128 = vmul.f32 %v2124, %v138
  %v2129 = vadd.f32 %v2125, 1e-05
  %v2130 = vadd.f32 %v2126, 1e-05
  %v2131 = vadd.f32 %v2127, 1e-05
  %v2132 = vadd.f32 %v2128, 1e-05
  %v2133 = vrsqrt.pop %v2129
  %v2134 = vmul.f32 %v2133, %v2129
  %v2135 = vmul.f32 %v2134, %v2133
  %v2136 = vmul.f32 0.5, %v2135
  %v2137 = vsub.f32 1.5, %v2136
  %v2138 = vmul.f32 %v2133, %v2137
  %vm2139 = vweird.f32 %v2129
  %vm2140 = vweird.f32 %v2133
  %vm2141 = vmor %vm2139, %vm2140
  %v2142 = vsel %vm2141, %v2133, %v2138
  %v2143 = vrsqrt.pop %v2130
  %v2144 = vmul.f32 %v2143, %v2130
  %v2145 = vmul.f32 %v2144, %v2143
  %v2146 = vmul.f32 0.5, %v2145
  %v2147 = vsub.f32 1.5, %v2146
  %v2148 = vmul.f32 %v2143, %v2147
  %vm2149 = vweird.f32 %v2130
  %vm2150 = vweird.f32 %v2143
  %vm2151 = vmor %vm2149, %vm2150
  %v2152 = vsel %vm2151, %v2143, %v2148
  %v2153 = vrsqrt.pop %v2131
  %v2154 = vmul.f32 %v2153, %v2131
  %v2155 = vmul.f32 %v2154, %v2153
  %v2156 = vmul.f32 0.5, %v2155
  %v2157 = vsub.f32 1.5, %v2156
  %v2158 = vmul.f32 %v2153, %v2157
  %vm2159 = vweird.f32 %v2131
  %vm2160 = vweird.f32 %v2153
  %vm2161 = vmor %vm2159, %vm2160
  %v2162 = vsel %vm2161, %v2153, %v2158
  %v2163 = vrsqrt.pop %v2132
  %v2164 = vmul.f32 %v2163, %v2132
  %v2165 = vmul.f32 %v2164, %v2163
  %v2166 = vmul.f32 0.5, %v2165
  %v2167 = vsub.f32 1.5, %v2166
  %v2168 = vmul.f32 %v2163, %v2167
  %vm2169 = vweird.f32 %v2132
  %vm2170 = vweird.f32 %v2163
  %vm2171 = vmor %vm2169, %vm2170
  %v2172 = vsel %vm2171, %v2163, %v2168
  %v2173 = vmul.f32 %v2105, %v2142
  %v2174 = vmul.f32 %v2106, %v2152
  %v2175 = vmul.f32 %v2107, %v2162
  %v2176 = vmul.f32 %v2108, %v2172
  %v2178 = vperm.slane %v2086, 0
  %v2180 = vmul.f32 %v2173, %v2178
  %v2181 = vmul.f32 %v2174, %v2178
  %v2182 = vmul.f32 %v2175, %v2178
  %v2183 = vmul.f32 %v2176, %v2178
  %v2185 = vperm.slane %v2088, 0
  %v2187 = vadd.f32 %v2180, %v2185
  %v2188 = vadd.f32 %v2181, %v2185
  %v2189 = vadd.f32 %v2182, %v2185
  %v2190 = vadd.f32 %v2183, %v2185
  %v2191 = vmul.f32 %v2187, 0.5
  %v2192 = vmul.f32 %v2188, 0.5
  %v2193 = vmul.f32 %v2189, 0.5
  %v2194 = vmul.f32 %v2190, 0.5
  %v2195 = vmul.f32 %v2187, 0.70710677
  %v2196 = vmul.f32 %v2188, 0.70710677
  %v2197 = vmul.f32 %v2189, 0.70710677
  %v2198 = vmul.f32 %v2190, 0.70710677
  %vm2199 = vcmp.ge.f32.partialorder %v2195, 0.0
  %vm2200 = vcmp.ge.f32.partialorder %v2196, 0.0
  %vm2201 = vcmp.ge.f32.partialorder %v2197, 0.0
  %vm2202 = vcmp.ge.f32.partialorder %v2198, 0.0
  %v2203 = vsel %vm2199, 1.0, -1.0
  %v2204 = vsel %vm2200, 1.0, -1.0
  %v2205 = vsel %vm2201, 1.0, -1.0
  %v2206 = vsel %vm2202, 1.0, -1.0
  %v2207 = vand.u32 2147483647, %v2195
  %v2208 = vand.u32 2147483647, %v2196
  %v2209 = vand.u32 2147483647, %v2197
  %v2210 = vand.u32 2147483647, %v2198
  %v2211 = vmul.f32 %v2207, 0.3275911
  %v2212 = vmul.f32 %v2208, 0.3275911
  %v2213 = vmul.f32 %v2209, 0.3275911
  %v2214 = vmul.f32 %v2210, 0.3275911
  %v2215 = vadd.f32 %v2211, 1.0
  %v2216 = vadd.f32 %v2212, 1.0
  %v2217 = vadd.f32 %v2213, 1.0
  %v2218 = vadd.f32 %v2214, 1.0
  %v2219 = vrcp.pop %v2215
  %v2220 = vmul.f32 %v2215, %v2219
  %v2221 = vsub.f32 1.0, %v2220
  %v2222 = vmul.f32 %v2219, %v2221
  %v2223 = vadd.f32 %v2219, %v2222
  %vm2224 = vweird.f32 %v2215
  %vm2225 = vweird.f32 %v2219
  %vm2226 = vmor %vm2224, %vm2225
  %v2227 = vsel %vm2226, %v2219, %v2223
  %v2228 = vand.u32 2147483647, %v2215
  %vm2229 = vcmp.eq.f32.partialorder %v2228, 8.507059e+37
  %v2230 = vand.u32 %v2215, 2147483648
  %v2231 = vor.u32 1.1754944e-38, %v2230
  %v2232 = vsel %vm2229, %v2231, %v2227
  %v2233 = vmul.f32 1.0, %v2232
  %v2234 = vrcp.pop %v2216
  %v2235 = vmul.f32 %v2216, %v2234
  %v2236 = vsub.f32 1.0, %v2235
  %v2237 = vmul.f32 %v2234, %v2236
  %v2238 = vadd.f32 %v2234, %v2237
  %vm2239 = vweird.f32 %v2216
  %vm2240 = vweird.f32 %v2234
  %vm2241 = vmor %vm2239, %vm2240
  %v2242 = vsel %vm2241, %v2234, %v2238
  %v2243 = vand.u32 2147483647, %v2216
  %vm2244 = vcmp.eq.f32.partialorder %v2243, 8.507059e+37
  %v2245 = vand.u32 %v2216, 2147483648
  %v2246 = vor.u32 1.1754944e-38, %v2245
  %v2247 = vsel %vm2244, %v2246, %v2242
  %v2248 = vmul.f32 1.0, %v2247
  %v2249 = vrcp.pop %v2217
  %v2250 = vmul.f32 %v2217, %v2249
  %v2251 = vsub.f32 1.0, %v2250
  %v2252 = vmul.f32 %v2249, %v2251
  %v2253 = vadd.f32 %v2249, %v2252
  %vm2254 = vweird.f32 %v2217
  %vm2255 = vweird.f32 %v2249
  %vm2256 = vmor %vm2254, %vm2255
  %v2257 = vsel %vm2256, %v2249, %v2253
  %v2258 = vand.u32 2147483647, %v2217
  %vm2259 = vcmp.eq.f32.partialorder %v2258, 8.507059e+37
  %v2260 = vand.u32 %v2217, 2147483648
  %v2261 = vor.u32 1.1754944e-38, %v2260
  %v2262 = vsel %vm2259, %v2261, %v2257
  %v2263 = vmul.f32 1.0, %v2262
  %v2264 = vrcp.pop %v2218
  %v2265 = vmul.f32 %v2218, %v2264
  %v2266 = vsub.f32 1.0, %v2265
  %v2267 = vmul.f32 %v2264, %v2266
  %v2268 = vadd.f32 %v2264, %v2267
  %vm2269 = vweird.f32 %v2218
  %vm2270 = vweird.f32 %v2264
  %vm2271 = vmor %vm2269, %vm2270
  %v2272 = vsel %vm2271, %v2264, %v2268
  %v2273 = vand.u32 2147483647, %v2218
  %vm2274 = vcmp.eq.f32.partialorder %v2273, 8.507059e+37
  %v2275 = vand.u32 %v2218, 2147483648
  %v2276 = vor.u32 1.1754944e-38, %v2275
  %v2277 = vsel %vm2274, %v2276, %v2272
  %v2278 = vmul.f32 1.0, %v2277
  %v2279 = vmul.f32 %v2233, 1.0614054
  %v2280 = vmul.f32 %v2248, 1.0614054
  %v2281 = vmul.f32 %v2263, 1.0614054
  %v2282 = vmul.f32 %v2278, 1.0614054
  %v2283 = vadd.f32 %v2279, -1.4531521
  %v2284 = vadd.f32 %v2280, -1.4531521
  %v2285 = vadd.f32 %v2281, -1.4531521
  %v2286 = vadd.f32 %v2282, -1.4531521
  %v2287 = vmul.f32 %v2283, %v2233
  %v2288 = vmul.f32 %v2284, %v2248
  %v2289 = vmul.f32 %v2285, %v2263
  %v2290 = vmul.f32 %v2286, %v2278
  %v2291 = vadd.f32 %v2287, 1.4214138
  %v2292 = vadd.f32 %v2288, 1.4214138
  %v2293 = vadd.f32 %v2289, 1.4214138
  %v2294 = vadd.f32 %v2290, 1.4214138
  %v2295 = vmul.f32 %v2291, %v2233
  %v2296 = vmul.f32 %v2292, %v2248
  %v2297 = vmul.f32 %v2293, %v2263
  %v2298 = vmul.f32 %v2294, %v2278
  %v2299 = vadd.f32 %v2295, -0.28449672
  %v2300 = vadd.f32 %v2296, -0.28449672
  %v2301 = vadd.f32 %v2297, -0.28449672
  %v2302 = vadd.f32 %v2298, -0.28449672
  %v2303 = vmul.f32 %v2299, %v2233
  %v2304 = vmul.f32 %v2300, %v2248
  %v2305 = vmul.f32 %v2301, %v2263
  %v2306 = vmul.f32 %v2302, %v2278
  %v2307 = vadd.f32 %v2303, 0.2548296
  %v2308 = vadd.f32 %v2304, 0.2548296
  %v2309 = vadd.f32 %v2305, 0.2548296
  %v2310 = vadd.f32 %v2306, 0.2548296
  %v2311 = vmul.f32 %v2307, %v2233
  %v2312 = vmul.f32 %v2308, %v2248
  %v2313 = vmul.f32 %v2309, %v2263
  %v2314 = vmul.f32 %v2310, %v2278
  %v2315 = vsub.f32 0.0, %v2207
  %v2316 = vsub.f32 0.0, %v2208
  %v2317 = vsub.f32 0.0, %v2209
  %v2318 = vsub.f32 0.0, %v2210
  %v2319 = vmul.f32 %v2315, %v2207
  %v2320 = vmul.f32 %v2316, %v2208
  %v2321 = vmul.f32 %v2317, %v2209
  %v2322 = vmul.f32 %v2318, %v2210
  %v2323 = vmul.f32 %v2319, 1.442695
  %v2324 = vpow.pop %v2323
  %v2325 = vmul.f32 %v2320, 1.442695
  %v2326 = vpow.pop %v2325
  %v2327 = vmul.f32 %v2321, 1.442695
  %v2328 = vpow.pop %v2327
  %v2329 = vmul.f32 %v2322, 1.442695
  %v2330 = vpow.pop %v2329
  %v2331 = vmul.f32 %v2311, %v2324
  %v2332 = vmul.f32 %v2312, %v2326
  %v2333 = vmul.f32 %v2313, %v2328
  %v2334 = vmul.f32 %v2314, %v2330
  %v2335 = vsub.f32 1.0, %v2331
  %v2336 = vsub.f32 1.0, %v2332
  %v2337 = vsub.f32 1.0, %v2333
  %v2338 = vsub.f32 1.0, %v2334
  %v2339 = vmul.f32 %v2203, %v2335
  %v2340 = vmul.f32 %v2204, %v2336
  %v2341 = vmul.f32 %v2205, %v2337
  %v2342 = vmul.f32 %v2206, %v2338
  %v2343 = vadd.f32 %v2339, 1.0
  %v2344 = vadd.f32 %v2340, 1.0
  %v2345 = vadd.f32 %v2341, 1.0
  %v2346 = vadd.f32 %v2342, 1.0
  %v2347 = vmul.f32 %v2191, %v2343
  %v2348 = vmul.f32 %v2192, %v2344
  %v2349 = vmul.f32 %v2193, %v2345
  %v2350 = vmul.f32 %v2194, %v2346
  %v2351 = vpack.c.bf16 %v2348, %v2347
  %v2352 = vpack.c.bf16 %v2350, %v2349
  %s2353 = scalar_lea.vmem %s13, 16
  %v2354 = vld [vmem:[%s2353] sm:$0xf]
  %v2355 = vld [vmem:[%s2353 + $0x4] sm:$0xf]
  %v2356 = vld [vmem:[%s2353 + $0x8] sm:$0xf]
  %v2357 = vld [vmem:[%s2353 + $0xc] sm:$0xf]
  %s2358 = scalar_lea.vmem %s14, 1
  %v2359 = vld [vmem:[%s2358] sm:$0x1]
  %v2361 = vperm.slane %v2359, 0
  %v2367 = vunpack.c.l.b16 %v2354
  %v2368 = vunpack.c.l.b16 %v2355
  %v2369 = vunpack.c.l.b16 %v2356
  %v2370 = vunpack.c.l.b16 %v2357
  %v2371 = vpack.c.b16 %v2368, %v2367
  %v2372 = vpack.c.b16 %v2370, %v2369
  %v2376 = vsel %vm119, %v2351, 0
  %v2379 = vsel %vm119, %v2352, 0
  %2381 = vmatpush.bf16.msra.mxu0 0
  %2382 = vmatpush.bf16.msra.mxu0 0
  %2383 = vmatpush.bf16.msra.mxu0 0
  %2384 = vmatpush.bf16.msra.mxu0 0
  %2385 = vmatpush.bf16.msra.mxu0 0
  %2386 = vmatpush.bf16.msra.mxu0 0
  %2387 = vmatpush.bf16.msra.mxu0 %v2372
  %2388 = vmatpush.bf16.msra.mxu0 %v2371
  %2389 = vmatmul.bf16.gmra.mxu0 %v2376
  %v2390 = vpop.f32.mrf.mxu0
  %v2391 = vadd.f32 %v2361, %v2390
  %v2392 = vpop.f32.mrf.mxu0
  %v2393 = vadd.f32 %v2361, %v2392
  %2394 = vmatmul.bf16.gmra.mxu0 %v2379
  %v2395 = vpop.f32.mrf.mxu0
  %v2396 = vadd.f32 %v2361, %v2395
  %v2397 = vpop.f32.mrf.mxu0
  %v2398 = vadd.f32 %v2361, %v2397
  %2399 = vdwg.mxu0
  %v2400 = vadd.f32 %v1261, %v2391
  %v2401 = vadd.f32 %v1262, %v2393
  %v2402 = vadd.f32 %v1263, %v2396
  %v2403 = vadd.f32 %v1264, %v2398
  %v2404 = vpack.c.bf16 %v2401, %v2400
  %v2405 = vpack.c.bf16 %v2403, %v2402
  %v2406 = vld [vmem:[%s15] sm:$0xf]
  %v2407 = vld [vmem:[%s15 + $0x4] sm:$0xf]
  %v2408 = vld [vmem:[%s15 + $0x8] sm:$0xf]
  %v2409 = vld [vmem:[%s15 + $0xc] sm:$0xf]
  %v2410 = vld [vmem:[%s16] sm:$0x1]
  %v2412 = vperm.slane %v2410, 0
  %v2418 = vunpack.c.l.b16 %v2406
  %v2419 = vunpack.c.l.b16 %v2407
  %v2420 = vunpack.c.l.b16 %v2408
  %v2421 = vunpack.c.l.b16 %v2409
  %v2422 = vpack.c.b16 %v2419, %v2418
  %v2423 = vpack.c.b16 %v2421, %v2420
  %v2427 = vsel %vm119, %v2404, 0
  %v2430 = vsel %vm119, %v2405, 0
  %2432 = vmatpush.bf16.msra.mxu0 0
  %2433 = vmatpush.bf16.msra.mxu0 0
  %2434 = vmatpush.bf16.msra.mxu0 0
  %2435 = vmatpush.bf16.msra.mxu0 0
  %2436 = vmatpush.bf16.msra.mxu0 0
  %2437 = vmatpush.bf16.msra.mxu0 0
  %2438 = vmatpush.bf16.msra.mxu0 %v2423
  %2439 = vmatpush.bf16.msra.mxu0 %v2422
  %2440 = vmatmul.bf16.gmra.mxu0 %v2427
  %v2441 = vpop.f32.mrf.mxu0
  %v2442 = vadd.f32 %v2412, %v2441
  %v2443 = vpop.f32.mrf.mxu0
  %v2444 = vadd.f32 %v2412, %v2443
  %2445 = vmatmul.bf16.gmra.mxu0 %v2430
  %v2446 = vpop.f32.mrf.mxu0
  %v2447 = vadd.f32 %v2412, %v2446
  %v2448 = vpop.f32.mrf.mxu0
  %v2449 = vadd.f32 %v2412, %v2448
  %2450 = vdwg.mxu0
  %v2451 = vmax.f32 %v2442, 0.0
  %v2452 = vmax.f32 %v2444, 0.0
  %v2453 = vmax.f32 %v2447, 0.0
  %v2454 = vmax.f32 %v2449, 0.0
  %vm2455 = vcmask 130048
  %v2456 = vsel %vm2455, %v2451, -inf
  %v2457 = vsel %vm2455, %v2452, -inf
  %v2458 = vmax.f32 %v2456, %v2457
  %v2459 = vrot.slane %v2458, 4
  %v2460 = vmax.f32 %v2458, %v2459
  %v2461 = vrot.slane %v2460, 2
  %v2462 = vmax.f32 %v2460, %v2461
  %v2463 = vrot.slane %v2462, 1
  %v2464 = vmax.f32 %v2462, %v2463
  %v2465 = vsel %vm2455, %v2453, -inf
  %v2466 = vsel %vm2455, %v2454, -inf
  %v2467 = vmax.f32 %v2465, %v2466
  %v2468 = vrot.slane %v2467, 4
  %v2469 = vmax.f32 %v2467, %v2468
  %v2470 = vrot.slane %v2469, 2
  %v2471 = vmax.f32 %v2469, %v2470
  %v2472 = vrot.slane %v2471, 1
  %v2473 = vmax.f32 %v2471, %v2472
  %v2474 = vld [vmem:[%s17] sm:$0x1]
  %v2476 = vperm.slane %v2474, 0
  %v2478 = vmul.f32 %v2464, %v2476
  %v2479 = vmul.f32 %v2473, %v2476
  %v2482 = vrot.slane %v2479, 7
  %vm2483 = vcmask 1041409
  %v2484 = vsel %vm2483, %v2482, %v2478
  %vm2486 = vcmask 123904
  %v2487 = vsel %vm2486, %v2484, 0.0
  %2488 = vadd.xlane.f32.xlu0 %v2487
  %v2489 = vpop.xlane.xlu0 %2488
  %v2490 = vld [vmem:[#allocation3] sm:$0x1]
  %v2492 = vperm.slane %v2490, 0
  %v2494 = vadd.f32 %v2489, %v2492
  %v2496 = vrot.slane %v2494, 1
  %vm2498 = vcmask 0
  %2499 = vst.msk [vmem:[%s19] sm:$0x1] %vm2498, %v2494
  %2500 = vst.msk [vmem:[%s19 + $0x1] sm:$0x1] %vm2498, %v2496
  // Predicated region
  $region78: #{bytenet_single_seq_forward.1} parent=0 // pred_check
    _
  $region79: #{bytenet_single_seq_forward.1} parent=0 // pred_check_branch
    %2502 = sbr.rel (0) target = $region81
  $region80: #{bytenet_single_seq_forward.1} parent=0 // pred_region
    _
  $region81: #{bytenet_single_seq_forward.1} parent=0 // pred_fallthru
    _
  // Predicated region
  $region82: #{bytenet_single_seq_forward.1} parent=0 // pred_check
    _
  $region83: #{bytenet_single_seq_forward.1} parent=0 // pred_check_branch
    %2504 = sbr.rel (0) target = $region85
  $region84: #{bytenet_single_seq_forward.1} parent=0 // pred_region
    _
  $region85: #{bytenet_single_seq_forward.1} parent=0 // pred_fallthru
    _

</llo_original>
